<compile_context>
chip_gen: v6e
topology: v6e:2x2x1
jax: 0.10.0
libtpu: 0.0.40
codegen_flags: <defaults>
</compile_context>

<pallas_src>
import functools

import jax
import jax.numpy as jnp
from jax import lax
from jax.experimental import pallas as pl
from jax.experimental.pallas import tpu as pltpu


# ----------------------------------------------------------------------------
# BlockSpec helper: whole array as a single VMEM block (grid of size 1).
# ----------------------------------------------------------------------------
def _full_spec(shape):
    nd = len(shape)
    return pl.BlockSpec(shape, lambda i, _nd=nd: (0,) * _nd)


def _row_l2_normalize(x, eps=1e-12):
    """F.normalize(x, p=2, dim=1) == x * rsqrt(max(sum(x*x), eps^2))."""
    ss = jnp.sum(x * x, axis=1, keepdims=True)
    return x * lax.rsqrt(jnp.maximum(ss, eps * eps))


# ----------------------------------------------------------------------------
# Fused kernel 1: GraphGenerator(shared_x) -> (attn, x_global_pred)
# ----------------------------------------------------------------------------
def _graphgen_kernel(x_ref, ew1_ref, eb1_ref, ew2_ref, eb2_ref, W_ref,
                     dw1_ref, db1_ref, dw2_ref, db2_ref,
                     attn_ref, xg_ref):
    x = x_ref[...]                                                   # (N, fs) f32

    # encoder MLP: fs -> 512 -> 512 (dropout identity)
    h1 = jnp.dot(x, ew1_ref[...], preferred_element_type=jnp.float32) + eb1_ref[...]
    h1 = jnp.maximum(h1, 0.0)
    h = jnp.dot(h1.astype(jnp.bfloat16), ew2_ref[...],
                preferred_element_type=jnp.float32) + eb2_ref[...]
    # NOTE: h_norm = F.normalize(h) is computed by the reference but unused by
    # MultiGraphAutoEncoder's returned outputs -> skipped (dead code).

    rh = jnp.maximum(h, 0.0)                                         # relu(h), once
    # K = relu(h) @ W      (bf16 weight, f32 accumulate; bias-free)
    K = jnp.dot(rh.astype(jnp.bfloat16), W_ref[...],
                preferred_element_type=jnp.float32)
    # attn = normalize(K @ relu(h).T, dim=1)   (contract the 512 axis, no transpose)
    a = lax.dot_general(K, rh, (((1,), (1,)), ((), ())),
                        preferred_element_type=jnp.float32)
    attn_ref[...] = _row_l2_normalize(a)

    # decoder MLP: 512 -> 512 -> fs, then sigmoid
    d1 = jnp.dot(K.astype(jnp.bfloat16), dw1_ref[...],
                 preferred_element_type=jnp.float32) + db1_ref[...]
    d1 = jnp.maximum(d1, 0.0)
    xg = jnp.dot(d1, dw2_ref[...], preferred_element_type=jnp.float32) + db2_ref[...]
    xg_ref[...] = jax.nn.sigmoid(xg)


def graphgen_forward(p, shared_x):
    N, fs = shared_x.shape
    args = (shared_x, p["enc_w1"], p["enc_b1"], p["enc_w2"], p["enc_b2"], p["W"],
            p["dec_w1"], p["dec_b1"], p["dec_w2"], p["dec_b2"])
    return pl.pallas_call(
        _graphgen_kernel,
        out_shape=(jax.ShapeDtypeStruct((N, N), jnp.float32),
                   jax.ShapeDtypeStruct((N, fs), jnp.float32)),
        grid=(1,),
        in_specs=[_full_spec(a.shape) for a in args],
        out_specs=(_full_spec((N, N)), _full_spec((N, fs))),
        compiler_params=pltpu.CompilerParams(dimension_semantics=("arbitrary",)),
    )(*args)


# ----------------------------------------------------------------------------
# Fused kernel 2: GraphEncoder + predict_distribution + decode + FeatDec
#   -> (A_pred, z_norm, q, x_pred)
# ----------------------------------------------------------------------------
def _encoder_kernel(adj_ref, x_ref, gw1_ref, gb1_ref, gw2_ref, gb2_ref,
                    cent_ref, fw1_ref, fb1_ref, fw2_ref, fb2_ref,
                    A_ref, zn_ref, q_ref, xp_ref, *, order, alpha):
    adj = adj_ref[...]                 # hoisted: single VMEM->vreg load of adj
    xc = x_ref[...]
    for _ in range(order):             # unrolled at trace time (order is static)
        xc = jnp.dot(adj, xc, preferred_element_type=jnp.float32)

    # GraphEncoder MLP: fv -> hidden -> latent
    e1 = jnp.dot(xc, gw1_ref[...], preferred_element_type=jnp.float32) + gb1_ref[...]
    e1 = jnp.maximum(e1, 0.0)
    z = jnp.dot(e1, gw2_ref[...], preferred_element_type=jnp.float32) + gb2_ref[...]

    z_norm = _row_l2_normalize(z)
    zn_ref[...] = z_norm

    # predict_distribution (Student-t / DEC) via the matmul distance identity:
    # dist2 = ||z||^2 + ||c||^2 - 2 z @ c^T   (all 2-D, MXU-friendly)
    c = cent_ref[...]                                                 # (C, D)
    z2 = jnp.sum(z_norm * z_norm, axis=1, keepdims=True)              # (N, 1)
    ones_d = jnp.ones((1, c.shape[1]), dtype=jnp.float32)
    c2 = lax.dot_general(ones_d, c * c, (((1,), (1,)), ((), ())),
                         preferred_element_type=jnp.float32)          # (1, C)
    zc = lax.dot_general(z_norm, c, (((1,), (1,)), ((), ())),
                         preferred_element_type=jnp.float32)          # (N, C)
    dist2 = jnp.maximum(z2 + c2 - 2.0 * zc, 0.0)
    q = 1.0 / (1.0 + dist2 / alpha)
    if alpha != 1.0:                   # alpha == 1 -> exponent is exactly 1, skip pow
        q = q ** ((alpha + 1.0) / 2.0)
    q_sum = jnp.sum(q, axis=1, keepdims=True)
    q_ref[...] = q * pl.reciprocal(q_sum, approx=True)

    # decode(): sigmoid(z_norm @ z_norm.T)
    g = lax.dot_general(z_norm, z_norm, (((1,), (1,)), ((), ())),
                        preferred_element_type=jnp.float32)
    A_ref[...] = jax.nn.sigmoid(g)

    # FeatDec(relu(z)) -> sigmoid
    rz = jnp.maximum(z, 0.0)
    f1 = jnp.dot(rz, fw1_ref[...], preferred_element_type=jnp.float32) + fb1_ref[...]
    f1 = jnp.maximum(f1, 0.0)
    xp = jnp.dot(f1, fw2_ref[...], preferred_element_type=jnp.float32) + fb2_ref[...]
    xp_ref[...] = jax.nn.sigmoid(xp)


def encoder_branch_forward(params, x, adj, *, order, alpha):
    N, fv = x.shape
    ge, fd = params["graphenc"], params["featdec"]
    cent = params["centroid_0"]
    latent = ge["w2"].shape[1]
    C = cent.shape[0]
    args = (adj, x, ge["w1"], ge["b1"], ge["w2"], ge["b2"], cent,
            fd["w1"], fd["b1"], fd["w2"], fd["b2"])
    kernel = functools.partial(_encoder_kernel, order=order, alpha=alpha)
    return pl.pallas_call(
        kernel,
        out_shape=(jax.ShapeDtypeStruct((N, N), jnp.float32),
                   jax.ShapeDtypeStruct((N, latent), jnp.float32),
                   jax.ShapeDtypeStruct((N, C), jnp.float32),
                   jax.ShapeDtypeStruct((N, fv), jnp.float32)),
        grid=(1,),
        in_specs=[_full_spec(a.shape) for a in args],
        out_specs=(_full_spec((N, N)), _full_spec((N, latent)),
                   _full_spec((N, C)), _full_spec((N, fv))),
        compiler_params=pltpu.CompilerParams(dimension_semantics=("arbitrary",)),
    )(*args)


# ----------------------------------------------------------------------------
# Parameter construction (deterministic, synthetic)
# ----------------------------------------------------------------------------
def _xavier(key, shape):
    fan_in, fan_out = shape
    std = (2.0 / (fan_in + fan_out)) ** 0.5
    return std * jax.random.normal(key, shape, dtype=jnp.float32)


def init_params(key, feat_dim, hidden_dim, latent_dim, class_num):
    ks = list(jax.random.split(key, 20))
    gg_h, gg_l = 512, 512  # GraphGenerator(feat_dim[-1], 512, 512, ...)
    fv, fs = feat_dim[0], feat_dim[-1]
    bf16 = jnp.bfloat16
    p = {
        "graphgen": {
            # MLP encoder: fs -> 512 -> 512
            "enc_w1": _xavier(ks[0], (fs, gg_h)),
            "enc_b1": jnp.zeros((1, gg_h), jnp.float32),
            "enc_w2": _xavier(ks[1], (gg_h, gg_l)).astype(bf16),   # 512x512 -> bf16
            "enc_b2": jnp.zeros((1, gg_l), jnp.float32),
            "W": _xavier(ks[2], (gg_l, gg_l)).astype(bf16),        # 512x512 -> bf16
            # MLP decoder: 512 -> 512 -> fs
            "dec_w1": _xavier(ks[3], (gg_l, gg_h)).astype(bf16),   # 512x512 -> bf16
            "dec_b1": jnp.zeros((1, gg_h), jnp.float32),
            "dec_w2": _xavier(ks[4], (gg_h, fs)),
            "dec_b2": jnp.zeros((1, fs), jnp.float32),
        },
        "graphenc": {
            # TODO(synk): GraphEncoder source not provided; order-k adjacency
            # propagation followed by a 2-layer MLP.
            "w1": _xavier(ks[5], (fv, hidden_dim)),
            "b1": jnp.zeros((1, hidden_dim), jnp.float32),
            "w2": _xavier(ks[6], (hidden_dim, latent_dim)),
            "b2": jnp.zeros((1, latent_dim), jnp.float32),
        },
        "featdec": {
            # TODO(synk): LatentMappingLayer source not provided; 2-layer MLP.
            "w1": _xavier(ks[7], (latent_dim, hidden_dim)),
            "b1": jnp.zeros((1, hidden_dim), jnp.float32),
            "w2": _xavier(ks[8], (hidden_dim, fv)),
            "b2": jnp.zeros((1, fv), jnp.float32),
        },
        "centroid_0": jax.random.normal(ks[9], (class_num, latent_dim), jnp.float32),
    }
    return p


# ----------------------------------------------------------------------------
# Forward pass (training branch; dropout identity == eval dropout behavior)
# ----------------------------------------------------------------------------
def multi_graph_ae_forward(params, x, shared_x, adj, order=5, alpha_q=1.0):
    attn, x_global_pred = graphgen_forward(params["graphgen"], shared_x)
    A_pred, z_norm, q, x_pred = encoder_branch_forward(
        params, x, adj, order=order, alpha=alpha_q)
    return A_pred, z_norm, q, x_pred, x_global_pred, attn


# ----------------------------------------------------------------------------
# Demo
# ----------------------------------------------------------------------------
if __name__ == "__main__":
    N = 16                      # number of graph nodes
    feat_dim = [32, 64]         # [view-0 feature dim, shared feature dim]
    hidden_dim, latent_dim = 32, 16
    class_num, order = 4, 5

    key = jax.random.PRNGKey(0)
    kp, kx, ks, ka = jax.random.split(key, 4)

    params = init_params(kp, feat_dim, hidden_dim, latent_dim, class_num)

    x = jax.random.normal(kx, (N, feat_dim[0]), dtype=jnp.float32)
    shared_x = jax.random.normal(ks, (N, feat_dim[-1]), dtype=jnp.float32)
    # simple row-normalized adjacency with self loops
    a_raw = (jax.random.uniform(ka, (N, N)) > 0.7).astype(jnp.float32) \
            + jnp.eye(N, dtype=jnp.float32)
    adj = a_raw / jnp.sum(a_raw, axis=1, keepdims=True)

    outs = multi_graph_ae_forward(params, x, shared_x, adj, order=order)
    outs = jax.block_until_ready(outs)

    A_pred, z_norm, q, x_pred, x_global_pred, attn = outs
    assert A_pred.shape == (N, N)
    assert z_norm.shape == (N, latent_dim)
    assert q.shape == (N, class_num)
    assert x_pred.shape == (N, feat_dim[0])
    assert x_global_pred.shape == (N, feat_dim[-1])
    assert attn.shape == (N, N)
    assert all(jnp.all(jnp.isfinite(o)) for o in outs)

    print("KERNEL_OK")
</pallas_src>

<mosaic_0001>
module attributes {stable_mosaic.version = 11 : i64} {
  func.func @_graphgen_kernel(%arg0: i32, %arg1: memref<16x64xf32, #tpu.memory_space<vmem>>, %arg2: memref<64x512xf32, #tpu.memory_space<vmem>>, %arg3: memref<1x512xf32, #tpu.memory_space<vmem>>, %arg4: memref<512x512xbf16, #tpu.memory_space<vmem>>, %arg5: memref<1x512xf32, #tpu.memory_space<vmem>>, %arg6: memref<512x512xbf16, #tpu.memory_space<vmem>>, %arg7: memref<512x512xbf16, #tpu.memory_space<vmem>>, %arg8: memref<1x512xf32, #tpu.memory_space<vmem>>, %arg9: memref<512x64xf32, #tpu.memory_space<vmem>>, %arg10: memref<1x64xf32, #tpu.memory_space<vmem>>, %arg11: memref<16x16xf32, #tpu.memory_space<vmem>>, %arg12: memref<16x64xf32, #tpu.memory_space<vmem>>) attributes {dimension_semantics = [#tpu.dimension_semantics<arbitrary>], iteration_bounds = array<i64: 1>, scalar_prefetch = 0 : i64, scratch_operands = 0 : i64, tpu.core_type = #tpu.core_type<tc>, window_params = [{pipeline_mode = #tpu.pipeline_mode<synchronous>, transform_indices = @transform_0, window_bounds = array<i64: 16, 64>}, {pipeline_mode = #tpu.pipeline_mode<synchronous>, transform_indices = @transform_1, window_bounds = array<i64: 64, 512>}, {pipeline_mode = #tpu.pipeline_mode<synchronous>, transform_indices = @transform_2, window_bounds = array<i64: 1, 512>}, {pipeline_mode = #tpu.pipeline_mode<synchronous>, transform_indices = @transform_3, window_bounds = array<i64: 512, 512>}, {pipeline_mode = #tpu.pipeline_mode<synchronous>, transform_indices = @transform_4, window_bounds = array<i64: 1, 512>}, {pipeline_mode = #tpu.pipeline_mode<synchronous>, transform_indices = @transform_5, window_bounds = array<i64: 512, 512>}, {pipeline_mode = #tpu.pipeline_mode<synchronous>, transform_indices = @transform_6, window_bounds = array<i64: 512, 512>}, {pipeline_mode = #tpu.pipeline_mode<synchronous>, transform_indices = @transform_7, window_bounds = array<i64: 1, 512>}, {pipeline_mode = #tpu.pipeline_mode<synchronous>, transform_indices = @transform_8, window_bounds = array<i64: 512, 64>}, {pipeline_mode = #tpu.pipeline_mode<synchronous>, transform_indices = @transform_9, window_bounds = array<i64: 1, 64>}, {pipeline_mode = #tpu.pipeline_mode<synchronous>, transform_indices = @transform_10, window_bounds = array<i64: 16, 16>}, {pipeline_mode = #tpu.pipeline_mode<synchronous>, transform_indices = @transform_11, window_bounds = array<i64: 16, 64>}]} {
    %c0 = arith.constant 0 : index
    %c0_0 = arith.constant 0 : index
    %0 = vector.load %arg1[%c0, %c0_0] : memref<16x64xf32, #tpu.memory_space<vmem>>, vector<16x64xf32>
    %c0_1 = arith.constant 0 : index
    %c0_2 = arith.constant 0 : index
    %1 = vector.load %arg2[%c0_1, %c0_2] : memref<64x512xf32, #tpu.memory_space<vmem>>, vector<64x512xf32>
    %cst = arith.constant dense<0.000000e+00> : vector<16x512xf32>
    %2 = tpu.matmul %0, %1, %cst {dimension_numbers = #tpu.dot_dimension_numbers<[1], [0], [0], [1], [0, 0, 1, 1], [], []>} : vector<16x64xf32>, vector<64x512xf32>, vector<16x512xf32> -> vector<16x512xf32>
    %c0_3 = arith.constant 0 : index
    %c0_4 = arith.constant 0 : index
    %3 = vector.load %arg3[%c0_3, %c0_4] : memref<1x512xf32, #tpu.memory_space<vmem>>, vector<1x512xf32>
    %4 = vector.broadcast %3 : vector<1x512xf32> to vector<16x512xf32>
    %5 = arith.addf %2, %4 : vector<16x512xf32>
    %cst_5 = arith.constant 0.000000e+00 : f32
    %6 = vector.broadcast %cst_5 : f32 to vector<16x512xf32>
    %7 = arith.maximumf %5, %6 : vector<16x512xf32>
    %8 = arith.truncf %7 : vector<16x512xf32> to vector<16x512xbf16>
    %c0_6 = arith.constant 0 : index
    %c0_7 = arith.constant 0 : index
    %9 = vector.load %arg4[%c0_6, %c0_7] : memref<512x512xbf16, #tpu.memory_space<vmem>>, vector<512x512xbf16>
    %cst_8 = arith.constant dense<0.000000e+00> : vector<16x512xf32>
    %10 = tpu.matmul %8, %9, %cst_8 {dimension_numbers = #tpu.dot_dimension_numbers<[1], [0], [0], [1], [0, 0, 1, 1], [], []>} : vector<16x512xbf16>, vector<512x512xbf16>, vector<16x512xf32> -> vector<16x512xf32>
    %c0_9 = arith.constant 0 : index
    %c0_10 = arith.constant 0 : index
    %11 = vector.load %arg5[%c0_9, %c0_10] : memref<1x512xf32, #tpu.memory_space<vmem>>, vector<1x512xf32>
    %12 = vector.broadcast %11 : vector<1x512xf32> to vector<16x512xf32>
    %13 = arith.addf %10, %12 : vector<16x512xf32>
    %cst_11 = arith.constant 0.000000e+00 : f32
    %14 = vector.broadcast %cst_11 : f32 to vector<16x512xf32>
    %15 = arith.maximumf %13, %14 : vector<16x512xf32>
    %16 = arith.truncf %15 : vector<16x512xf32> to vector<16x512xbf16>
    %c0_12 = arith.constant 0 : index
    %c0_13 = arith.constant 0 : index
    %17 = vector.load %arg6[%c0_12, %c0_13] : memref<512x512xbf16, #tpu.memory_space<vmem>>, vector<512x512xbf16>
    %cst_14 = arith.constant dense<0.000000e+00> : vector<16x512xf32>
    %18 = tpu.matmul %16, %17, %cst_14 {dimension_numbers = #tpu.dot_dimension_numbers<[1], [0], [0], [1], [0, 0, 1, 1], [], []>} : vector<16x512xbf16>, vector<512x512xbf16>, vector<16x512xf32> -> vector<16x512xf32>
    %cst_15 = arith.constant dense<0.000000e+00> : vector<16x16xf32>
    %19 = tpu.matmul %18, %15, %cst_15 {dimension_numbers = #tpu.dot_dimension_numbers<[1], [1], [0], [0], [0, 0, 1, 0], [], []>} : vector<16x512xf32>, vector<16x512xf32>, vector<16x16xf32> -> vector<16x16xf32>
    %20 = arith.mulf %19, %19 : vector<16x16xf32>
    %cst_16 = arith.constant dense<0.000000e+00> : vector<16xf32>
    %21 = vector.multi_reduction <add>, %20, %cst_16 [1] : vector<16x16xf32> to vector<16xf32>
    %22 = vector.shape_cast %21 : vector<16xf32> to vector<16x1xf32>
    %cst_17 = arith.constant 1.000000e-24 : f32
    %23 = vector.broadcast %cst_17 : f32 to vector<16x1xf32>
    %24 = arith.maximumf %22, %23 : vector<16x1xf32>
    %25 = math.rsqrt %24 : vector<16x1xf32>
    %26 = vector.broadcast %25 : vector<16x1xf32> to vector<16x16xf32>
    %27 = arith.mulf %19, %26 : vector<16x16xf32>
    %c0_18 = arith.constant 0 : index
    %c0_19 = arith.constant 0 : index
    %28 = vector.load %arg11[%c0_18, %c0_19] : memref<16x16xf32, #tpu.memory_space<vmem>>, vector<16x16xf32>
    tpu.vector_store %arg11[%c0_18, %c0_19], %27 {strides = array<i32>} : memref<16x16xf32, #tpu.memory_space<vmem>>, vector<16x16xf32>,
    %29 = arith.truncf %18 : vector<16x512xf32> to vector<16x512xbf16>
    %c0_20 = arith.constant 0 : index
    %c0_21 = arith.constant 0 : index
    %30 = vector.load %arg7[%c0_20, %c0_21] : memref<512x512xbf16, #tpu.memory_space<vmem>>, vector<512x512xbf16>
    %cst_22 = arith.constant dense<0.000000e+00> : vector<16x512xf32>
    %31 = tpu.matmul %29, %30, %cst_22 {dimension_numbers = #tpu.dot_dimension_numbers<[1], [0], [0], [1], [0, 0, 1, 1], [], []>} : vector<16x512xbf16>, vector<512x512xbf16>, vector<16x512xf32> -> vector<16x512xf32>
    %c0_23 = arith.constant 0 : index
    %c0_24 = arith.constant 0 : index
    %32 = vector.load %arg8[%c0_23, %c0_24] : memref<1x512xf32, #tpu.memory_space<vmem>>, vector<1x512xf32>
    %33 = vector.broadcast %32 : vector<1x512xf32> to vector<16x512xf32>
    %34 = arith.addf %31, %33 : vector<16x512xf32>
    %cst_25 = arith.constant 0.000000e+00 : f32
    %35 = vector.broadcast %cst_25 : f32 to vector<16x512xf32>
    %36 = arith.maximumf %34, %35 : vector<16x512xf32>
    %c0_26 = arith.constant 0 : index
    %c0_27 = arith.constant 0 : index
    %37 = vector.load %arg9[%c0_26, %c0_27] : memref<512x64xf32, #tpu.memory_space<vmem>>, vector<512x64xf32>
    %cst_28 = arith.constant dense<0.000000e+00> : vector<16x64xf32>
    %38 = tpu.matmul %36, %37, %cst_28 {dimension_numbers = #tpu.dot_dimension_numbers<[1], [0], [0], [1], [0, 0, 1, 1], [], []>} : vector<16x512xf32>, vector<512x64xf32>, vector<16x64xf32> -> vector<16x64xf32>
    %c0_29 = arith.constant 0 : index
    %c0_30 = arith.constant 0 : index
    %39 = vector.load %arg10[%c0_29, %c0_30] : memref<1x64xf32, #tpu.memory_space<vmem>>, vector<1x64xf32>
    %40 = vector.broadcast %39 : vector<1x64xf32> to vector<16x64xf32>
    %41 = arith.addf %38, %40 : vector<16x64xf32>
    %42 = arith.negf %41 : vector<16x64xf32>
    %43 = math.exp %42 : vector<16x64xf32>
    %cst_31 = arith.constant 1.000000e+00 : f32
    %44 = vector.broadcast %cst_31 : f32 to vector<16x64xf32>
    %45 = arith.addf %44, %43 : vector<16x64xf32>
    %46 = arith.divf %44, %45 : vector<16x64xf32>
    %c0_32 = arith.constant 0 : index
    %c0_33 = arith.constant 0 : index
    %47 = vector.load %arg12[%c0_32, %c0_33] : memref<16x64xf32, #tpu.memory_space<vmem>>, vector<16x64xf32>
    tpu.vector_store %arg12[%c0_32, %c0_33], %46 {strides = array<i32>} : memref<16x64xf32, #tpu.memory_space<vmem>>, vector<16x64xf32>,
    return
  }
  func.func @transform_0(%arg0: i32) -> (i32, i32) {
    %c0_i32 = arith.constant 0 : i32
    %c0_i32_0 = arith.constant 0 : i32
    %c0_i32_1 = arith.constant 0 : i32
    return %c0_i32, %c0_i32_0 : i32, i32
  }
  func.func @transform_1(%arg0: i32) -> (i32, i32) {
    %c0_i32 = arith.constant 0 : i32
    %c0_i32_0 = arith.constant 0 : i32
    %c0_i32_1 = arith.constant 0 : i32
    return %c0_i32, %c0_i32_0 : i32, i32
  }
  func.func @transform_2(%arg0: i32) -> (i32, i32) {
    %c0_i32 = arith.constant 0 : i32
    %c0_i32_0 = arith.constant 0 : i32
    %c0_i32_1 = arith.constant 0 : i32
    return %c0_i32, %c0_i32_0 : i32, i32
  }
  func.func @transform_3(%arg0: i32) -> (i32, i32) {
    %c0_i32 = arith.constant 0 : i32
    %c0_i32_0 = arith.constant 0 : i32
    %c0_i32_1 = arith.constant 0 : i32
    return %c0_i32, %c0_i32_0 : i32, i32
  }
  func.func @transform_4(%arg0: i32) -> (i32, i32) {
    %c0_i32 = arith.constant 0 : i32
    %c0_i32_0 = arith.constant 0 : i32
    %c0_i32_1 = arith.constant 0 : i32
    return %c0_i32, %c0_i32_0 : i32, i32
  }
  func.func @transform_5(%arg0: i32) -> (i32, i32) {
    %c0_i32 = arith.constant 0 : i32
    %c0_i32_0 = arith.constant 0 : i32
    %c0_i32_1 = arith.constant 0 : i32
    return %c0_i32, %c0_i32_0 : i32, i32
  }
  func.func @transform_6(%arg0: i32) -> (i32, i32) {
    %c0_i32 = arith.constant 0 : i32
    %c0_i32_0 = arith.constant 0 : i32
    %c0_i32_1 = arith.constant 0 : i32
    return %c0_i32, %c0_i32_0 : i32, i32
  }
  func.func @transform_7(%arg0: i32) -> (i32, i32) {
    %c0_i32 = arith.constant 0 : i32
    %c0_i32_0 = arith.constant 0 : i32
    %c0_i32_1 = arith.constant 0 : i32
    return %c0_i32, %c0_i32_0 : i32, i32
  }
  func.func @transform_8(%arg0: i32) -> (i32, i32) {
    %c0_i32 = arith.constant 0 : i32
    %c0_i32_0 = arith.constant 0 : i32
    %c0_i32_1 = arith.constant 0 : i32
    return %c0_i32, %c0_i32_0 : i32, i32
  }
  func.func @transform_9(%arg0: i32) -> (i32, i32) {
    %c0_i32 = arith.constant 0 : i32
    %c0_i32_0 = arith.constant 0 : i32
    %c0_i32_1 = arith.constant 0 : i32
    return %c0_i32, %c0_i32_0 : i32, i32
  }
  func.func @transform_10(%arg0: i32) -> (i32, i32) {
    %c0_i32 = arith.constant 0 : i32
    %c0_i32_0 = arith.constant 0 : i32
    %c0_i32_1 = arith.constant 0 : i32
    return %c0_i32, %c0_i32_0 : i32, i32
  }
  func.func @transform_11(%arg0: i32) -> (i32, i32) {
    %c0_i32 = arith.constant 0 : i32
    %c0_i32_0 = arith.constant 0 : i32
    %c0_i32_1 = arith.constant 0 : i32
    return %c0_i32, %c0_i32_0 : i32, i32
  }
}

</mosaic_0001>

<llo_original>
// kernel: tpu_custom_call.1
$region0: #{tpu_custom_call.1}
  #allocation0 [shape = 'u32[]', space=smem, size = 0x4, offset = 0x4, fixed_abs, tag = 'smem constant byte address 0x4 - core index']
  #allocation1 [shape = 'u32[144,128]{1,0:T(1,128)}', space=vmem, size = 0x12000, scoped, tag = 'internal scratch']
  %s0 = inlined_call_operand.vmem [shape: f32[16,64], index: 0, kind: input, shape index: {}]
  %s1 = inlined_call_operand.vmem [shape: f32[64,512], index: 1, kind: input, shape index: {}]
  %s2 = inlined_call_operand.vmem [shape: f32[1,512], index: 2, kind: input, shape index: {}]
  %s3 = inlined_call_operand.hbm [shape: bf16[512,512], index: 3, kind: input, shape index: {}]
  %s4 = inlined_call_operand.vmem [shape: f32[1,512], index: 4, kind: input, shape index: {}]
  %s5 = inlined_call_operand.hbm [shape: bf16[512,512], index: 5, kind: input, shape index: {}]
  %s6 = inlined_call_operand.hbm [shape: bf16[512,512], index: 6, kind: input, shape index: {}]
  %s7 = inlined_call_operand.vmem [shape: f32[1,512], index: 7, kind: input, shape index: {}]
  %s8 = inlined_call_operand.vmem [shape: f32[512,64], index: 8, kind: input, shape index: {}]
  %s9 = inlined_call_operand.vmem [shape: f32[1,64], index: 9, kind: input, shape index: {}]
  %s10 = inlined_call_operand.hbm [shape: f32[16,16], index: 10, kind: output, shape index: {0}]
  %s11 = inlined_call_operand.hbm [shape: f32[16,64], index: 11, kind: output, shape index: {1}]
  %12 = xla_tuple %s10, %s11
  %s13 = sld [smem:[#allocation0]]
  $region70: #{tpu_custom_call.1} parent=0
    _
  %s15 = ssub.s32 1, %s13
  %s16 = scalar_select 0, %s15, %s13
  $region1: #{tpu_custom_call.1} parent=0
    #allocation2 [shape = 'u8[524288]{0}', space=vmem, size = 0x80000, scoped, tag = 'input window, operand 3, single buffered']
    #allocation3 [shape = 's32[1]{0}', space=sflag, size = 0x4, scoped, tag = 'scoped memory for tpu_custom_call.1']
    #allocation4 [shape = 's32[1]{0}', space=sflag, size = 0x4, scoped, tag = 'scoped memory for tpu_custom_call.1']
    #allocation5 [shape = 'u8[524288]{0}', space=vmem, size = 0x80000, scoped, tag = 'input window, operand 5, single buffered']
    #allocation6 [shape = 's32[1]{0}', space=sflag, size = 0x4, scoped, tag = 'scoped memory for tpu_custom_call.1']
    #allocation7 [shape = 'u8[524288]{0}', space=vmem, size = 0x80000, scoped, tag = 'input window, operand 6, single buffered']
    #allocation8 [shape = 'u8[8192]{0}', space=vmem, size = 0x2000, scoped, tag = 'output window, operand 0, single buffered']
    #allocation9 [shape = 'u8[8192]{0}', space=vmem, size = 0x2000, scoped, tag = 'output window, operand 1, single buffered']
    #allocation10 [shape = 's32[1]{0}', space=sflag, size = 0x4, scoped, tag = 'scoped memory for tpu_custom_call.1']
    %17 = vsyncpa [#allocation3], 0
    %18 = vsyncpa [#allocation6], 0
    %19 = vsyncpa [#allocation4], 0
    %20 = vsyncpa [#allocation10], 0
    // Predicated region
    $region2: #{tpu_custom_call.1} parent=1 // pred_check
      _
    $region3: #{tpu_custom_call.1} parent=1 // pred_check_branch
      %22 = sbr.rel (0) target = $region5
    $region4: #{tpu_custom_call.1} parent=1 // pred_region
      _
    $region5: #{tpu_custom_call.1} parent=1 // pred_fallthru
      _
    // Predicated region
    $region6: #{tpu_custom_call.1} parent=1 // pred_check
      _
    $region7: #{tpu_custom_call.1} parent=1 // pred_check_branch
      %24 = sbr.rel (0) target = $region9
    $region8: #{tpu_custom_call.1} parent=1 // pred_region
      _
    $region9: #{tpu_custom_call.1} parent=1 // pred_fallthru
      _
    // Predicated region
    $region10: #{tpu_custom_call.1} parent=1 // pred_check
      _
    $region11: #{tpu_custom_call.1} parent=1 // pred_check_branch
      %26 = sbr.rel (0) target = $region13
    $region12: #{tpu_custom_call.1} parent=1 // pred_region
      _
    $region13: #{tpu_custom_call.1} parent=1 // pred_fallthru
      _
    // Predicated region
    $region14: #{tpu_custom_call.1} parent=1 // pred_check
      _
    $region15: #{tpu_custom_call.1} parent=1 // pred_check_branch
      %28 = sbr.rel (0) target = $region17
    $region16: #{tpu_custom_call.1} parent=1 // pred_region
      %s30 = ssub.s32 16384, 16384
      %31 = vsyncadd [#allocation3], %s30
      %s32 = sshll.u32 [#allocation2], 4
      %s33 = int_to_ptr.vmem [resolvable:$true] %s32
      %38 = dma.hbm_to_vmem [thread:$0]  %s3, 16384, %s33, [#allocation3], 256, 256, 16
    $region17: #{tpu_custom_call.1} parent=1 // pred_fallthru
      _
    // Predicated region
    $region18: #{tpu_custom_call.1} parent=1 // pred_check
      _
    $region19: #{tpu_custom_call.1} parent=1 // pred_check_branch
      %40 = sbr.rel (0) target = $region21
    $region20: #{tpu_custom_call.1} parent=1 // pred_region
      _
    $region21: #{tpu_custom_call.1} parent=1 // pred_fallthru
      _
    // Predicated region
    $region22: #{tpu_custom_call.1} parent=1 // pred_check
      _
    $region23: #{tpu_custom_call.1} parent=1 // pred_check_branch
      %42 = sbr.rel (0) target = $region25
    $region24: #{tpu_custom_call.1} parent=1 // pred_region
      %s44 = ssub.s32 16384, 16384
      %45 = vsyncadd [#allocation6], %s44
      %s46 = sshll.u32 [#allocation5], 4
      %s47 = int_to_ptr.vmem [resolvable:$true] %s46
      %52 = dma.hbm_to_vmem [thread:$0]  %s5, 16384, %s47, [#allocation6], 256, 256, 16
    $region25: #{tpu_custom_call.1} parent=1 // pred_fallthru
      _
    // Predicated region
    $region26: #{tpu_custom_call.1} parent=1 // pred_check
      _
    $region27: #{tpu_custom_call.1} parent=1 // pred_check_branch
      %54 = sbr.rel (0) target = $region29
    $region28: #{tpu_custom_call.1} parent=1 // pred_region
      %s56 = ssub.s32 16384, 16384
      %57 = vsyncadd [#allocation6], %s56
      %s58 = sshll.u32 [#allocation7], 4
      %s59 = int_to_ptr.vmem [resolvable:$true] %s58
      %64 = dma.hbm_to_vmem [thread:$0]  %s6, 16384, %s59, [#allocation6], 256, 256, 16
    $region29: #{tpu_custom_call.1} parent=1 // pred_fallthru
      _
    // Predicated region
    $region30: #{tpu_custom_call.1} parent=1 // pred_check
      _
    $region31: #{tpu_custom_call.1} parent=1 // pred_check_branch
      %66 = sbr.rel (0) target = $region33
    $region32: #{tpu_custom_call.1} parent=1 // pred_region
      _
    $region33: #{tpu_custom_call.1} parent=1 // pred_fallthru
      _
    // Predicated region
    $region34: #{tpu_custom_call.1} parent=1 // pred_check
      _
    $region35: #{tpu_custom_call.1} parent=1 // pred_check_branch
      %68 = sbr.rel (0) target = $region37
    $region36: #{tpu_custom_call.1} parent=1 // pred_region
      _
    $region37: #{tpu_custom_call.1} parent=1 // pred_fallthru
      _
    // Predicated region
    $region38: #{tpu_custom_call.1} parent=1 // pred_check
      _
    $region39: #{tpu_custom_call.1} parent=1 // pred_check_branch
      %70 = sbr.rel (0) target = $region41
    $region40: #{tpu_custom_call.1} parent=1 // pred_region
      _
    $region41: #{tpu_custom_call.1} parent=1 // pred_fallthru
      _
    // Predicated region
    $region42: #{tpu_custom_call.1} parent=1 // pred_check
      _
    $region43: #{tpu_custom_call.1} parent=1 // pred_check_branch
      %72 = sbr.rel (0) target = $region45
    $region44: #{tpu_custom_call.1} parent=1 // pred_region
      %73 = dma.done [#allocation3], 16384
    $region45: #{tpu_custom_call.1} parent=1 // pred_fallthru
      _
    // Predicated region
    $region46: #{tpu_custom_call.1} parent=1 // pred_check
      _
    $region47: #{tpu_custom_call.1} parent=1 // pred_check_branch
      %75 = sbr.rel (0) target = $region49
    $region48: #{tpu_custom_call.1} parent=1 // pred_region
      %76 = dma.done [#allocation6], 16384
    $region49: #{tpu_custom_call.1} parent=1 // pred_fallthru
      _
    // Predicated region
    $region50: #{tpu_custom_call.1} parent=1 // pred_check
      _
    $region51: #{tpu_custom_call.1} parent=1 // pred_check_branch
      %78 = sbr.rel (0) target = $region53
    $region52: #{tpu_custom_call.1} parent=1 // pred_region
      %79 = dma.done [#allocation6], 16384
    $region53: #{tpu_custom_call.1} parent=1 // pred_fallthru
      _
    %v80 = vld [vmem:[%s0] sm:$0xff]
    %v81 = vld [vmem:[%s0 + $0x8] sm:$0xff]
    %v82 = vld [vmem:[%s1] sm:$0xff]
    %v83 = vld [vmem:[%s1 + $0x8] sm:$0xff]
    %v84 = vld [vmem:[%s1 + $0x10] sm:$0xff]
    %v85 = vld [vmem:[%s1 + $0x18] sm:$0xff]
    %v86 = vld [vmem:[%s1 + $0x20] sm:$0xff]
    %v87 = vld [vmem:[%s1 + $0x28] sm:$0xff]
    %v88 = vld [vmem:[%s1 + $0x30] sm:$0xff]
    %v89 = vld [vmem:[%s1 + $0x38] sm:$0xff]
    %v90 = vld [vmem:[%s1 + $0x40] sm:$0xff]
    %v91 = vld [vmem:[%s1 + $0x48] sm:$0xff]
    %v92 = vld [vmem:[%s1 + $0x50] sm:$0xff]
    %v93 = vld [vmem:[%s1 + $0x58] sm:$0xff]
    %v94 = vld [vmem:[%s1 + $0x60] sm:$0xff]
    %v95 = vld [vmem:[%s1 + $0x68] sm:$0xff]
    %v96 = vld [vmem:[%s1 + $0x70] sm:$0xff]
    %v97 = vld [vmem:[%s1 + $0x78] sm:$0xff]
    %v98 = vld [vmem:[%s1 + $0x80] sm:$0xff]
    %v99 = vld [vmem:[%s1 + $0x88] sm:$0xff]
    %v100 = vld [vmem:[%s1 + $0x90] sm:$0xff]
    %v101 = vld [vmem:[%s1 + $0x98] sm:$0xff]
    %v102 = vld [vmem:[%s1 + $0xa0] sm:$0xff]
    %v103 = vld [vmem:[%s1 + $0xa8] sm:$0xff]
    %v104 = vld [vmem:[%s1 + $0xb0] sm:$0xff]
    %v105 = vld [vmem:[%s1 + $0xb8] sm:$0xff]
    %v106 = vld [vmem:[%s1 + $0xc0] sm:$0xff]
    %v107 = vld [vmem:[%s1 + $0xc8] sm:$0xff]
    %v108 = vld [vmem:[%s1 + $0xd0] sm:$0xff]
    %v109 = vld [vmem:[%s1 + $0xd8] sm:$0xff]
    %v110 = vld [vmem:[%s1 + $0xe0] sm:$0xff]
    %v111 = vld [vmem:[%s1 + $0xe8] sm:$0xff]
    %v112 = vld [vmem:[%s1 + $0xf0] sm:$0xff]
    %v113 = vld [vmem:[%s1 + $0xf8] sm:$0xff]
    %v114 = vld [vmem:[%s2] sm:$0xf]
    %v116 = vlaneseq
    %v117 = vshrl.u32 %v116, 7
    %v118 = vsub.s32 0, %v117
    %v119 = vrot.slane %v114, %v118
    %v120 = vlaneseq
    %v121 = vshrl.u32 %v120, 7
    %v122 = vsub.s32 1, %v121
    %v123 = vrot.slane %v114, %v122
    %v124 = vlaneseq
    %v125 = vshrl.u32 %v124, 7
    %v126 = vsub.s32 2, %v125
    %v127 = vrot.slane %v114, %v126
    %v128 = vlaneseq
    %v129 = vshrl.u32 %v128, 7
    %v130 = vsub.s32 3, %v129
    %v131 = vrot.slane %v114, %v130
    %vm136 = vcmask 523264
    %v138 = vsel %vm136, %v80, 0
    %v141 = vsel %vm136, %v81, 0
    %143 = vmatprep.subr.mxu0 0.0
    %144 = vmatpush1.msra.mxu0 0.0
    %145 = vmatprep.subr.mxu0 0.0
    %146 = vmatpush1.msra.mxu0 0.0
    %147 = vmatprep.subr.mxu0 0.0
    %148 = vmatpush1.msra.mxu0 0.0
    %149 = vmatprep.subr.mxu0 0.0
    %150 = vmatpush1.msra.mxu0 0.0
    %151 = vmatprep.subr.mxu0 0.0
    %152 = vmatpush1.msra.mxu0 0.0
    %153 = vmatprep.subr.mxu0 0.0
    %154 = vmatpush1.msra.mxu0 0.0
    %155 = vmatprep.subr.mxu0 0.0
    %156 = vmatpush1.msra.mxu0 0.0
    %157 = vmatprep.subr.mxu0 0.0
    %158 = vmatpush1.msra.mxu0 0.0
    %159 = vmatprep.subr.mxu0 %v111
    %160 = vmatpush1.msra.mxu0 %v110
    %161 = vmatprep.subr.mxu0 %v107
    %162 = vmatpush1.msra.mxu0 %v106
    %163 = vmatprep.subr.mxu0 %v103
    %164 = vmatpush1.msra.mxu0 %v102
    %165 = vmatprep.subr.mxu0 %v99
    %166 = vmatpush1.msra.mxu0 %v98
    %167 = vmatprep.subr.mxu0 %v95
    %168 = vmatpush1.msra.mxu0 %v94
    %169 = vmatprep.subr.mxu0 %v91
    %170 = vmatpush1.msra.mxu0 %v90
    %171 = vmatprep.subr.mxu0 %v87
    %172 = vmatpush1.msra.mxu0 %v86
    %173 = vmatprep.subr.mxu0 %v83
    %174 = vmatpush1.msra.mxu0 %v82
    %175 = vmatprep.subr.mxu0 0.0
    %176 = vmatpush2.msra.mxu0 0.0
    %177 = vmatprep.subr.mxu0 0.0
    %178 = vmatpush2.msra.mxu0 0.0
    %179 = vmatprep.subr.mxu0 0.0
    %180 = vmatpush2.msra.mxu0 0.0
    %181 = vmatprep.subr.mxu0 0.0
    %182 = vmatpush2.msra.mxu0 0.0
    %183 = vmatprep.subr.mxu0 0.0
    %184 = vmatpush2.msra.mxu0 0.0
    %185 = vmatprep.subr.mxu0 0.0
    %186 = vmatpush2.msra.mxu0 0.0
    %187 = vmatprep.subr.mxu0 0.0
    %188 = vmatpush2.msra.mxu0 0.0
    %189 = vmatprep.subr.mxu0 0.0
    %190 = vmatpush2.msra.mxu0 0.0
    %191 = vmatprep.subr.mxu0 0.0
    %192 = vmatpush2.msra.mxu0 0.0
    %193 = vmatprep.subr.mxu0 0.0
    %194 = vmatpush2.msra.mxu0 0.0
    %195 = vmatprep.subr.mxu0 0.0
    %196 = vmatpush2.msra.mxu0 0.0
    %197 = vmatprep.subr.mxu0 0.0
    %198 = vmatpush2.msra.mxu0 0.0
    %199 = vmatprep.subr.mxu0 0.0
    %200 = vmatpush2.msra.mxu0 0.0
    %201 = vmatprep.subr.mxu0 0.0
    %202 = vmatpush2.msra.mxu0 0.0
    %203 = vmatprep.subr.mxu0 0.0
    %204 = vmatpush2.msra.mxu0 0.0
    %205 = vmatprep.subr.mxu0 0.0
    %206 = vmatpush2.msra.mxu0 0.0
    %207 = vmatprep.mubr.f32.mxu0 0.0
    %208 = vmatmul.mubr.f32.gmra.mxu0 %v138
    %v209 = vpop.f32.mrf.mxu0
    %v210 = vadd.f32 %v119, %v209
    %v211 = vpop.f32.mrf.mxu0
    %v212 = vadd.f32 %v123, %v211
    %213 = vmatprep.mubr.f32.mxu0 0.0
    %214 = vmatmul.mubr.f32.gmra.mxu0 %v141
    %v215 = vpop.f32.mrf.mxu0
    %v216 = vadd.f32 %v119, %v215
    %v217 = vpop.f32.mrf.mxu0
    %v218 = vadd.f32 %v123, %v217
    %219 = vdwg.mxu0
    %220 = vmatprep.subr.mxu0 0.0
    %221 = vmatpush1.msra.mxu0 0.0
    %222 = vmatprep.subr.mxu0 0.0
    %223 = vmatpush1.msra.mxu0 0.0
    %224 = vmatprep.subr.mxu0 0.0
    %225 = vmatpush1.msra.mxu0 0.0
    %226 = vmatprep.subr.mxu0 0.0
    %227 = vmatpush1.msra.mxu0 0.0
    %228 = vmatprep.subr.mxu0 0.0
    %229 = vmatpush1.msra.mxu0 0.0
    %230 = vmatprep.subr.mxu0 0.0
    %231 = vmatpush1.msra.mxu0 0.0
    %232 = vmatprep.subr.mxu0 0.0
    %233 = vmatpush1.msra.mxu0 0.0
    %234 = vmatprep.subr.mxu0 0.0
    %235 = vmatpush1.msra.mxu0 0.0
    %236 = vmatprep.subr.mxu0 %v113
    %237 = vmatpush1.msra.mxu0 %v112
    %238 = vmatprep.subr.mxu0 %v109
    %239 = vmatpush1.msra.mxu0 %v108
    %240 = vmatprep.subr.mxu0 %v105
    %241 = vmatpush1.msra.mxu0 %v104
    %242 = vmatprep.subr.mxu0 %v101
    %243 = vmatpush1.msra.mxu0 %v100
    %244 = vmatprep.subr.mxu0 %v97
    %245 = vmatpush1.msra.mxu0 %v96
    %246 = vmatprep.subr.mxu0 %v93
    %247 = vmatpush1.msra.mxu0 %v92
    %248 = vmatprep.subr.mxu0 %v89
    %249 = vmatpush1.msra.mxu0 %v88
    %250 = vmatprep.subr.mxu0 %v85
    %251 = vmatpush1.msra.mxu0 %v84
    %252 = vmatprep.subr.mxu0 0.0
    %253 = vmatpush2.msra.mxu0 0.0
    %254 = vmatprep.subr.mxu0 0.0
    %255 = vmatpush2.msra.mxu0 0.0
    %256 = vmatprep.subr.mxu0 0.0
    %257 = vmatpush2.msra.mxu0 0.0
    %258 = vmatprep.subr.mxu0 0.0
    %259 = vmatpush2.msra.mxu0 0.0
    %260 = vmatprep.subr.mxu0 0.0
    %261 = vmatpush2.msra.mxu0 0.0
    %262 = vmatprep.subr.mxu0 0.0
    %263 = vmatpush2.msra.mxu0 0.0
    %264 = vmatprep.subr.mxu0 0.0
    %265 = vmatpush2.msra.mxu0 0.0
    %266 = vmatprep.subr.mxu0 0.0
    %267 = vmatpush2.msra.mxu0 0.0
    %268 = vmatprep.subr.mxu0 0.0
    %269 = vmatpush2.msra.mxu0 0.0
    %270 = vmatprep.subr.mxu0 0.0
    %271 = vmatpush2.msra.mxu0 0.0
    %272 = vmatprep.subr.mxu0 0.0
    %273 = vmatpush2.msra.mxu0 0.0
    %274 = vmatprep.subr.mxu0 0.0
    %275 = vmatpush2.msra.mxu0 0.0
    %276 = vmatprep.subr.mxu0 0.0
    %277 = vmatpush2.msra.mxu0 0.0
    %278 = vmatprep.subr.mxu0 0.0
    %279 = vmatpush2.msra.mxu0 0.0
    %280 = vmatprep.subr.mxu0 0.0
    %281 = vmatpush2.msra.mxu0 0.0
    %282 = vmatprep.subr.mxu0 0.0
    %283 = vmatpush2.msra.mxu0 0.0
    %284 = vmatprep.mubr.f32.mxu0 0.0
    %285 = vmatmul.mubr.f32.gmra.mxu0 %v138
    %v286 = vpop.f32.mrf.mxu0
    %v287 = vadd.f32 %v127, %v286
    %v288 = vpop.f32.mrf.mxu0
    %v289 = vadd.f32 %v131, %v288
    %290 = vmatprep.mubr.f32.mxu0 0.0
    %291 = vmatmul.mubr.f32.gmra.mxu0 %v141
    %v292 = vpop.f32.mrf.mxu0
    %v293 = vadd.f32 %v127, %v292
    %v294 = vpop.f32.mrf.mxu0
    %v295 = vadd.f32 %v131, %v294
    %296 = vdwg.mxu0
    %v297 = vmax.f32 %v210, 0.0
    %v298 = vmax.f32 %v212, 0.0
    %v299 = vmax.f32 %v287, 0.0
    %v300 = vmax.f32 %v289, 0.0
    %v301 = vmax.f32 %v216, 0.0
    %v302 = vmax.f32 %v218, 0.0
    %v303 = vmax.f32 %v293, 0.0
    %v304 = vmax.f32 %v295, 0.0
    %v305 = vpack.c.bf16 %v301, %v297
    %v306 = vpack.c.bf16 %v302, %v298
    %v307 = vpack.c.bf16 %v303, %v299
    %v308 = vpack.c.bf16 %v304, %v300
    %v309 = vld [vmem:[#allocation2] sm:$0xff]
    %v310 = vld [vmem:[#allocation2 + $0x8] sm:$0xff]
    %v311 = vld [vmem:[#allocation2 + $0x10] sm:$0xff]
    %v312 = vld [vmem:[#allocation2 + $0x18] sm:$0xff]
    %v313 = vld [vmem:[#allocation2 + $0x20] sm:$0xff]
    %v314 = vld [vmem:[#allocation2 + $0x28] sm:$0xff]
    %v315 = vld [vmem:[#allocation2 + $0x30] sm:$0xff]
    %v316 = vld [vmem:[#allocation2 + $0x38] sm:$0xff]
    %v317 = vld [vmem:[#allocation2 + $0x40] sm:$0xff]
    %v318 = vld [vmem:[#allocation2 + $0x48] sm:$0xff]
    %v319 = vld [vmem:[#allocation2 + $0x50] sm:$0xff]
    %v320 = vld [vmem:[#allocation2 + $0x58] sm:$0xff]
    %v321 = vld [vmem:[#allocation2 + $0x60] sm:$0xff]
    %v322 = vld [vmem:[#allocation2 + $0x68] sm:$0xff]
    %v323 = vld [vmem:[#allocation2 + $0x70] sm:$0xff]
    %v324 = vld [vmem:[#allocation2 + $0x78] sm:$0xff]
    %v325 = vld [vmem:[#allocation2 + $0x80] sm:$0xff]
    %v326 = vld [vmem:[#allocation2 + $0x88] sm:$0xff]
    %v327 = vld [vmem:[#allocation2 + $0x90] sm:$0xff]
    %v328 = vld [vmem:[#allocation2 + $0x98] sm:$0xff]
    %v329 = vld [vmem:[#allocation2 + $0xa0] sm:$0xff]
    %v330 = vld [vmem:[#allocation2 + $0xa8] sm:$0xff]
    %v331 = vld [vmem:[#allocation2 + $0xb0] sm:$0xff]
    %v332 = vld [vmem:[#allocation2 + $0xb8] sm:$0xff]
    %v333 = vld [vmem:[#allocation2 + $0xc0] sm:$0xff]
    %v334 = vld [vmem:[#allocation2 + $0xc8] sm:$0xff]
    %v335 = vld [vmem:[#allocation2 + $0xd0] sm:$0xff]
    %v336 = vld [vmem:[#allocation2 + $0xd8] sm:$0xff]
    %v337 = vld [vmem:[#allocation2 + $0xe0] sm:$0xff]
    %v338 = vld [vmem:[#allocation2 + $0xe8] sm:$0xff]
    %v339 = vld [vmem:[#allocation2 + $0xf0] sm:$0xff]
    %v340 = vld [vmem:[#allocation2 + $0xf8] sm:$0xff]
    %v341 = vld [vmem:[#allocation2 + $0x100] sm:$0xff]
    %v342 = vld [vmem:[#allocation2 + $0x108] sm:$0xff]
    %v343 = vld [vmem:[#allocation2 + $0x110] sm:$0xff]
    %v344 = vld [vmem:[#allocation2 + $0x118] sm:$0xff]
    %v345 = vld [vmem:[#allocation2 + $0x120] sm:$0xff]
    %v346 = vld [vmem:[#allocation2 + $0x128] sm:$0xff]
    %v347 = vld [vmem:[#allocation2 + $0x130] sm:$0xff]
    %v348 = vld [vmem:[#allocation2 + $0x138] sm:$0xff]
    %v349 = vld [vmem:[#allocation2 + $0x140] sm:$0xff]
    %v350 = vld [vmem:[#allocation2 + $0x148] sm:$0xff]
    %v351 = vld [vmem:[#allocation2 + $0x150] sm:$0xff]
    %v352 = vld [vmem:[#allocation2 + $0x158] sm:$0xff]
    %v353 = vld [vmem:[#allocation2 + $0x160] sm:$0xff]
    %v354 = vld [vmem:[#allocation2 + $0x168] sm:$0xff]
    %v355 = vld [vmem:[#allocation2 + $0x170] sm:$0xff]
    %v356 = vld [vmem:[#allocation2 + $0x178] sm:$0xff]
    %v357 = vld [vmem:[#allocation2 + $0x180] sm:$0xff]
    %v358 = vld [vmem:[#allocation2 + $0x188] sm:$0xff]
    %v359 = vld [vmem:[#allocation2 + $0x190] sm:$0xff]
    %v360 = vld [vmem:[#allocation2 + $0x198] sm:$0xff]
    %v361 = vld [vmem:[#allocation2 + $0x1a0] sm:$0xff]
    %v362 = vld [vmem:[#allocation2 + $0x1a8] sm:$0xff]
    %v363 = vld [vmem:[#allocation2 + $0x1b0] sm:$0xff]
    %v364 = vld [vmem:[#allocation2 + $0x1b8] sm:$0xff]
    %v365 = vld [vmem:[#allocation2 + $0x1c0] sm:$0xff]
    %v366 = vld [vmem:[#allocation2 + $0x1c8] sm:$0xff]
    %v367 = vld [vmem:[#allocation2 + $0x1d0] sm:$0xff]
    %v368 = vld [vmem:[#allocation2 + $0x1d8] sm:$0xff]
    %v369 = vld [vmem:[#allocation2 + $0x1e0] sm:$0xff]
    %v370 = vld [vmem:[#allocation2 + $0x1e8] sm:$0xff]
    %v371 = vld [vmem:[#allocation2 + $0x1f0] sm:$0xff]
    %v372 = vld [vmem:[#allocation2 + $0x1f8] sm:$0xff]
    %v373 = vld [vmem:[#allocation2 + $0x200] sm:$0xff]
    %v374 = vld [vmem:[#allocation2 + $0x208] sm:$0xff]
    %v375 = vld [vmem:[#allocation2 + $0x210] sm:$0xff]
    %v376 = vld [vmem:[#allocation2 + $0x218] sm:$0xff]
    %v377 = vld [vmem:[#allocation2 + $0x220] sm:$0xff]
    %v378 = vld [vmem:[#allocation2 + $0x228] sm:$0xff]
    %v379 = vld [vmem:[#allocation2 + $0x230] sm:$0xff]
    %v380 = vld [vmem:[#allocation2 + $0x238] sm:$0xff]
    %v381 = vld [vmem:[#allocation2 + $0x240] sm:$0xff]
    %v382 = vld [vmem:[#allocation2 + $0x248] sm:$0xff]
    %v383 = vld [vmem:[#allocation2 + $0x250] sm:$0xff]
    %v384 = vld [vmem:[#allocation2 + $0x258] sm:$0xff]
    %v385 = vld [vmem:[#allocation2 + $0x260] sm:$0xff]
    %v386 = vld [vmem:[#allocation2 + $0x268] sm:$0xff]
    %v387 = vld [vmem:[#allocation2 + $0x270] sm:$0xff]
    %v388 = vld [vmem:[#allocation2 + $0x278] sm:$0xff]
    %v389 = vld [vmem:[#allocation2 + $0x280] sm:$0xff]
    %v390 = vld [vmem:[#allocation2 + $0x288] sm:$0xff]
    %v391 = vld [vmem:[#allocation2 + $0x290] sm:$0xff]
    %v392 = vld [vmem:[#allocation2 + $0x298] sm:$0xff]
    %v393 = vld [vmem:[#allocation2 + $0x2a0] sm:$0xff]
    %v394 = vld [vmem:[#allocation2 + $0x2a8] sm:$0xff]
    %v395 = vld [vmem:[#allocation2 + $0x2b0] sm:$0xff]
    %v396 = vld [vmem:[#allocation2 + $0x2b8] sm:$0xff]
    %v397 = vld [vmem:[#allocation2 + $0x2c0] sm:$0xff]
    %v398 = vld [vmem:[#allocation2 + $0x2c8] sm:$0xff]
    %v399 = vld [vmem:[#allocation2 + $0x2d0] sm:$0xff]
    %v400 = vld [vmem:[#allocation2 + $0x2d8] sm:$0xff]
    %v401 = vld [vmem:[#allocation2 + $0x2e0] sm:$0xff]
    %v402 = vld [vmem:[#allocation2 + $0x2e8] sm:$0xff]
    %v403 = vld [vmem:[#allocation2 + $0x2f0] sm:$0xff]
    %v404 = vld [vmem:[#allocation2 + $0x2f8] sm:$0xff]
    %v405 = vld [vmem:[#allocation2 + $0x300] sm:$0xff]
    %v406 = vld [vmem:[#allocation2 + $0x308] sm:$0xff]
    %v407 = vld [vmem:[#allocation2 + $0x310] sm:$0xff]
    %v408 = vld [vmem:[#allocation2 + $0x318] sm:$0xff]
    %v409 = vld [vmem:[#allocation2 + $0x320] sm:$0xff]
    %v410 = vld [vmem:[#allocation2 + $0x328] sm:$0xff]
    %v411 = vld [vmem:[#allocation2 + $0x330] sm:$0xff]
    %v412 = vld [vmem:[#allocation2 + $0x338] sm:$0xff]
    %v413 = vld [vmem:[#allocation2 + $0x340] sm:$0xff]
    %v414 = vld [vmem:[#allocation2 + $0x348] sm:$0xff]
    %v415 = vld [vmem:[#allocation2 + $0x350] sm:$0xff]
    %v416 = vld [vmem:[#allocation2 + $0x358] sm:$0xff]
    %v417 = vld [vmem:[#allocation2 + $0x360] sm:$0xff]
    %v418 = vld [vmem:[#allocation2 + $0x368] sm:$0xff]
    %v419 = vld [vmem:[#allocation2 + $0x370] sm:$0xff]
    %v420 = vld [vmem:[#allocation2 + $0x378] sm:$0xff]
    %v421 = vld [vmem:[#allocation2 + $0x380] sm:$0xff]
    %v422 = vld [vmem:[#allocation2 + $0x388] sm:$0xff]
    %v423 = vld [vmem:[#allocation2 + $0x390] sm:$0xff]
    %v424 = vld [vmem:[#allocation2 + $0x398] sm:$0xff]
    %v425 = vld [vmem:[#allocation2 + $0x3a0] sm:$0xff]
    %v426 = vld [vmem:[#allocation2 + $0x3a8] sm:$0xff]
    %v427 = vld [vmem:[#allocation2 + $0x3b0] sm:$0xff]
    %v428 = vld [vmem:[#allocation2 + $0x3b8] sm:$0xff]
    %v429 = vld [vmem:[#allocation2 + $0x3c0] sm:$0xff]
    %v430 = vld [vmem:[#allocation2 + $0x3c8] sm:$0xff]
    %v431 = vld [vmem:[#allocation2 + $0x3d0] sm:$0xff]
    %v432 = vld [vmem:[#allocation2 + $0x3d8] sm:$0xff]
    %v433 = vld [vmem:[#allocation2 + $0x3e0] sm:$0xff]
    %v434 = vld [vmem:[#allocation2 + $0x3e8] sm:$0xff]
    %v435 = vld [vmem:[#allocation2 + $0x3f0] sm:$0xff]
    %v436 = vld [vmem:[#allocation2 + $0x3f8] sm:$0xff]
    %v437 = vld [vmem:[%s4] sm:$0xf]
    %v439 = vlaneseq
    %v440 = vshrl.u32 %v439, 7
    %v441 = vsub.s32 0, %v440
    %v442 = vrot.slane %v437, %v441
    %v443 = vlaneseq
    %v444 = vshrl.u32 %v443, 7
    %v445 = vsub.s32 1, %v444
    %v446 = vrot.slane %v437, %v445
    %v447 = vlaneseq
    %v448 = vshrl.u32 %v447, 7
    %v449 = vsub.s32 2, %v448
    %v450 = vrot.slane %v437, %v449
    %v451 = vlaneseq
    %v452 = vshrl.u32 %v451, 7
    %v453 = vsub.s32 3, %v452
    %v454 = vrot.slane %v437, %v453
    %v587 = vunpack.c.l.b16 %v309
    %v588 = vunpack.c.h.b16 %v309
    %v589 = vunpack.c.l.b16 %v310
    %v590 = vunpack.c.h.b16 %v310
    %v591 = vunpack.c.l.b16 %v311
    %v592 = vunpack.c.h.b16 %v311
    %v593 = vunpack.c.l.b16 %v312
    %v594 = vunpack.c.h.b16 %v312
    %v595 = vunpack.c.l.b16 %v313
    %v596 = vunpack.c.h.b16 %v313
    %v597 = vunpack.c.l.b16 %v314
    %v598 = vunpack.c.h.b16 %v314
    %v599 = vunpack.c.l.b16 %v315
    %v600 = vunpack.c.h.b16 %v315
    %v601 = vunpack.c.l.b16 %v316
    %v602 = vunpack.c.h.b16 %v316
    %v603 = vunpack.c.l.b16 %v317
    %v604 = vunpack.c.h.b16 %v317
    %v605 = vunpack.c.l.b16 %v318
    %v606 = vunpack.c.h.b16 %v318
    %v607 = vunpack.c.l.b16 %v319
    %v608 = vunpack.c.h.b16 %v319
    %v609 = vunpack.c.l.b16 %v320
    %v610 = vunpack.c.h.b16 %v320
    %v611 = vunpack.c.l.b16 %v321
    %v612 = vunpack.c.h.b16 %v321
    %v613 = vunpack.c.l.b16 %v322
    %v614 = vunpack.c.h.b16 %v322
    %v615 = vunpack.c.l.b16 %v323
    %v616 = vunpack.c.h.b16 %v323
    %v617 = vunpack.c.l.b16 %v324
    %v618 = vunpack.c.h.b16 %v324
    %v619 = vunpack.c.l.b16 %v325
    %v620 = vunpack.c.h.b16 %v325
    %v621 = vunpack.c.l.b16 %v326
    %v622 = vunpack.c.h.b16 %v326
    %v623 = vunpack.c.l.b16 %v327
    %v624 = vunpack.c.h.b16 %v327
    %v625 = vunpack.c.l.b16 %v328
    %v626 = vunpack.c.h.b16 %v328
    %v627 = vunpack.c.l.b16 %v329
    %v628 = vunpack.c.h.b16 %v329
    %v629 = vunpack.c.l.b16 %v330
    %v630 = vunpack.c.h.b16 %v330
    %v631 = vunpack.c.l.b16 %v331
    %v632 = vunpack.c.h.b16 %v331
    %v633 = vunpack.c.l.b16 %v332
    %v634 = vunpack.c.h.b16 %v332
    %v635 = vunpack.c.l.b16 %v333
    %v636 = vunpack.c.h.b16 %v333
    %v637 = vunpack.c.l.b16 %v334
    %v638 = vunpack.c.h.b16 %v334
    %v639 = vunpack.c.l.b16 %v335
    %v640 = vunpack.c.h.b16 %v335
    %v641 = vunpack.c.l.b16 %v336
    %v642 = vunpack.c.h.b16 %v336
    %v643 = vunpack.c.l.b16 %v337
    %v644 = vunpack.c.h.b16 %v337
    %v645 = vunpack.c.l.b16 %v338
    %v646 = vunpack.c.h.b16 %v338
    %v647 = vunpack.c.l.b16 %v339
    %v648 = vunpack.c.h.b16 %v339
    %v649 = vunpack.c.l.b16 %v340
    %v650 = vunpack.c.h.b16 %v340
    %v651 = vunpack.c.l.b16 %v341
    %v652 = vunpack.c.h.b16 %v341
    %v653 = vunpack.c.l.b16 %v342
    %v654 = vunpack.c.h.b16 %v342
    %v655 = vunpack.c.l.b16 %v343
    %v656 = vunpack.c.h.b16 %v343
    %v657 = vunpack.c.l.b16 %v344
    %v658 = vunpack.c.h.b16 %v344
    %v659 = vunpack.c.l.b16 %v345
    %v660 = vunpack.c.h.b16 %v345
    %v661 = vunpack.c.l.b16 %v346
    %v662 = vunpack.c.h.b16 %v346
    %v663 = vunpack.c.l.b16 %v347
    %v664 = vunpack.c.h.b16 %v347
    %v665 = vunpack.c.l.b16 %v348
    %v666 = vunpack.c.h.b16 %v348
    %v667 = vunpack.c.l.b16 %v349
    %v668 = vunpack.c.h.b16 %v349
    %v669 = vunpack.c.l.b16 %v350
    %v670 = vunpack.c.h.b16 %v350
    %v671 = vunpack.c.l.b16 %v351
    %v672 = vunpack.c.h.b16 %v351
    %v673 = vunpack.c.l.b16 %v352
    %v674 = vunpack.c.h.b16 %v352
    %v675 = vunpack.c.l.b16 %v353
    %v676 = vunpack.c.h.b16 %v353
    %v677 = vunpack.c.l.b16 %v354
    %v678 = vunpack.c.h.b16 %v354
    %v679 = vunpack.c.l.b16 %v355
    %v680 = vunpack.c.h.b16 %v355
    %v681 = vunpack.c.l.b16 %v356
    %v682 = vunpack.c.h.b16 %v356
    %v683 = vunpack.c.l.b16 %v357
    %v684 = vunpack.c.h.b16 %v357
    %v685 = vunpack.c.l.b16 %v358
    %v686 = vunpack.c.h.b16 %v358
    %v687 = vunpack.c.l.b16 %v359
    %v688 = vunpack.c.h.b16 %v359
    %v689 = vunpack.c.l.b16 %v360
    %v690 = vunpack.c.h.b16 %v360
    %v691 = vunpack.c.l.b16 %v361
    %v692 = vunpack.c.h.b16 %v361
    %v693 = vunpack.c.l.b16 %v362
    %v694 = vunpack.c.h.b16 %v362
    %v695 = vunpack.c.l.b16 %v363
    %v696 = vunpack.c.h.b16 %v363
    %v697 = vunpack.c.l.b16 %v364
    %v698 = vunpack.c.h.b16 %v364
    %v699 = vunpack.c.l.b16 %v365
    %v700 = vunpack.c.h.b16 %v365
    %v701 = vunpack.c.l.b16 %v366
    %v702 = vunpack.c.h.b16 %v366
    %v703 = vunpack.c.l.b16 %v367
    %v704 = vunpack.c.h.b16 %v367
    %v705 = vunpack.c.l.b16 %v368
    %v706 = vunpack.c.h.b16 %v368
    %v707 = vunpack.c.l.b16 %v369
    %v708 = vunpack.c.h.b16 %v369
    %v709 = vunpack.c.l.b16 %v370
    %v710 = vunpack.c.h.b16 %v370
    %v711 = vunpack.c.l.b16 %v371
    %v712 = vunpack.c.h.b16 %v371
    %v713 = vunpack.c.l.b16 %v372
    %v714 = vunpack.c.h.b16 %v372
    %v715 = vunpack.c.l.b16 %v373
    %v716 = vunpack.c.h.b16 %v373
    %v717 = vunpack.c.l.b16 %v374
    %v718 = vunpack.c.h.b16 %v374
    %v719 = vunpack.c.l.b16 %v375
    %v720 = vunpack.c.h.b16 %v375
    %v721 = vunpack.c.l.b16 %v376
    %v722 = vunpack.c.h.b16 %v376
    %v723 = vunpack.c.l.b16 %v377
    %v724 = vunpack.c.h.b16 %v377
    %v725 = vunpack.c.l.b16 %v378
    %v726 = vunpack.c.h.b16 %v378
    %v727 = vunpack.c.l.b16 %v379
    %v728 = vunpack.c.h.b16 %v379
    %v729 = vunpack.c.l.b16 %v380
    %v730 = vunpack.c.h.b16 %v380
    %v731 = vunpack.c.l.b16 %v381
    %v732 = vunpack.c.h.b16 %v381
    %v733 = vunpack.c.l.b16 %v382
    %v734 = vunpack.c.h.b16 %v382
    %v735 = vunpack.c.l.b16 %v383
    %v736 = vunpack.c.h.b16 %v383
    %v737 = vunpack.c.l.b16 %v384
    %v738 = vunpack.c.h.b16 %v384
    %v739 = vunpack.c.l.b16 %v385
    %v740 = vunpack.c.h.b16 %v385
    %v741 = vunpack.c.l.b16 %v386
    %v742 = vunpack.c.h.b16 %v386
    %v743 = vunpack.c.l.b16 %v387
    %v744 = vunpack.c.h.b16 %v387
    %v745 = vunpack.c.l.b16 %v388
    %v746 = vunpack.c.h.b16 %v388
    %v747 = vunpack.c.l.b16 %v389
    %v748 = vunpack.c.h.b16 %v389
    %v749 = vunpack.c.l.b16 %v390
    %v750 = vunpack.c.h.b16 %v390
    %v751 = vunpack.c.l.b16 %v391
    %v752 = vunpack.c.h.b16 %v391
    %v753 = vunpack.c.l.b16 %v392
    %v754 = vunpack.c.h.b16 %v392
    %v755 = vunpack.c.l.b16 %v393
    %v756 = vunpack.c.h.b16 %v393
    %v757 = vunpack.c.l.b16 %v394
    %v758 = vunpack.c.h.b16 %v394
    %v759 = vunpack.c.l.b16 %v395
    %v760 = vunpack.c.h.b16 %v395
    %v761 = vunpack.c.l.b16 %v396
    %v762 = vunpack.c.h.b16 %v396
    %v763 = vunpack.c.l.b16 %v397
    %v764 = vunpack.c.h.b16 %v397
    %v765 = vunpack.c.l.b16 %v398
    %v766 = vunpack.c.h.b16 %v398
    %v767 = vunpack.c.l.b16 %v399
    %v768 = vunpack.c.h.b16 %v399
    %v769 = vunpack.c.l.b16 %v400
    %v770 = vunpack.c.h.b16 %v400
    %v771 = vunpack.c.l.b16 %v401
    %v772 = vunpack.c.h.b16 %v401
    %v773 = vunpack.c.l.b16 %v402
    %v774 = vunpack.c.h.b16 %v402
    %v775 = vunpack.c.l.b16 %v403
    %v776 = vunpack.c.h.b16 %v403
    %v777 = vunpack.c.l.b16 %v404
    %v778 = vunpack.c.h.b16 %v404
    %v779 = vunpack.c.l.b16 %v405
    %v780 = vunpack.c.h.b16 %v405
    %v781 = vunpack.c.l.b16 %v406
    %v782 = vunpack.c.h.b16 %v406
    %v783 = vunpack.c.l.b16 %v407
    %v784 = vunpack.c.h.b16 %v407
    %v785 = vunpack.c.l.b16 %v408
    %v786 = vunpack.c.h.b16 %v408
    %v787 = vunpack.c.l.b16 %v409
    %v788 = vunpack.c.h.b16 %v409
    %v789 = vunpack.c.l.b16 %v410
    %v790 = vunpack.c.h.b16 %v410
    %v791 = vunpack.c.l.b16 %v411
    %v792 = vunpack.c.h.b16 %v411
    %v793 = vunpack.c.l.b16 %v412
    %v794 = vunpack.c.h.b16 %v412
    %v795 = vunpack.c.l.b16 %v413
    %v796 = vunpack.c.h.b16 %v413
    %v797 = vunpack.c.l.b16 %v414
    %v798 = vunpack.c.h.b16 %v414
    %v799 = vunpack.c.l.b16 %v415
    %v800 = vunpack.c.h.b16 %v415
    %v801 = vunpack.c.l.b16 %v416
    %v802 = vunpack.c.h.b16 %v416
    %v803 = vunpack.c.l.b16 %v417
    %v804 = vunpack.c.h.b16 %v417
    %v805 = vunpack.c.l.b16 %v418
    %v806 = vunpack.c.h.b16 %v418
    %v807 = vunpack.c.l.b16 %v419
    %v808 = vunpack.c.h.b16 %v419
    %v809 = vunpack.c.l.b16 %v420
    %v810 = vunpack.c.h.b16 %v420
    %v811 = vunpack.c.l.b16 %v421
    %v812 = vunpack.c.h.b16 %v421
    %v813 = vunpack.c.l.b16 %v422
    %v814 = vunpack.c.h.b16 %v422
    %v815 = vunpack.c.l.b16 %v423
    %v816 = vunpack.c.h.b16 %v423
    %v817 = vunpack.c.l.b16 %v424
    %v818 = vunpack.c.h.b16 %v424
    %v819 = vunpack.c.l.b16 %v425
    %v820 = vunpack.c.h.b16 %v425
    %v821 = vunpack.c.l.b16 %v426
    %v822 = vunpack.c.h.b16 %v426
    %v823 = vunpack.c.l.b16 %v427
    %v824 = vunpack.c.h.b16 %v427
    %v825 = vunpack.c.l.b16 %v428
    %v826 = vunpack.c.h.b16 %v428
    %v827 = vunpack.c.l.b16 %v429
    %v828 = vunpack.c.h.b16 %v429
    %v829 = vunpack.c.l.b16 %v430
    %v830 = vunpack.c.h.b16 %v430
    %v831 = vunpack.c.l.b16 %v431
    %v832 = vunpack.c.h.b16 %v431
    %v833 = vunpack.c.l.b16 %v432
    %v834 = vunpack.c.h.b16 %v432
    %v835 = vunpack.c.l.b16 %v433
    %v836 = vunpack.c.h.b16 %v433
    %v837 = vunpack.c.l.b16 %v434
    %v838 = vunpack.c.h.b16 %v434
    %v839 = vunpack.c.l.b16 %v435
    %v840 = vunpack.c.h.b16 %v435
    %v841 = vunpack.c.l.b16 %v436
    %v842 = vunpack.c.h.b16 %v436
    %v843 = vpack.c.b16 %v591, %v587
    %v844 = vpack.c.b16 %v592, %v588
    %v845 = vpack.c.b16 %v593, %v589
    %v846 = vpack.c.b16 %v594, %v590
    %v847 = vpack.c.b16 %v599, %v595
    %v848 = vpack.c.b16 %v600, %v596
    %v849 = vpack.c.b16 %v601, %v597
    %v850 = vpack.c.b16 %v602, %v598
    %v851 = vpack.c.b16 %v607, %v603
    %v852 = vpack.c.b16 %v608, %v604
    %v853 = vpack.c.b16 %v609, %v605
    %v854 = vpack.c.b16 %v610, %v606
    %v855 = vpack.c.b16 %v615, %v611
    %v856 = vpack.c.b16 %v616, %v612
    %v857 = vpack.c.b16 %v617, %v613
    %v858 = vpack.c.b16 %v618, %v614
    %v859 = vpack.c.b16 %v623, %v619
    %v860 = vpack.c.b16 %v624, %v620
    %v861 = vpack.c.b16 %v625, %v621
    %v862 = vpack.c.b16 %v626, %v622
    %v863 = vpack.c.b16 %v631, %v627
    %v864 = vpack.c.b16 %v632, %v628
    %v865 = vpack.c.b16 %v633, %v629
    %v866 = vpack.c.b16 %v634, %v630
    %v867 = vpack.c.b16 %v639, %v635
    %v868 = vpack.c.b16 %v640, %v636
    %v869 = vpack.c.b16 %v641, %v637
    %v870 = vpack.c.b16 %v642, %v638
    %v871 = vpack.c.b16 %v647, %v643
    %v872 = vpack.c.b16 %v648, %v644
    %v873 = vpack.c.b16 %v649, %v645
    %v874 = vpack.c.b16 %v650, %v646
    %v875 = vpack.c.b16 %v655, %v651
    %v876 = vpack.c.b16 %v656, %v652
    %v877 = vpack.c.b16 %v657, %v653
    %v878 = vpack.c.b16 %v658, %v654
    %v879 = vpack.c.b16 %v663, %v659
    %v880 = vpack.c.b16 %v664, %v660
    %v881 = vpack.c.b16 %v665, %v661
    %v882 = vpack.c.b16 %v666, %v662
    %v883 = vpack.c.b16 %v671, %v667
    %v884 = vpack.c.b16 %v672, %v668
    %v885 = vpack.c.b16 %v673, %v669
    %v886 = vpack.c.b16 %v674, %v670
    %v887 = vpack.c.b16 %v679, %v675
    %v888 = vpack.c.b16 %v680, %v676
    %v889 = vpack.c.b16 %v681, %v677
    %v890 = vpack.c.b16 %v682, %v678
    %v891 = vpack.c.b16 %v687, %v683
    %v892 = vpack.c.b16 %v688, %v684
    %v893 = vpack.c.b16 %v689, %v685
    %v894 = vpack.c.b16 %v690, %v686
    %v895 = vpack.c.b16 %v695, %v691
    %v896 = vpack.c.b16 %v696, %v692
    %v897 = vpack.c.b16 %v697, %v693
    %v898 = vpack.c.b16 %v698, %v694
    %v899 = vpack.c.b16 %v703, %v699
    %v900 = vpack.c.b16 %v704, %v700
    %v901 = vpack.c.b16 %v705, %v701
    %v902 = vpack.c.b16 %v706, %v702
    %v903 = vpack.c.b16 %v711, %v707
    %v904 = vpack.c.b16 %v712, %v708
    %v905 = vpack.c.b16 %v713, %v709
    %v906 = vpack.c.b16 %v714, %v710
    %v907 = vpack.c.b16 %v719, %v715
    %v908 = vpack.c.b16 %v720, %v716
    %v909 = vpack.c.b16 %v721, %v717
    %v910 = vpack.c.b16 %v722, %v718
    %v911 = vpack.c.b16 %v727, %v723
    %v912 = vpack.c.b16 %v728, %v724
    %v913 = vpack.c.b16 %v729, %v725
    %v914 = vpack.c.b16 %v730, %v726
    %v915 = vpack.c.b16 %v735, %v731
    %v916 = vpack.c.b16 %v736, %v732
    %v917 = vpack.c.b16 %v737, %v733
    %v918 = vpack.c.b16 %v738, %v734
    %v919 = vpack.c.b16 %v743, %v739
    %v920 = vpack.c.b16 %v744, %v740
    %v921 = vpack.c.b16 %v745, %v741
    %v922 = vpack.c.b16 %v746, %v742
    %v923 = vpack.c.b16 %v751, %v747
    %v924 = vpack.c.b16 %v752, %v748
    %v925 = vpack.c.b16 %v753, %v749
    %v926 = vpack.c.b16 %v754, %v750
    %v927 = vpack.c.b16 %v759, %v755
    %v928 = vpack.c.b16 %v760, %v756
    %v929 = vpack.c.b16 %v761, %v757
    %v930 = vpack.c.b16 %v762, %v758
    %v931 = vpack.c.b16 %v767, %v763
    %v932 = vpack.c.b16 %v768, %v764
    %v933 = vpack.c.b16 %v769, %v765
    %v934 = vpack.c.b16 %v770, %v766
    %v935 = vpack.c.b16 %v775, %v771
    %v936 = vpack.c.b16 %v776, %v772
    %v937 = vpack.c.b16 %v777, %v773
    %v938 = vpack.c.b16 %v778, %v774
    %v939 = vpack.c.b16 %v783, %v779
    %v940 = vpack.c.b16 %v784, %v780
    %v941 = vpack.c.b16 %v785, %v781
    %v942 = vpack.c.b16 %v786, %v782
    %v943 = vpack.c.b16 %v791, %v787
    %v944 = vpack.c.b16 %v792, %v788
    %v945 = vpack.c.b16 %v793, %v789
    %v946 = vpack.c.b16 %v794, %v790
    %v947 = vpack.c.b16 %v799, %v795
    %v948 = vpack.c.b16 %v800, %v796
    %v949 = vpack.c.b16 %v801, %v797
    %v950 = vpack.c.b16 %v802, %v798
    %v951 = vpack.c.b16 %v807, %v803
    %v952 = vpack.c.b16 %v808, %v804
    %v953 = vpack.c.b16 %v809, %v805
    %v954 = vpack.c.b16 %v810, %v806
    %v955 = vpack.c.b16 %v815, %v811
    %v956 = vpack.c.b16 %v816, %v812
    %v957 = vpack.c.b16 %v817, %v813
    %v958 = vpack.c.b16 %v818, %v814
    %v959 = vpack.c.b16 %v823, %v819
    %v960 = vpack.c.b16 %v824, %v820
    %v961 = vpack.c.b16 %v825, %v821
    %v962 = vpack.c.b16 %v826, %v822
    %v963 = vpack.c.b16 %v831, %v827
    %v964 = vpack.c.b16 %v832, %v828
    %v965 = vpack.c.b16 %v833, %v829
    %v966 = vpack.c.b16 %v834, %v830
    %v967 = vpack.c.b16 %v839, %v835
    %v968 = vpack.c.b16 %v840, %v836
    %v969 = vpack.c.b16 %v841, %v837
    %v970 = vpack.c.b16 %v842, %v838
    %1099 = vmatprep.subr.bf16.mxu0 %v872
    %1100 = vmatpush1.bf16.msra.mxu0 %v871
    %1101 = vmatprep.subr.bf16.mxu0 %v868
    %1102 = vmatpush1.bf16.msra.mxu0 %v867
    %1103 = vmatprep.subr.bf16.mxu0 %v864
    %1104 = vmatpush1.bf16.msra.mxu0 %v863
    %1105 = vmatprep.subr.bf16.mxu0 %v860
    %1106 = vmatpush1.bf16.msra.mxu0 %v859
    %1107 = vmatprep.subr.bf16.mxu0 %v856
    %1108 = vmatpush1.bf16.msra.mxu0 %v855
    %1109 = vmatprep.subr.bf16.mxu0 %v852
    %1110 = vmatpush1.bf16.msra.mxu0 %v851
    %1111 = vmatprep.subr.bf16.mxu0 %v848
    %1112 = vmatpush1.bf16.msra.mxu0 %v847
    %1113 = vmatprep.subr.bf16.mxu0 %v844
    %1114 = vmatpush1.bf16.msra.mxu0 %v843
    %1115 = vmatprep.subr.bf16.mxu0 %v904
    %1116 = vmatpush2.bf16.msra.mxu0 %v903
    %1117 = vmatprep.subr.bf16.mxu0 %v900
    %1118 = vmatpush2.bf16.msra.mxu0 %v899
    %1119 = vmatprep.subr.bf16.mxu0 %v896
    %1120 = vmatpush2.bf16.msra.mxu0 %v895
    %1121 = vmatprep.subr.bf16.mxu0 %v892
    %1122 = vmatpush2.bf16.msra.mxu0 %v891
    %1123 = vmatprep.subr.bf16.mxu0 %v888
    %1124 = vmatpush2.bf16.msra.mxu0 %v887
    %1125 = vmatprep.subr.bf16.mxu0 %v884
    %1126 = vmatpush2.bf16.msra.mxu0 %v883
    %1127 = vmatprep.subr.bf16.mxu0 %v880
    %1128 = vmatpush2.bf16.msra.mxu0 %v879
    %1129 = vmatprep.subr.bf16.mxu0 %v876
    %1130 = vmatpush2.bf16.msra.mxu0 %v875
    %1131 = vmatprep.mubr.bf16.mxu0 %v306
    %1132 = vmatmul.mubr.bf16.gmra.mxu0 %v305
    %v1133 = vpop.f32.mrf.mxu0
    %v1134 = vadd.f32 %v442, %v1133
    %v1135 = vpop.f32.mrf.mxu0
    %v1136 = vadd.f32 %v446, %v1135
    %v1137 = vpop.f32.mrf.mxu0
    %v1138 = vadd.f32 %v442, %v1137
    %v1139 = vpop.f32.mrf.mxu0
    %v1140 = vadd.f32 %v446, %v1139
    %1141 = vdwg.mxu0
    %1142 = vmatprep.subr.bf16.mxu0 %v936
    %1143 = vmatpush1.bf16.msra.mxu0 %v935
    %1144 = vmatprep.subr.bf16.mxu0 %v932
    %1145 = vmatpush1.bf16.msra.mxu0 %v931
    %1146 = vmatprep.subr.bf16.mxu0 %v928
    %1147 = vmatpush1.bf16.msra.mxu0 %v927
    %1148 = vmatprep.subr.bf16.mxu0 %v924
    %1149 = vmatpush1.bf16.msra.mxu0 %v923
    %1150 = vmatprep.subr.bf16.mxu0 %v920
    %1151 = vmatpush1.bf16.msra.mxu0 %v919
    %1152 = vmatprep.subr.bf16.mxu0 %v916
    %1153 = vmatpush1.bf16.msra.mxu0 %v915
    %1154 = vmatprep.subr.bf16.mxu0 %v912
    %1155 = vmatpush1.bf16.msra.mxu0 %v911
    %1156 = vmatprep.subr.bf16.mxu0 %v908
    %1157 = vmatpush1.bf16.msra.mxu0 %v907
    %1158 = vmatprep.subr.bf16.mxu0 %v968
    %1159 = vmatpush2.bf16.msra.mxu0 %v967
    %1160 = vmatprep.subr.bf16.mxu0 %v964
    %1161 = vmatpush2.bf16.msra.mxu0 %v963
    %1162 = vmatprep.subr.bf16.mxu0 %v960
    %1163 = vmatpush2.bf16.msra.mxu0 %v959
    %1164 = vmatprep.subr.bf16.mxu0 %v956
    %1165 = vmatpush2.bf16.msra.mxu0 %v955
    %1166 = vmatprep.subr.bf16.mxu0 %v952
    %1167 = vmatpush2.bf16.msra.mxu0 %v951
    %1168 = vmatprep.subr.bf16.mxu0 %v948
    %1169 = vmatpush2.bf16.msra.mxu0 %v947
    %1170 = vmatprep.subr.bf16.mxu0 %v944
    %1171 = vmatpush2.bf16.msra.mxu0 %v943
    %1172 = vmatprep.subr.bf16.mxu0 %v940
    %1173 = vmatpush2.bf16.msra.mxu0 %v939
    %1174 = vmatprep.mubr.bf16.mxu0 %v308
    %1175 = vmatmul.mubr.bf16.gmra.mxu0 %v307
    %v1176 = vpop.f32.mrf.mxu0
    %v1177 = vadd.f32 %v1134, %v1176
    %v1178 = vpop.f32.mrf.mxu0
    %v1179 = vadd.f32 %v1136, %v1178
    %v1180 = vpop.f32.mrf.mxu0
    %v1181 = vadd.f32 %v1138, %v1180
    %v1182 = vpop.f32.mrf.mxu0
    %v1183 = vadd.f32 %v1140, %v1182
    %1184 = vdwg.mxu0
    %1185 = vmatprep.subr.bf16.mxu0 %v874
    %1186 = vmatpush1.bf16.msra.mxu0 %v873
    %1187 = vmatprep.subr.bf16.mxu0 %v870
    %1188 = vmatpush1.bf16.msra.mxu0 %v869
    %1189 = vmatprep.subr.bf16.mxu0 %v866
    %1190 = vmatpush1.bf16.msra.mxu0 %v865
    %1191 = vmatprep.subr.bf16.mxu0 %v862
    %1192 = vmatpush1.bf16.msra.mxu0 %v861
    %1193 = vmatprep.subr.bf16.mxu0 %v858
    %1194 = vmatpush1.bf16.msra.mxu0 %v857
    %1195 = vmatprep.subr.bf16.mxu0 %v854
    %1196 = vmatpush1.bf16.msra.mxu0 %v853
    %1197 = vmatprep.subr.bf16.mxu0 %v850
    %1198 = vmatpush1.bf16.msra.mxu0 %v849
    %1199 = vmatprep.subr.bf16.mxu0 %v846
    %1200 = vmatpush1.bf16.msra.mxu0 %v845
    %1201 = vmatprep.subr.bf16.mxu0 %v906
    %1202 = vmatpush2.bf16.msra.mxu0 %v905
    %1203 = vmatprep.subr.bf16.mxu0 %v902
    %1204 = vmatpush2.bf16.msra.mxu0 %v901
    %1205 = vmatprep.subr.bf16.mxu0 %v898
    %1206 = vmatpush2.bf16.msra.mxu0 %v897
    %1207 = vmatprep.subr.bf16.mxu0 %v894
    %1208 = vmatpush2.bf16.msra.mxu0 %v893
    %1209 = vmatprep.subr.bf16.mxu0 %v890
    %1210 = vmatpush2.bf16.msra.mxu0 %v889
    %1211 = vmatprep.subr.bf16.mxu0 %v886
    %1212 = vmatpush2.bf16.msra.mxu0 %v885
    %1213 = vmatprep.subr.bf16.mxu0 %v882
    %1214 = vmatpush2.bf16.msra.mxu0 %v881
    %1215 = vmatprep.subr.bf16.mxu0 %v878
    %1216 = vmatpush2.bf16.msra.mxu0 %v877
    %1217 = vmatprep.mubr.bf16.mxu0 %v306
    %1218 = vmatmul.mubr.bf16.gmra.mxu0 %v305
    %v1219 = vpop.f32.mrf.mxu0
    %v1220 = vadd.f32 %v450, %v1219
    %v1221 = vpop.f32.mrf.mxu0
    %v1222 = vadd.f32 %v454, %v1221
    %v1223 = vpop.f32.mrf.mxu0
    %v1224 = vadd.f32 %v450, %v1223
    %v1225 = vpop.f32.mrf.mxu0
    %v1226 = vadd.f32 %v454, %v1225
    %1227 = vdwg.mxu0
    %1228 = vmatprep.subr.bf16.mxu0 %v938
    %1229 = vmatpush1.bf16.msra.mxu0 %v937
    %1230 = vmatprep.subr.bf16.mxu0 %v934
    %1231 = vmatpush1.bf16.msra.mxu0 %v933
    %1232 = vmatprep.subr.bf16.mxu0 %v930
    %1233 = vmatpush1.bf16.msra.mxu0 %v929
    %1234 = vmatprep.subr.bf16.mxu0 %v926
    %1235 = vmatpush1.bf16.msra.mxu0 %v925
    %1236 = vmatprep.subr.bf16.mxu0 %v922
    %1237 = vmatpush1.bf16.msra.mxu0 %v921
    %1238 = vmatprep.subr.bf16.mxu0 %v918
    %1239 = vmatpush1.bf16.msra.mxu0 %v917
    %1240 = vmatprep.subr.bf16.mxu0 %v914
    %1241 = vmatpush1.bf16.msra.mxu0 %v913
    %1242 = vmatprep.subr.bf16.mxu0 %v910
    %1243 = vmatpush1.bf16.msra.mxu0 %v909
    %1244 = vmatprep.subr.bf16.mxu0 %v970
    %1245 = vmatpush2.bf16.msra.mxu0 %v969
    %1246 = vmatprep.subr.bf16.mxu0 %v966
    %1247 = vmatpush2.bf16.msra.mxu0 %v965
    %1248 = vmatprep.subr.bf16.mxu0 %v962
    %1249 = vmatpush2.bf16.msra.mxu0 %v961
    %1250 = vmatprep.subr.bf16.mxu0 %v958
    %1251 = vmatpush2.bf16.msra.mxu0 %v957
    %1252 = vmatprep.subr.bf16.mxu0 %v954
    %1253 = vmatpush2.bf16.msra.mxu0 %v953
    %1254 = vmatprep.subr.bf16.mxu0 %v950
    %1255 = vmatpush2.bf16.msra.mxu0 %v949
    %1256 = vmatprep.subr.bf16.mxu0 %v946
    %1257 = vmatpush2.bf16.msra.mxu0 %v945
    %1258 = vmatprep.subr.bf16.mxu0 %v942
    %1259 = vmatpush2.bf16.msra.mxu0 %v941
    %1260 = vmatprep.mubr.bf16.mxu0 %v308
    %1261 = vmatmul.mubr.bf16.gmra.mxu0 %v307
    %v1262 = vpop.f32.mrf.mxu0
    %v1263 = vadd.f32 %v1220, %v1262
    %v1264 = vpop.f32.mrf.mxu0
    %v1265 = vadd.f32 %v1222, %v1264
    %v1266 = vpop.f32.mrf.mxu0
    %v1267 = vadd.f32 %v1224, %v1266
    %v1268 = vpop.f32.mrf.mxu0
    %v1269 = vadd.f32 %v1226, %v1268
    %1270 = vdwg.mxu0
    %v1271 = vmax.f32 %v1177, 0.0
    %v1272 = vmax.f32 %v1179, 0.0
    %v1273 = vmax.f32 %v1263, 0.0
    %v1274 = vmax.f32 %v1265, 0.0
    %v1275 = vmax.f32 %v1181, 0.0
    %v1276 = vmax.f32 %v1183, 0.0
    %v1277 = vmax.f32 %v1267, 0.0
    %v1278 = vmax.f32 %v1269, 0.0
    %v1279 = vpack.c.bf16 %v1275, %v1271
    %v1280 = vpack.c.bf16 %v1276, %v1272
    %v1281 = vpack.c.bf16 %v1277, %v1273
    %v1282 = vpack.c.bf16 %v1278, %v1274
    %v1283 = vld [vmem:[#allocation5] sm:$0xff]
    %v1284 = vld [vmem:[#allocation5 + $0x8] sm:$0xff]
    %v1285 = vld [vmem:[#allocation5 + $0x10] sm:$0xff]
    %v1286 = vld [vmem:[#allocation5 + $0x18] sm:$0xff]
    %v1287 = vld [vmem:[#allocation5 + $0x20] sm:$0xff]
    %v1288 = vld [vmem:[#allocation5 + $0x28] sm:$0xff]
    %v1289 = vld [vmem:[#allocation5 + $0x30] sm:$0xff]
    %v1290 = vld [vmem:[#allocation5 + $0x38] sm:$0xff]
    %v1291 = vld [vmem:[#allocation5 + $0x40] sm:$0xff]
    %v1292 = vld [vmem:[#allocation5 + $0x48] sm:$0xff]
    %v1293 = vld [vmem:[#allocation5 + $0x50] sm:$0xff]
    %v1294 = vld [vmem:[#allocation5 + $0x58] sm:$0xff]
    %v1295 = vld [vmem:[#allocation5 + $0x60] sm:$0xff]
    %v1296 = vld [vmem:[#allocation5 + $0x68] sm:$0xff]
    %v1297 = vld [vmem:[#allocation5 + $0x70] sm:$0xff]
    %v1298 = vld [vmem:[#allocation5 + $0x78] sm:$0xff]
    %v1299 = vld [vmem:[#allocation5 + $0x80] sm:$0xff]
    %v1300 = vld [vmem:[#allocation5 + $0x88] sm:$0xff]
    %v1301 = vld [vmem:[#allocation5 + $0x90] sm:$0xff]
    %v1302 = vld [vmem:[#allocation5 + $0x98] sm:$0xff]
    %v1303 = vld [vmem:[#allocation5 + $0xa0] sm:$0xff]
    %v1304 = vld [vmem:[#allocation5 + $0xa8] sm:$0xff]
    %v1305 = vld [vmem:[#allocation5 + $0xb0] sm:$0xff]
    %v1306 = vld [vmem:[#allocation5 + $0xb8] sm:$0xff]
    %v1307 = vld [vmem:[#allocation5 + $0xc0] sm:$0xff]
    %v1308 = vld [vmem:[#allocation5 + $0xc8] sm:$0xff]
    %v1309 = vld [vmem:[#allocation5 + $0xd0] sm:$0xff]
    %v1310 = vld [vmem:[#allocation5 + $0xd8] sm:$0xff]
    %v1311 = vld [vmem:[#allocation5 + $0xe0] sm:$0xff]
    %v1312 = vld [vmem:[#allocation5 + $0xe8] sm:$0xff]
    %v1313 = vld [vmem:[#allocation5 + $0xf0] sm:$0xff]
    %v1314 = vld [vmem:[#allocation5 + $0xf8] sm:$0xff]
    %v1315 = vld [vmem:[#allocation5 + $0x100] sm:$0xff]
    %v1316 = vld [vmem:[#allocation5 + $0x108] sm:$0xff]
    %v1317 = vld [vmem:[#allocation5 + $0x110] sm:$0xff]
    %v1318 = vld [vmem:[#allocation5 + $0x118] sm:$0xff]
    %v1319 = vld [vmem:[#allocation5 + $0x120] sm:$0xff]
    %v1320 = vld [vmem:[#allocation5 + $0x128] sm:$0xff]
    %v1321 = vld [vmem:[#allocation5 + $0x130] sm:$0xff]
    %v1322 = vld [vmem:[#allocation5 + $0x138] sm:$0xff]
    %v1323 = vld [vmem:[#allocation5 + $0x140] sm:$0xff]
    %v1324 = vld [vmem:[#allocation5 + $0x148] sm:$0xff]
    %v1325 = vld [vmem:[#allocation5 + $0x150] sm:$0xff]
    %v1326 = vld [vmem:[#allocation5 + $0x158] sm:$0xff]
    %v1327 = vld [vmem:[#allocation5 + $0x160] sm:$0xff]
    %v1328 = vld [vmem:[#allocation5 + $0x168] sm:$0xff]
    %v1329 = vld [vmem:[#allocation5 + $0x170] sm:$0xff]
    %v1330 = vld [vmem:[#allocation5 + $0x178] sm:$0xff]
    %v1331 = vld [vmem:[#allocation5 + $0x180] sm:$0xff]
    %v1332 = vld [vmem:[#allocation5 + $0x188] sm:$0xff]
    %v1333 = vld [vmem:[#allocation5 + $0x190] sm:$0xff]
    %v1334 = vld [vmem:[#allocation5 + $0x198] sm:$0xff]
    %v1335 = vld [vmem:[#allocation5 + $0x1a0] sm:$0xff]
    %v1336 = vld [vmem:[#allocation5 + $0x1a8] sm:$0xff]
    %v1337 = vld [vmem:[#allocation5 + $0x1b0] sm:$0xff]
    %v1338 = vld [vmem:[#allocation5 + $0x1b8] sm:$0xff]
    %v1339 = vld [vmem:[#allocation5 + $0x1c0] sm:$0xff]
    %v1340 = vld [vmem:[#allocation5 + $0x1c8] sm:$0xff]
    %v1341 = vld [vmem:[#allocation5 + $0x1d0] sm:$0xff]
    %v1342 = vld [vmem:[#allocation5 + $0x1d8] sm:$0xff]
    %v1343 = vld [vmem:[#allocation5 + $0x1e0] sm:$0xff]
    %v1344 = vld [vmem:[#allocation5 + $0x1e8] sm:$0xff]
    %v1345 = vld [vmem:[#allocation5 + $0x1f0] sm:$0xff]
    %v1346 = vld [vmem:[#allocation5 + $0x1f8] sm:$0xff]
    %v1347 = vld [vmem:[#allocation5 + $0x200] sm:$0xff]
    %v1348 = vld [vmem:[#allocation5 + $0x208] sm:$0xff]
    %v1349 = vld [vmem:[#allocation5 + $0x210] sm:$0xff]
    %v1350 = vld [vmem:[#allocation5 + $0x218] sm:$0xff]
    %v1351 = vld [vmem:[#allocation5 + $0x220] sm:$0xff]
    %v1352 = vld [vmem:[#allocation5 + $0x228] sm:$0xff]
    %v1353 = vld [vmem:[#allocation5 + $0x230] sm:$0xff]
    %v1354 = vld [vmem:[#allocation5 + $0x238] sm:$0xff]
    %v1355 = vld [vmem:[#allocation5 + $0x240] sm:$0xff]
    %v1356 = vld [vmem:[#allocation5 + $0x248] sm:$0xff]
    %v1357 = vld [vmem:[#allocation5 + $0x250] sm:$0xff]
    %v1358 = vld [vmem:[#allocation5 + $0x258] sm:$0xff]
    %v1359 = vld [vmem:[#allocation5 + $0x260] sm:$0xff]
    %v1360 = vld [vmem:[#allocation5 + $0x268] sm:$0xff]
    %v1361 = vld [vmem:[#allocation5 + $0x270] sm:$0xff]
    %v1362 = vld [vmem:[#allocation5 + $0x278] sm:$0xff]
    %v1363 = vld [vmem:[#allocation5 + $0x280] sm:$0xff]
    %v1364 = vld [vmem:[#allocation5 + $0x288] sm:$0xff]
    %v1365 = vld [vmem:[#allocation5 + $0x290] sm:$0xff]
    %v1366 = vld [vmem:[#allocation5 + $0x298] sm:$0xff]
    %v1367 = vld [vmem:[#allocation5 + $0x2a0] sm:$0xff]
    %v1368 = vld [vmem:[#allocation5 + $0x2a8] sm:$0xff]
    %v1369 = vld [vmem:[#allocation5 + $0x2b0] sm:$0xff]
    %v1370 = vld [vmem:[#allocation5 + $0x2b8] sm:$0xff]
    %v1371 = vld [vmem:[#allocation5 + $0x2c0] sm:$0xff]
    %v1372 = vld [vmem:[#allocation5 + $0x2c8] sm:$0xff]
    %v1373 = vld [vmem:[#allocation5 + $0x2d0] sm:$0xff]
    %v1374 = vld [vmem:[#allocation5 + $0x2d8] sm:$0xff]
    %v1375 = vld [vmem:[#allocation5 + $0x2e0] sm:$0xff]
    %v1376 = vld [vmem:[#allocation5 + $0x2e8] sm:$0xff]
    %v1377 = vld [vmem:[#allocation5 + $0x2f0] sm:$0xff]
    %v1378 = vld [vmem:[#allocation5 + $0x2f8] sm:$0xff]
    %v1379 = vld [vmem:[#allocation5 + $0x300] sm:$0xff]
    %v1380 = vld [vmem:[#allocation5 + $0x308] sm:$0xff]
    %v1381 = vld [vmem:[#allocation5 + $0x310] sm:$0xff]
    %v1382 = vld [vmem:[#allocation5 + $0x318] sm:$0xff]
    %v1383 = vld [vmem:[#allocation5 + $0x320] sm:$0xff]
    %v1384 = vld [vmem:[#allocation5 + $0x328] sm:$0xff]
    %v1385 = vld [vmem:[#allocation5 + $0x330] sm:$0xff]
    %v1386 = vld [vmem:[#allocation5 + $0x338] sm:$0xff]
    %v1387 = vld [vmem:[#allocation5 + $0x340] sm:$0xff]
    %v1388 = vld [vmem:[#allocation5 + $0x348] sm:$0xff]
    %v1389 = vld [vmem:[#allocation5 + $0x350] sm:$0xff]
    %v1390 = vld [vmem:[#allocation5 + $0x358] sm:$0xff]
    %v1391 = vld [vmem:[#allocation5 + $0x360] sm:$0xff]
    %v1392 = vld [vmem:[#allocation5 + $0x368] sm:$0xff]
    %v1393 = vld [vmem:[#allocation5 + $0x370] sm:$0xff]
    %v1394 = vld [vmem:[#allocation5 + $0x378] sm:$0xff]
    %v1395 = vld [vmem:[#allocation5 + $0x380] sm:$0xff]
    %v1396 = vld [vmem:[#allocation5 + $0x388] sm:$0xff]
    %v1397 = vld [vmem:[#allocation5 + $0x390] sm:$0xff]
    %v1398 = vld [vmem:[#allocation5 + $0x398] sm:$0xff]
    %v1399 = vld [vmem:[#allocation5 + $0x3a0] sm:$0xff]
    %v1400 = vld [vmem:[#allocation5 + $0x3a8] sm:$0xff]
    %v1401 = vld [vmem:[#allocation5 + $0x3b0] sm:$0xff]
    %v1402 = vld [vmem:[#allocation5 + $0x3b8] sm:$0xff]
    %v1403 = vld [vmem:[#allocation5 + $0x3c0] sm:$0xff]
    %v1404 = vld [vmem:[#allocation5 + $0x3c8] sm:$0xff]
    %v1405 = vld [vmem:[#allocation5 + $0x3d0] sm:$0xff]
    %v1406 = vld [vmem:[#allocation5 + $0x3d8] sm:$0xff]
    %v1407 = vld [vmem:[#allocation5 + $0x3e0] sm:$0xff]
    %v1408 = vld [vmem:[#allocation5 + $0x3e8] sm:$0xff]
    %v1409 = vld [vmem:[#allocation5 + $0x3f0] sm:$0xff]
    %v1410 = vld [vmem:[#allocation5 + $0x3f8] sm:$0xff]
    %v1539 = vunpack.c.l.b16 %v1283
    %v1540 = vunpack.c.h.b16 %v1283
    %v1541 = vunpack.c.l.b16 %v1284
    %v1542 = vunpack.c.h.b16 %v1284
    %v1543 = vunpack.c.l.b16 %v1285
    %v1544 = vunpack.c.h.b16 %v1285
    %v1545 = vunpack.c.l.b16 %v1286
    %v1546 = vunpack.c.h.b16 %v1286
    %v1547 = vunpack.c.l.b16 %v1287
    %v1548 = vunpack.c.h.b16 %v1287
    %v1549 = vunpack.c.l.b16 %v1288
    %v1550 = vunpack.c.h.b16 %v1288
    %v1551 = vunpack.c.l.b16 %v1289
    %v1552 = vunpack.c.h.b16 %v1289
    %v1553 = vunpack.c.l.b16 %v1290
    %v1554 = vunpack.c.h.b16 %v1290
    %v1555 = vunpack.c.l.b16 %v1291
    %v1556 = vunpack.c.h.b16 %v1291
    %v1557 = vunpack.c.l.b16 %v1292
    %v1558 = vunpack.c.h.b16 %v1292
    %v1559 = vunpack.c.l.b16 %v1293
    %v1560 = vunpack.c.h.b16 %v1293
    %v1561 = vunpack.c.l.b16 %v1294
    %v1562 = vunpack.c.h.b16 %v1294
    %v1563 = vunpack.c.l.b16 %v1295
    %v1564 = vunpack.c.h.b16 %v1295
    %v1565 = vunpack.c.l.b16 %v1296
    %v1566 = vunpack.c.h.b16 %v1296
    %v1567 = vunpack.c.l.b16 %v1297
    %v1568 = vunpack.c.h.b16 %v1297
    %v1569 = vunpack.c.l.b16 %v1298
    %v1570 = vunpack.c.h.b16 %v1298
    %v1571 = vunpack.c.l.b16 %v1299
    %v1572 = vunpack.c.h.b16 %v1299
    %v1573 = vunpack.c.l.b16 %v1300
    %v1574 = vunpack.c.h.b16 %v1300
    %v1575 = vunpack.c.l.b16 %v1301
    %v1576 = vunpack.c.h.b16 %v1301
    %v1577 = vunpack.c.l.b16 %v1302
    %v1578 = vunpack.c.h.b16 %v1302
    %v1579 = vunpack.c.l.b16 %v1303
    %v1580 = vunpack.c.h.b16 %v1303
    %v1581 = vunpack.c.l.b16 %v1304
    %v1582 = vunpack.c.h.b16 %v1304
    %v1583 = vunpack.c.l.b16 %v1305
    %v1584 = vunpack.c.h.b16 %v1305
    %v1585 = vunpack.c.l.b16 %v1306
    %v1586 = vunpack.c.h.b16 %v1306
    %v1587 = vunpack.c.l.b16 %v1307
    %v1588 = vunpack.c.h.b16 %v1307
    %v1589 = vunpack.c.l.b16 %v1308
    %v1590 = vunpack.c.h.b16 %v1308
    %v1591 = vunpack.c.l.b16 %v1309
    %v1592 = vunpack.c.h.b16 %v1309
    %v1593 = vunpack.c.l.b16 %v1310
    %v1594 = vunpack.c.h.b16 %v1310
    %v1595 = vunpack.c.l.b16 %v1311
    %v1596 = vunpack.c.h.b16 %v1311
    %v1597 = vunpack.c.l.b16 %v1312
    %v1598 = vunpack.c.h.b16 %v1312
    %v1599 = vunpack.c.l.b16 %v1313
    %v1600 = vunpack.c.h.b16 %v1313
    %v1601 = vunpack.c.l.b16 %v1314
    %v1602 = vunpack.c.h.b16 %v1314
    %v1603 = vunpack.c.l.b16 %v1315
    %v1604 = vunpack.c.h.b16 %v1315
    %v1605 = vunpack.c.l.b16 %v1316
    %v1606 = vunpack.c.h.b16 %v1316
    %v1607 = vunpack.c.l.b16 %v1317
    %v1608 = vunpack.c.h.b16 %v1317
    %v1609 = vunpack.c.l.b16 %v1318
    %v1610 = vunpack.c.h.b16 %v1318
    %v1611 = vunpack.c.l.b16 %v1319
    %v1612 = vunpack.c.h.b16 %v1319
    %v1613 = vunpack.c.l.b16 %v1320
    %v1614 = vunpack.c.h.b16 %v1320
    %v1615 = vunpack.c.l.b16 %v1321
    %v1616 = vunpack.c.h.b16 %v1321
    %v1617 = vunpack.c.l.b16 %v1322
    %v1618 = vunpack.c.h.b16 %v1322
    %v1619 = vunpack.c.l.b16 %v1323
    %v1620 = vunpack.c.h.b16 %v1323
    %v1621 = vunpack.c.l.b16 %v1324
    %v1622 = vunpack.c.h.b16 %v1324
    %v1623 = vunpack.c.l.b16 %v1325
    %v1624 = vunpack.c.h.b16 %v1325
    %v1625 = vunpack.c.l.b16 %v1326
    %v1626 = vunpack.c.h.b16 %v1326
    %v1627 = vunpack.c.l.b16 %v1327
    %v1628 = vunpack.c.h.b16 %v1327
    %v1629 = vunpack.c.l.b16 %v1328
    %v1630 = vunpack.c.h.b16 %v1328
    %v1631 = vunpack.c.l.b16 %v1329
    %v1632 = vunpack.c.h.b16 %v1329
    %v1633 = vunpack.c.l.b16 %v1330
    %v1634 = vunpack.c.h.b16 %v1330
    %v1635 = vunpack.c.l.b16 %v1331
    %v1636 = vunpack.c.h.b16 %v1331
    %v1637 = vunpack.c.l.b16 %v1332
    %v1638 = vunpack.c.h.b16 %v1332
    %v1639 = vunpack.c.l.b16 %v1333
    %v1640 = vunpack.c.h.b16 %v1333
    %v1641 = vunpack.c.l.b16 %v1334
    %v1642 = vunpack.c.h.b16 %v1334
    %v1643 = vunpack.c.l.b16 %v1335
    %v1644 = vunpack.c.h.b16 %v1335
    %v1645 = vunpack.c.l.b16 %v1336
    %v1646 = vunpack.c.h.b16 %v1336
    %v1647 = vunpack.c.l.b16 %v1337
    %v1648 = vunpack.c.h.b16 %v1337
    %v1649 = vunpack.c.l.b16 %v1338
    %v1650 = vunpack.c.h.b16 %v1338
    %v1651 = vunpack.c.l.b16 %v1339
    %v1652 = vunpack.c.h.b16 %v1339
    %v1653 = vunpack.c.l.b16 %v1340
    %v1654 = vunpack.c.h.b16 %v1340
    %v1655 = vunpack.c.l.b16 %v1341
    %v1656 = vunpack.c.h.b16 %v1341
    %v1657 = vunpack.c.l.b16 %v1342
    %v1658 = vunpack.c.h.b16 %v1342
    %v1659 = vunpack.c.l.b16 %v1343
    %v1660 = vunpack.c.h.b16 %v1343
    %v1661 = vunpack.c.l.b16 %v1344
    %v1662 = vunpack.c.h.b16 %v1344
    %v1663 = vunpack.c.l.b16 %v1345
    %v1664 = vunpack.c.h.b16 %v1345
    %v1665 = vunpack.c.l.b16 %v1346
    %v1666 = vunpack.c.h.b16 %v1346
    %v1667 = vunpack.c.l.b16 %v1347
    %v1668 = vunpack.c.h.b16 %v1347
    %v1669 = vunpack.c.l.b16 %v1348
    %v1670 = vunpack.c.h.b16 %v1348
    %v1671 = vunpack.c.l.b16 %v1349
    %v1672 = vunpack.c.h.b16 %v1349
    %v1673 = vunpack.c.l.b16 %v1350
    %v1674 = vunpack.c.h.b16 %v1350
    %v1675 = vunpack.c.l.b16 %v1351
    %v1676 = vunpack.c.h.b16 %v1351
    %v1677 = vunpack.c.l.b16 %v1352
    %v1678 = vunpack.c.h.b16 %v1352
    %v1679 = vunpack.c.l.b16 %v1353
    %v1680 = vunpack.c.h.b16 %v1353
    %v1681 = vunpack.c.l.b16 %v1354
    %v1682 = vunpack.c.h.b16 %v1354
    %v1683 = vunpack.c.l.b16 %v1355
    %v1684 = vunpack.c.h.b16 %v1355
    %v1685 = vunpack.c.l.b16 %v1356
    %v1686 = vunpack.c.h.b16 %v1356
    %v1687 = vunpack.c.l.b16 %v1357
    %v1688 = vunpack.c.h.b16 %v1357
    %v1689 = vunpack.c.l.b16 %v1358
    %v1690 = vunpack.c.h.b16 %v1358
    %v1691 = vunpack.c.l.b16 %v1359
    %v1692 = vunpack.c.h.b16 %v1359
    %v1693 = vunpack.c.l.b16 %v1360
    %v1694 = vunpack.c.h.b16 %v1360
    %v1695 = vunpack.c.l.b16 %v1361
    %v1696 = vunpack.c.h.b16 %v1361
    %v1697 = vunpack.c.l.b16 %v1362
    %v1698 = vunpack.c.h.b16 %v1362
    %v1699 = vunpack.c.l.b16 %v1363
    %v1700 = vunpack.c.h.b16 %v1363
    %v1701 = vunpack.c.l.b16 %v1364
    %v1702 = vunpack.c.h.b16 %v1364
    %v1703 = vunpack.c.l.b16 %v1365
    %v1704 = vunpack.c.h.b16 %v1365
    %v1705 = vunpack.c.l.b16 %v1366
    %v1706 = vunpack.c.h.b16 %v1366
    %v1707 = vunpack.c.l.b16 %v1367
    %v1708 = vunpack.c.h.b16 %v1367
    %v1709 = vunpack.c.l.b16 %v1368
    %v1710 = vunpack.c.h.b16 %v1368
    %v1711 = vunpack.c.l.b16 %v1369
    %v1712 = vunpack.c.h.b16 %v1369
    %v1713 = vunpack.c.l.b16 %v1370
    %v1714 = vunpack.c.h.b16 %v1370
    %v1715 = vunpack.c.l.b16 %v1371
    %v1716 = vunpack.c.h.b16 %v1371
    %v1717 = vunpack.c.l.b16 %v1372
    %v1718 = vunpack.c.h.b16 %v1372
    %v1719 = vunpack.c.l.b16 %v1373
    %v1720 = vunpack.c.h.b16 %v1373
    %v1721 = vunpack.c.l.b16 %v1374
    %v1722 = vunpack.c.h.b16 %v1374
    %v1723 = vunpack.c.l.b16 %v1375
    %v1724 = vunpack.c.h.b16 %v1375
    %v1725 = vunpack.c.l.b16 %v1376
    %v1726 = vunpack.c.h.b16 %v1376
    %v1727 = vunpack.c.l.b16 %v1377
    %v1728 = vunpack.c.h.b16 %v1377
    %v1729 = vunpack.c.l.b16 %v1378
    %v1730 = vunpack.c.h.b16 %v1378
    %v1731 = vunpack.c.l.b16 %v1379
    %v1732 = vunpack.c.h.b16 %v1379
    %v1733 = vunpack.c.l.b16 %v1380
    %v1734 = vunpack.c.h.b16 %v1380
    %v1735 = vunpack.c.l.b16 %v1381
    %v1736 = vunpack.c.h.b16 %v1381
    %v1737 = vunpack.c.l.b16 %v1382
    %v1738 = vunpack.c.h.b16 %v1382
    %v1739 = vunpack.c.l.b16 %v1383
    %v1740 = vunpack.c.h.b16 %v1383
    %v1741 = vunpack.c.l.b16 %v1384
    %v1742 = vunpack.c.h.b16 %v1384
    %v1743 = vunpack.c.l.b16 %v1385
    %v1744 = vunpack.c.h.b16 %v1385
    %v1745 = vunpack.c.l.b16 %v1386
    %v1746 = vunpack.c.h.b16 %v1386
    %v1747 = vunpack.c.l.b16 %v1387
    %v1748 = vunpack.c.h.b16 %v1387
    %v1749 = vunpack.c.l.b16 %v1388
    %v1750 = vunpack.c.h.b16 %v1388
    %v1751 = vunpack.c.l.b16 %v1389
    %v1752 = vunpack.c.h.b16 %v1389
    %v1753 = vunpack.c.l.b16 %v1390
    %v1754 = vunpack.c.h.b16 %v1390
    %v1755 = vunpack.c.l.b16 %v1391
    %v1756 = vunpack.c.h.b16 %v1391
    %v1757 = vunpack.c.l.b16 %v1392
    %v1758 = vunpack.c.h.b16 %v1392
    %v1759 = vunpack.c.l.b16 %v1393
    %v1760 = vunpack.c.h.b16 %v1393
    %v1761 = vunpack.c.l.b16 %v1394
    %v1762 = vunpack.c.h.b16 %v1394
    %v1763 = vunpack.c.l.b16 %v1395
    %v1764 = vunpack.c.h.b16 %v1395
    %v1765 = vunpack.c.l.b16 %v1396
    %v1766 = vunpack.c.h.b16 %v1396
    %v1767 = vunpack.c.l.b16 %v1397
    %v1768 = vunpack.c.h.b16 %v1397
    %v1769 = vunpack.c.l.b16 %v1398
    %v1770 = vunpack.c.h.b16 %v1398
    %v1771 = vunpack.c.l.b16 %v1399
    %v1772 = vunpack.c.h.b16 %v1399
    %v1773 = vunpack.c.l.b16 %v1400
    %v1774 = vunpack.c.h.b16 %v1400
    %v1775 = vunpack.c.l.b16 %v1401
    %v1776 = vunpack.c.h.b16 %v1401
    %v1777 = vunpack.c.l.b16 %v1402
    %v1778 = vunpack.c.h.b16 %v1402
    %v1779 = vunpack.c.l.b16 %v1403
    %v1780 = vunpack.c.h.b16 %v1403
    %v1781 = vunpack.c.l.b16 %v1404
    %v1782 = vunpack.c.h.b16 %v1404
    %v1783 = vunpack.c.l.b16 %v1405
    %v1784 = vunpack.c.h.b16 %v1405
    %v1785 = vunpack.c.l.b16 %v1406
    %v1786 = vunpack.c.h.b16 %v1406
    %v1787 = vunpack.c.l.b16 %v1407
    %v1788 = vunpack.c.h.b16 %v1407
    %v1789 = vunpack.c.l.b16 %v1408
    %v1790 = vunpack.c.h.b16 %v1408
    %v1791 = vunpack.c.l.b16 %v1409
    %v1792 = vunpack.c.h.b16 %v1409
    %v1793 = vunpack.c.l.b16 %v1410
    %v1794 = vunpack.c.h.b16 %v1410
    %v1795 = vpack.c.b16 %v1543, %v1539
    %v1796 = vpack.c.b16 %v1544, %v1540
    %v1797 = vpack.c.b16 %v1545, %v1541
    %v1798 = vpack.c.b16 %v1546, %v1542
    %v1799 = vpack.c.b16 %v1551, %v1547
    %v1800 = vpack.c.b16 %v1552, %v1548
    %v1801 = vpack.c.b16 %v1553, %v1549
    %v1802 = vpack.c.b16 %v1554, %v1550
    %v1803 = vpack.c.b16 %v1559, %v1555
    %v1804 = vpack.c.b16 %v1560, %v1556
    %v1805 = vpack.c.b16 %v1561, %v1557
    %v1806 = vpack.c.b16 %v1562, %v1558
    %v1807 = vpack.c.b16 %v1567, %v1563
    %v1808 = vpack.c.b16 %v1568, %v1564
    %v1809 = vpack.c.b16 %v1569, %v1565
    %v1810 = vpack.c.b16 %v1570, %v1566
    %v1811 = vpack.c.b16 %v1575, %v1571
    %v1812 = vpack.c.b16 %v1576, %v1572
    %v1813 = vpack.c.b16 %v1577, %v1573
    %v1814 = vpack.c.b16 %v1578, %v1574
    %v1815 = vpack.c.b16 %v1583, %v1579
    %v1816 = vpack.c.b16 %v1584, %v1580
    %v1817 = vpack.c.b16 %v1585, %v1581
    %v1818 = vpack.c.b16 %v1586, %v1582
    %v1819 = vpack.c.b16 %v1591, %v1587
    %v1820 = vpack.c.b16 %v1592, %v1588
    %v1821 = vpack.c.b16 %v1593, %v1589
    %v1822 = vpack.c.b16 %v1594, %v1590
    %v1823 = vpack.c.b16 %v1599, %v1595
    %v1824 = vpack.c.b16 %v1600, %v1596
    %v1825 = vpack.c.b16 %v1601, %v1597
    %v1826 = vpack.c.b16 %v1602, %v1598
    %v1827 = vpack.c.b16 %v1607, %v1603
    %v1828 = vpack.c.b16 %v1608, %v1604
    %v1829 = vpack.c.b16 %v1609, %v1605
    %v1830 = vpack.c.b16 %v1610, %v1606
    %v1831 = vpack.c.b16 %v1615, %v1611
    %v1832 = vpack.c.b16 %v1616, %v1612
    %v1833 = vpack.c.b16 %v1617, %v1613
    %v1834 = vpack.c.b16 %v1618, %v1614
    %v1835 = vpack.c.b16 %v1623, %v1619
    %v1836 = vpack.c.b16 %v1624, %v1620
    %v1837 = vpack.c.b16 %v1625, %v1621
    %v1838 = vpack.c.b16 %v1626, %v1622
    %v1839 = vpack.c.b16 %v1631, %v1627
    %v1840 = vpack.c.b16 %v1632, %v1628
    %v1841 = vpack.c.b16 %v1633, %v1629
    %v1842 = vpack.c.b16 %v1634, %v1630
    %v1843 = vpack.c.b16 %v1639, %v1635
    %v1844 = vpack.c.b16 %v1640, %v1636
    %v1845 = vpack.c.b16 %v1641, %v1637
    %v1846 = vpack.c.b16 %v1642, %v1638
    %v1847 = vpack.c.b16 %v1647, %v1643
    %v1848 = vpack.c.b16 %v1648, %v1644
    %v1849 = vpack.c.b16 %v1649, %v1645
    %v1850 = vpack.c.b16 %v1650, %v1646
    %v1851 = vpack.c.b16 %v1655, %v1651
    %v1852 = vpack.c.b16 %v1656, %v1652
    %v1853 = vpack.c.b16 %v1657, %v1653
    %v1854 = vpack.c.b16 %v1658, %v1654
    %v1855 = vpack.c.b16 %v1663, %v1659
    %v1856 = vpack.c.b16 %v1664, %v1660
    %v1857 = vpack.c.b16 %v1665, %v1661
    %v1858 = vpack.c.b16 %v1666, %v1662
    %v1859 = vpack.c.b16 %v1671, %v1667
    %v1860 = vpack.c.b16 %v1672, %v1668
    %v1861 = vpack.c.b16 %v1673, %v1669
    %v1862 = vpack.c.b16 %v1674, %v1670
    %v1863 = vpack.c.b16 %v1679, %v1675
    %v1864 = vpack.c.b16 %v1680, %v1676
    %v1865 = vpack.c.b16 %v1681, %v1677
    %v1866 = vpack.c.b16 %v1682, %v1678
    %v1867 = vpack.c.b16 %v1687, %v1683
    %v1868 = vpack.c.b16 %v1688, %v1684
    %v1869 = vpack.c.b16 %v1689, %v1685
    %v1870 = vpack.c.b16 %v1690, %v1686
    %v1871 = vpack.c.b16 %v1695, %v1691
    %v1872 = vpack.c.b16 %v1696, %v1692
    %v1873 = vpack.c.b16 %v1697, %v1693
    %v1874 = vpack.c.b16 %v1698, %v1694
    %v1875 = vpack.c.b16 %v1703, %v1699
    %v1876 = vpack.c.b16 %v1704, %v1700
    %v1877 = vpack.c.b16 %v1705, %v1701
    %v1878 = vpack.c.b16 %v1706, %v1702
    %v1879 = vpack.c.b16 %v1711, %v1707
    %v1880 = vpack.c.b16 %v1712, %v1708
    %v1881 = vpack.c.b16 %v1713, %v1709
    %v1882 = vpack.c.b16 %v1714, %v1710
    %v1883 = vpack.c.b16 %v1719, %v1715
    %v1884 = vpack.c.b16 %v1720, %v1716
    %v1885 = vpack.c.b16 %v1721, %v1717
    %v1886 = vpack.c.b16 %v1722, %v1718
    %v1887 = vpack.c.b16 %v1727, %v1723
    %v1888 = vpack.c.b16 %v1728, %v1724
    %v1889 = vpack.c.b16 %v1729, %v1725
    %v1890 = vpack.c.b16 %v1730, %v1726
    %v1891 = vpack.c.b16 %v1735, %v1731
    %v1892 = vpack.c.b16 %v1736, %v1732
    %v1893 = vpack.c.b16 %v1737, %v1733
    %v1894 = vpack.c.b16 %v1738, %v1734
    %v1895 = vpack.c.b16 %v1743, %v1739
    %v1896 = vpack.c.b16 %v1744, %v1740
    %v1897 = vpack.c.b16 %v1745, %v1741
    %v1898 = vpack.c.b16 %v1746, %v1742
    %v1899 = vpack.c.b16 %v1751, %v1747
    %v1900 = vpack.c.b16 %v1752, %v1748
    %v1901 = vpack.c.b16 %v1753, %v1749
    %v1902 = vpack.c.b16 %v1754, %v1750
    %v1903 = vpack.c.b16 %v1759, %v1755
    %v1904 = vpack.c.b16 %v1760, %v1756
    %v1905 = vpack.c.b16 %v1761, %v1757
    %v1906 = vpack.c.b16 %v1762, %v1758
    %v1907 = vpack.c.b16 %v1767, %v1763
    %v1908 = vpack.c.b16 %v1768, %v1764
    %v1909 = vpack.c.b16 %v1769, %v1765
    %v1910 = vpack.c.b16 %v1770, %v1766
    %v1911 = vpack.c.b16 %v1775, %v1771
    %v1912 = vpack.c.b16 %v1776, %v1772
    %v1913 = vpack.c.b16 %v1777, %v1773
    %v1914 = vpack.c.b16 %v1778, %v1774
    %v1915 = vpack.c.b16 %v1783, %v1779
    %v1916 = vpack.c.b16 %v1784, %v1780
    %v1917 = vpack.c.b16 %v1785, %v1781
    %v1918 = vpack.c.b16 %v1786, %v1782
    %v1919 = vpack.c.b16 %v1791, %v1787
    %v1920 = vpack.c.b16 %v1792, %v1788
    %v1921 = vpack.c.b16 %v1793, %v1789
    %v1922 = vpack.c.b16 %v1794, %v1790
    %2051 = vmatprep.subr.bf16.mxu0 %v1824
    %2052 = vmatpush1.bf16.msra.mxu0 %v1823
    %2053 = vmatprep.subr.bf16.mxu0 %v1820
    %2054 = vmatpush1.bf16.msra.mxu0 %v1819
    %2055 = vmatprep.subr.bf16.mxu0 %v1816
    %2056 = vmatpush1.bf16.msra.mxu0 %v1815
    %2057 = vmatprep.subr.bf16.mxu0 %v1812
    %2058 = vmatpush1.bf16.msra.mxu0 %v1811
    %2059 = vmatprep.subr.bf16.mxu0 %v1808
    %2060 = vmatpush1.bf16.msra.mxu0 %v1807
    %2061 = vmatprep.subr.bf16.mxu0 %v1804
    %2062 = vmatpush1.bf16.msra.mxu0 %v1803
    %2063 = vmatprep.subr.bf16.mxu0 %v1800
    %2064 = vmatpush1.bf16.msra.mxu0 %v1799
    %2065 = vmatprep.subr.bf16.mxu0 %v1796
    %2066 = vmatpush1.bf16.msra.mxu0 %v1795
    %2067 = vmatprep.subr.bf16.mxu0 %v1856
    %2068 = vmatpush2.bf16.msra.mxu0 %v1855
    %2069 = vmatprep.subr.bf16.mxu0 %v1852
    %2070 = vmatpush2.bf16.msra.mxu0 %v1851
    %2071 = vmatprep.subr.bf16.mxu0 %v1848
    %2072 = vmatpush2.bf16.msra.mxu0 %v1847
    %2073 = vmatprep.subr.bf16.mxu0 %v1844
    %2074 = vmatpush2.bf16.msra.mxu0 %v1843
    %2075 = vmatprep.subr.bf16.mxu0 %v1840
    %2076 = vmatpush2.bf16.msra.mxu0 %v1839
    %2077 = vmatprep.subr.bf16.mxu0 %v1836
    %2078 = vmatpush2.bf16.msra.mxu0 %v1835
    %2079 = vmatprep.subr.bf16.mxu0 %v1832
    %2080 = vmatpush2.bf16.msra.mxu0 %v1831
    %2081 = vmatprep.subr.bf16.mxu0 %v1828
    %2082 = vmatpush2.bf16.msra.mxu0 %v1827
    %2083 = vmatprep.mubr.bf16.mxu0 %v1280
    %2084 = vmatmul.mubr.bf16.gmra.mxu0 %v1279
    %v2085 = vpop.f32.mrf.mxu0
    %v2086 = vadd.f32 0.0, %v2085
    %v2087 = vpop.f32.mrf.mxu0
    %v2088 = vadd.f32 0.0, %v2087
    %v2089 = vpop.f32.mrf.mxu0
    %v2090 = vadd.f32 0.0, %v2089
    %v2091 = vpop.f32.mrf.mxu0
    %v2092 = vadd.f32 0.0, %v2091
    %2093 = vdwg.mxu0
    %2094 = vmatprep.subr.bf16.mxu0 %v1888
    %2095 = vmatpush1.bf16.msra.mxu0 %v1887
    %2096 = vmatprep.subr.bf16.mxu0 %v1884
    %2097 = vmatpush1.bf16.msra.mxu0 %v1883
    %2098 = vmatprep.subr.bf16.mxu0 %v1880
    %2099 = vmatpush1.bf16.msra.mxu0 %v1879
    %2100 = vmatprep.subr.bf16.mxu0 %v1876
    %2101 = vmatpush1.bf16.msra.mxu0 %v1875
    %2102 = vmatprep.subr.bf16.mxu0 %v1872
    %2103 = vmatpush1.bf16.msra.mxu0 %v1871
    %2104 = vmatprep.subr.bf16.mxu0 %v1868
    %2105 = vmatpush1.bf16.msra.mxu0 %v1867
    %2106 = vmatprep.subr.bf16.mxu0 %v1864
    %2107 = vmatpush1.bf16.msra.mxu0 %v1863
    %2108 = vmatprep.subr.bf16.mxu0 %v1860
    %2109 = vmatpush1.bf16.msra.mxu0 %v1859
    %2110 = vmatprep.subr.bf16.mxu0 %v1920
    %2111 = vmatpush2.bf16.msra.mxu0 %v1919
    %2112 = vmatprep.subr.bf16.mxu0 %v1916
    %2113 = vmatpush2.bf16.msra.mxu0 %v1915
    %2114 = vmatprep.subr.bf16.mxu0 %v1912
    %2115 = vmatpush2.bf16.msra.mxu0 %v1911
    %2116 = vmatprep.subr.bf16.mxu0 %v1908
    %2117 = vmatpush2.bf16.msra.mxu0 %v1907
    %2118 = vmatprep.subr.bf16.mxu0 %v1904
    %2119 = vmatpush2.bf16.msra.mxu0 %v1903
    %2120 = vmatprep.subr.bf16.mxu0 %v1900
    %2121 = vmatpush2.bf16.msra.mxu0 %v1899
    %2122 = vmatprep.subr.bf16.mxu0 %v1896
    %2123 = vmatpush2.bf16.msra.mxu0 %v1895
    %2124 = vmatprep.subr.bf16.mxu0 %v1892
    %2125 = vmatpush2.bf16.msra.mxu0 %v1891
    %2126 = vmatprep.mubr.bf16.mxu0 %v1282
    %2127 = vmatmul.mubr.bf16.gmra.mxu0 %v1281
    %v2128 = vpop.f32.mrf.mxu0
    %v2129 = vadd.f32 %v2086, %v2128
    %v2130 = vpop.f32.mrf.mxu0
    %v2131 = vadd.f32 %v2088, %v2130
    %v2132 = vpop.f32.mrf.mxu0
    %v2133 = vadd.f32 %v2090, %v2132
    %v2134 = vpop.f32.mrf.mxu0
    %v2135 = vadd.f32 %v2092, %v2134
    %2136 = vdwg.mxu0
    %2137 = vmatprep.subr.bf16.mxu0 %v1826
    %2138 = vmatpush1.bf16.msra.mxu0 %v1825
    %2139 = vmatprep.subr.bf16.mxu0 %v1822
    %2140 = vmatpush1.bf16.msra.mxu0 %v1821
    %2141 = vmatprep.subr.bf16.mxu0 %v1818
    %2142 = vmatpush1.bf16.msra.mxu0 %v1817
    %2143 = vmatprep.subr.bf16.mxu0 %v1814
    %2144 = vmatpush1.bf16.msra.mxu0 %v1813
    %2145 = vmatprep.subr.bf16.mxu0 %v1810
    %2146 = vmatpush1.bf16.msra.mxu0 %v1809
    %2147 = vmatprep.subr.bf16.mxu0 %v1806
    %2148 = vmatpush1.bf16.msra.mxu0 %v1805
    %2149 = vmatprep.subr.bf16.mxu0 %v1802
    %2150 = vmatpush1.bf16.msra.mxu0 %v1801
    %2151 = vmatprep.subr.bf16.mxu0 %v1798
    %2152 = vmatpush1.bf16.msra.mxu0 %v1797
    %2153 = vmatprep.subr.bf16.mxu0 %v1858
    %2154 = vmatpush2.bf16.msra.mxu0 %v1857
    %2155 = vmatprep.subr.bf16.mxu0 %v1854
    %2156 = vmatpush2.bf16.msra.mxu0 %v1853
    %2157 = vmatprep.subr.bf16.mxu0 %v1850
    %2158 = vmatpush2.bf16.msra.mxu0 %v1849
    %2159 = vmatprep.subr.bf16.mxu0 %v1846
    %2160 = vmatpush2.bf16.msra.mxu0 %v1845
    %2161 = vmatprep.subr.bf16.mxu0 %v1842
    %2162 = vmatpush2.bf16.msra.mxu0 %v1841
    %2163 = vmatprep.subr.bf16.mxu0 %v1838
    %2164 = vmatpush2.bf16.msra.mxu0 %v1837
    %2165 = vmatprep.subr.bf16.mxu0 %v1834
    %2166 = vmatpush2.bf16.msra.mxu0 %v1833
    %2167 = vmatprep.subr.bf16.mxu0 %v1830
    %2168 = vmatpush2.bf16.msra.mxu0 %v1829
    %2169 = vmatprep.mubr.bf16.mxu0 %v1280
    %2170 = vmatmul.mubr.bf16.gmra.mxu0 %v1279
    %v2171 = vpop.f32.mrf.mxu0
    %v2172 = vadd.f32 0.0, %v2171
    %v2173 = vpop.f32.mrf.mxu0
    %v2174 = vadd.f32 0.0, %v2173
    %v2175 = vpop.f32.mrf.mxu0
    %v2176 = vadd.f32 0.0, %v2175
    %v2177 = vpop.f32.mrf.mxu0
    %v2178 = vadd.f32 0.0, %v2177
    %2179 = vdwg.mxu0
    %2180 = vmatprep.subr.bf16.mxu0 %v1890
    %2181 = vmatpush1.bf16.msra.mxu0 %v1889
    %2182 = vmatprep.subr.bf16.mxu0 %v1886
    %2183 = vmatpush1.bf16.msra.mxu0 %v1885
    %2184 = vmatprep.subr.bf16.mxu0 %v1882
    %2185 = vmatpush1.bf16.msra.mxu0 %v1881
    %2186 = vmatprep.subr.bf16.mxu0 %v1878
    %2187 = vmatpush1.bf16.msra.mxu0 %v1877
    %2188 = vmatprep.subr.bf16.mxu0 %v1874
    %2189 = vmatpush1.bf16.msra.mxu0 %v1873
    %2190 = vmatprep.subr.bf16.mxu0 %v1870
    %2191 = vmatpush1.bf16.msra.mxu0 %v1869
    %2192 = vmatprep.subr.bf16.mxu0 %v1866
    %2193 = vmatpush1.bf16.msra.mxu0 %v1865
    %2194 = vmatprep.subr.bf16.mxu0 %v1862
    %2195 = vmatpush1.bf16.msra.mxu0 %v1861
    %2196 = vmatprep.subr.bf16.mxu0 %v1922
    %2197 = vmatpush2.bf16.msra.mxu0 %v1921
    %2198 = vmatprep.subr.bf16.mxu0 %v1918
    %2199 = vmatpush2.bf16.msra.mxu0 %v1917
    %2200 = vmatprep.subr.bf16.mxu0 %v1914
    %2201 = vmatpush2.bf16.msra.mxu0 %v1913
    %2202 = vmatprep.subr.bf16.mxu0 %v1910
    %2203 = vmatpush2.bf16.msra.mxu0 %v1909
    %2204 = vmatprep.subr.bf16.mxu0 %v1906
    %2205 = vmatpush2.bf16.msra.mxu0 %v1905
    %2206 = vmatprep.subr.bf16.mxu0 %v1902
    %2207 = vmatpush2.bf16.msra.mxu0 %v1901
    %2208 = vmatprep.subr.bf16.mxu0 %v1898
    %2209 = vmatpush2.bf16.msra.mxu0 %v1897
    %2210 = vmatprep.subr.bf16.mxu0 %v1894
    %2211 = vmatpush2.bf16.msra.mxu0 %v1893
    %2212 = vmatprep.mubr.bf16.mxu0 %v1282
    %2213 = vmatmul.mubr.bf16.gmra.mxu0 %v1281
    %v2214 = vpop.f32.mrf.mxu0
    %v2215 = vadd.f32 %v2172, %v2214
    %v2216 = vpop.f32.mrf.mxu0
    %v2217 = vadd.f32 %v2174, %v2216
    %v2218 = vpop.f32.mrf.mxu0
    %v2219 = vadd.f32 %v2176, %v2218
    %v2220 = vpop.f32.mrf.mxu0
    %v2221 = vadd.f32 %v2178, %v2220
    %2222 = vdwg.mxu0
    %2223 = vmatprep.subr.mxu0 0.0
    %2224 = vmatpush1.xpose.msra.mxu0 0.0
    %2225 = vmatprep.subr.mxu0 0.0
    %2226 = vmatpush1.xpose.msra.mxu0 0.0
    %2227 = vmatprep.subr.mxu0 0.0
    %2228 = vmatpush1.xpose.msra.mxu0 0.0
    %2229 = vmatprep.subr.mxu0 0.0
    %2230 = vmatpush1.xpose.msra.mxu0 0.0
    %2231 = vmatprep.subr.mxu0 0.0
    %2232 = vmatpush1.xpose.msra.mxu0 0.0
    %2233 = vmatprep.subr.mxu0 0.0
    %2234 = vmatpush1.xpose.msra.mxu0 0.0
    %2235 = vmatprep.subr.mxu0 0.0
    %2236 = vmatpush1.xpose.msra.mxu0 0.0
    %2237 = vmatprep.subr.mxu0 0.0
    %2238 = vmatpush1.xpose.msra.mxu0 0.0
    %2239 = vmatprep.subr.mxu0 0.0
    %2240 = vmatpush1.xpose.msra.mxu0 0.0
    %2241 = vmatprep.subr.mxu0 0.0
    %2242 = vmatpush1.xpose.msra.mxu0 0.0
    %2243 = vmatprep.subr.mxu0 0.0
    %2244 = vmatpush1.xpose.msra.mxu0 0.0
    %2245 = vmatprep.subr.mxu0 0.0
    %2246 = vmatpush1.xpose.msra.mxu0 0.0
    %2247 = vmatprep.subr.mxu0 0.0
    %2248 = vmatpush1.xpose.msra.mxu0 0.0
    %2249 = vmatprep.subr.mxu0 0.0
    %2250 = vmatpush1.xpose.msra.mxu0 0.0
    %2251 = vmatprep.subr.mxu0 %v1276
    %2252 = vmatpush1.xpose.msra.mxu0 %v1275
    %2253 = vmatprep.subr.mxu0 %v1272
    %2254 = vmatpush1.xpose.msra.mxu0 %v1271
    %2255 = vmatprep.subr.mxu0 0.0
    %2256 = vmatpush2.xpose.msra.mxu0 0.0
    %2257 = vmatprep.subr.mxu0 0.0
    %2258 = vmatpush2.xpose.msra.mxu0 0.0
    %2259 = vmatprep.subr.mxu0 0.0
    %2260 = vmatpush2.xpose.msra.mxu0 0.0
    %2261 = vmatprep.subr.mxu0 0.0
    %2262 = vmatpush2.xpose.msra.mxu0 0.0
    %2263 = vmatprep.subr.mxu0 0.0
    %2264 = vmatpush2.xpose.msra.mxu0 0.0
    %2265 = vmatprep.subr.mxu0 0.0
    %2266 = vmatpush2.xpose.msra.mxu0 0.0
    %2267 = vmatprep.subr.mxu0 0.0
    %2268 = vmatpush2.xpose.msra.mxu0 0.0
    %2269 = vmatprep.subr.mxu0 0.0
    %2270 = vmatpush2.xpose.msra.mxu0 0.0
    %2271 = vmatprep.subr.mxu0 0.0
    %2272 = vmatpush2.xpose.msra.mxu0 0.0
    %2273 = vmatprep.subr.mxu0 0.0
    %2274 = vmatpush2.xpose.msra.mxu0 0.0
    %2275 = vmatprep.subr.mxu0 0.0
    %2276 = vmatpush2.xpose.msra.mxu0 0.0
    %2277 = vmatprep.subr.mxu0 0.0
    %2278 = vmatpush2.xpose.msra.mxu0 0.0
    %2279 = vmatprep.subr.mxu0 0.0
    %2280 = vmatpush2.xpose.msra.mxu0 0.0
    %2281 = vmatprep.subr.mxu0 0.0
    %2282 = vmatpush2.xpose.msra.mxu0 0.0
    %2283 = vmatprep.subr.mxu0 0.0
    %2284 = vmatpush2.xpose.msra.mxu0 0.0
    %2285 = vmatprep.subr.mxu0 0.0
    %2286 = vmatpush2.xpose.msra.mxu0 0.0
    %2287 = vmatprep.mubr.f32.mxu0 %v2131
    %2288 = vmatmul.mubr.f32.gmra.mxu0 %v2129
    %v2289 = vpop.f32.mrf.mxu0
    %v2290 = vadd.f32 0.0, %v2289
    %v2291 = vpop.f32.mrf.mxu0
    %2292 = vmatprep.mubr.f32.mxu0 %v2135
    %2293 = vmatmul.mubr.f32.gmra.mxu0 %v2133
    %v2294 = vpop.f32.mrf.mxu0
    %v2295 = vadd.f32 0.0, %v2294
    %v2296 = vpop.f32.mrf.mxu0
    %2297 = vdwg.mxu0
    %2298 = vmatprep.subr.mxu0 0.0
    %2299 = vmatpush1.xpose.msra.mxu0 0.0
    %2300 = vmatprep.subr.mxu0 0.0
    %2301 = vmatpush1.xpose.msra.mxu0 0.0
    %2302 = vmatprep.subr.mxu0 0.0
    %2303 = vmatpush1.xpose.msra.mxu0 0.0
    %2304 = vmatprep.subr.mxu0 0.0
    %2305 = vmatpush1.xpose.msra.mxu0 0.0
    %2306 = vmatprep.subr.mxu0 0.0
    %2307 = vmatpush1.xpose.msra.mxu0 0.0
    %2308 = vmatprep.subr.mxu0 0.0
    %2309 = vmatpush1.xpose.msra.mxu0 0.0
    %2310 = vmatprep.subr.mxu0 0.0
    %2311 = vmatpush1.xpose.msra.mxu0 0.0
    %2312 = vmatprep.subr.mxu0 0.0
    %2313 = vmatpush1.xpose.msra.mxu0 0.0
    %2314 = vmatprep.subr.mxu0 0.0
    %2315 = vmatpush1.xpose.msra.mxu0 0.0
    %2316 = vmatprep.subr.mxu0 0.0
    %2317 = vmatpush1.xpose.msra.mxu0 0.0
    %2318 = vmatprep.subr.mxu0 0.0
    %2319 = vmatpush1.xpose.msra.mxu0 0.0
    %2320 = vmatprep.subr.mxu0 0.0
    %2321 = vmatpush1.xpose.msra.mxu0 0.0
    %2322 = vmatprep.subr.mxu0 0.0
    %2323 = vmatpush1.xpose.msra.mxu0 0.0
    %2324 = vmatprep.subr.mxu0 0.0
    %2325 = vmatpush1.xpose.msra.mxu0 0.0
    %2326 = vmatprep.subr.mxu0 %v1278
    %2327 = vmatpush1.xpose.msra.mxu0 %v1277
    %2328 = vmatprep.subr.mxu0 %v1274
    %2329 = vmatpush1.xpose.msra.mxu0 %v1273
    %2330 = vmatprep.subr.mxu0 0.0
    %2331 = vmatpush2.xpose.msra.mxu0 0.0
    %2332 = vmatprep.subr.mxu0 0.0
    %2333 = vmatpush2.xpose.msra.mxu0 0.0
    %2334 = vmatprep.subr.mxu0 0.0
    %2335 = vmatpush2.xpose.msra.mxu0 0.0
    %2336 = vmatprep.subr.mxu0 0.0
    %2337 = vmatpush2.xpose.msra.mxu0 0.0
    %2338 = vmatprep.subr.mxu0 0.0
    %2339 = vmatpush2.xpose.msra.mxu0 0.0
    %2340 = vmatprep.subr.mxu0 0.0
    %2341 = vmatpush2.xpose.msra.mxu0 0.0
    %2342 = vmatprep.subr.mxu0 0.0
    %2343 = vmatpush2.xpose.msra.mxu0 0.0
    %2344 = vmatprep.subr.mxu0 0.0
    %2345 = vmatpush2.xpose.msra.mxu0 0.0
    %2346 = vmatprep.subr.mxu0 0.0
    %2347 = vmatpush2.xpose.msra.mxu0 0.0
    %2348 = vmatprep.subr.mxu0 0.0
    %2349 = vmatpush2.xpose.msra.mxu0 0.0
    %2350 = vmatprep.subr.mxu0 0.0
    %2351 = vmatpush2.xpose.msra.mxu0 0.0
    %2352 = vmatprep.subr.mxu0 0.0
    %2353 = vmatpush2.xpose.msra.mxu0 0.0
    %2354 = vmatprep.subr.mxu0 0.0
    %2355 = vmatpush2.xpose.msra.mxu0 0.0
    %2356 = vmatprep.subr.mxu0 0.0
    %2357 = vmatpush2.xpose.msra.mxu0 0.0
    %2358 = vmatprep.subr.mxu0 0.0
    %2359 = vmatpush2.xpose.msra.mxu0 0.0
    %2360 = vmatprep.subr.mxu0 0.0
    %2361 = vmatpush2.xpose.msra.mxu0 0.0
    %2362 = vmatprep.mubr.f32.mxu0 %v2217
    %2363 = vmatmul.mubr.f32.gmra.mxu0 %v2215
    %v2364 = vpop.f32.mrf.mxu0
    %v2365 = vadd.f32 %v2290, %v2364
    %v2366 = vpop.f32.mrf.mxu0
    %2367 = vmatprep.mubr.f32.mxu0 %v2221
    %2368 = vmatmul.mubr.f32.gmra.mxu0 %v2219
    %v2369 = vpop.f32.mrf.mxu0
    %v2370 = vadd.f32 %v2295, %v2369
    %v2371 = vpop.f32.mrf.mxu0
    %2372 = vdwg.mxu0
    %v2373 = vmul.f32 %v2365, %v2365
    %v2374 = vmul.f32 %v2370, %v2370
    %vm2375 = vcmask 130048
    %v2376 = vsel %vm2375, %v2373, 0.0
    %2377 = vadd.xlane.f32.xlu0 %v2376
    %v2378 = vpop.xlane.xlu0 %2377
    %v2379 = vsel %vm2375, %v2374, 0.0
    %2380 = vadd.xlane.f32.xlu0 %v2379
    %v2381 = vpop.xlane.xlu0 %2380
    %v2382 = vmax.f32 %v2378, 1e-24
    %v2383 = vmax.f32 %v2381, 1e-24
    %v2384 = vrsqrt.pop %v2382
    %v2385 = vrsqrt.pop %v2383
    %v2386 = vmul.f32 %v2365, %v2384
    %v2387 = vmul.f32 %v2370, %v2385
    %2388 = vst.msk [vmem:[#allocation8] sm:$0xff] %vm2375, %v2386
    %2389 = vst.msk [vmem:[#allocation8 + $0x8] sm:$0xff] %vm2375, %v2387
    %v2390 = vpack.c.bf16 %v2133, %v2129
    %v2391 = vpack.c.bf16 %v2135, %v2131
    %v2392 = vpack.c.bf16 %v2219, %v2215
    %v2393 = vpack.c.bf16 %v2221, %v2217
    %v2394 = vld [vmem:[#allocation7] sm:$0xff]
    %v2395 = vld [vmem:[#allocation7 + $0x8] sm:$0xff]
    %v2396 = vld [vmem:[#allocation7 + $0x10] sm:$0xff]
    %v2397 = vld [vmem:[#allocation7 + $0x18] sm:$0xff]
    %v2398 = vld [vmem:[#allocation7 + $0x20] sm:$0xff]
    %v2399 = vld [vmem:[#allocation7 + $0x28] sm:$0xff]
    %v2400 = vld [vmem:[#allocation7 + $0x30] sm:$0xff]
    %v2401 = vld [vmem:[#allocation7 + $0x38] sm:$0xff]
    %v2402 = vld [vmem:[#allocation7 + $0x40] sm:$0xff]
    %v2403 = vld [vmem:[#allocation7 + $0x48] sm:$0xff]
    %v2404 = vld [vmem:[#allocation7 + $0x50] sm:$0xff]
    %v2405 = vld [vmem:[#allocation7 + $0x58] sm:$0xff]
    %v2406 = vld [vmem:[#allocation7 + $0x60] sm:$0xff]
    %v2407 = vld [vmem:[#allocation7 + $0x68] sm:$0xff]
    %v2408 = vld [vmem:[#allocation7 + $0x70] sm:$0xff]
    %v2409 = vld [vmem:[#allocation7 + $0x78] sm:$0xff]
    %v2410 = vld [vmem:[#allocation7 + $0x80] sm:$0xff]
    %v2411 = vld [vmem:[#allocation7 + $0x88] sm:$0xff]
    %v2412 = vld [vmem:[#allocation7 + $0x90] sm:$0xff]
    %v2413 = vld [vmem:[#allocation7 + $0x98] sm:$0xff]
    %v2414 = vld [vmem:[#allocation7 + $0xa0] sm:$0xff]
    %v2415 = vld [vmem:[#allocation7 + $0xa8] sm:$0xff]
    %v2416 = vld [vmem:[#allocation7 + $0xb0] sm:$0xff]
    %v2417 = vld [vmem:[#allocation7 + $0xb8] sm:$0xff]
    %v2418 = vld [vmem:[#allocation7 + $0xc0] sm:$0xff]
    %v2419 = vld [vmem:[#allocation7 + $0xc8] sm:$0xff]
    %v2420 = vld [vmem:[#allocation7 + $0xd0] sm:$0xff]
    %v2421 = vld [vmem:[#allocation7 + $0xd8] sm:$0xff]
    %v2422 = vld [vmem:[#allocation7 + $0xe0] sm:$0xff]
    %v2423 = vld [vmem:[#allocation7 + $0xe8] sm:$0xff]
    %v2424 = vld [vmem:[#allocation7 + $0xf0] sm:$0xff]
    %v2425 = vld [vmem:[#allocation7 + $0xf8] sm:$0xff]
    %v2426 = vld [vmem:[#allocation7 + $0x100] sm:$0xff]
    %v2427 = vld [vmem:[#allocation7 + $0x108] sm:$0xff]
    %v2428 = vld [vmem:[#allocation7 + $0x110] sm:$0xff]
    %v2429 = vld [vmem:[#allocation7 + $0x118] sm:$0xff]
    %v2430 = vld [vmem:[#allocation7 + $0x120] sm:$0xff]
    %v2431 = vld [vmem:[#allocation7 + $0x128] sm:$0xff]
    %v2432 = vld [vmem:[#allocation7 + $0x130] sm:$0xff]
    %v2433 = vld [vmem:[#allocation7 + $0x138] sm:$0xff]
    %v2434 = vld [vmem:[#allocation7 + $0x140] sm:$0xff]
    %v2435 = vld [vmem:[#allocation7 + $0x148] sm:$0xff]
    %v2436 = vld [vmem:[#allocation7 + $0x150] sm:$0xff]
    %v2437 = vld [vmem:[#allocation7 + $0x158] sm:$0xff]
    %v2438 = vld [vmem:[#allocation7 + $0x160] sm:$0xff]
    %v2439 = vld [vmem:[#allocation7 + $0x168] sm:$0xff]
    %v2440 = vld [vmem:[#allocation7 + $0x170] sm:$0xff]
    %v2441 = vld [vmem:[#allocation7 + $0x178] sm:$0xff]
    %v2442 = vld [vmem:[#allocation7 + $0x180] sm:$0xff]
    %v2443 = vld [vmem:[#allocation7 + $0x188] sm:$0xff]
    %v2444 = vld [vmem:[#allocation7 + $0x190] sm:$0xff]
    %v2445 = vld [vmem:[#allocation7 + $0x198] sm:$0xff]
    %v2446 = vld [vmem:[#allocation7 + $0x1a0] sm:$0xff]
    %v2447 = vld [vmem:[#allocation7 + $0x1a8] sm:$0xff]
    %v2448 = vld [vmem:[#allocation7 + $0x1b0] sm:$0xff]
    %v2449 = vld [vmem:[#allocation7 + $0x1b8] sm:$0xff]
    %v2450 = vld [vmem:[#allocation7 + $0x1c0] sm:$0xff]
    %v2451 = vld [vmem:[#allocation7 + $0x1c8] sm:$0xff]
    %v2452 = vld [vmem:[#allocation7 + $0x1d0] sm:$0xff]
    %v2453 = vld [vmem:[#allocation7 + $0x1d8] sm:$0xff]
    %v2454 = vld [vmem:[#allocation7 + $0x1e0] sm:$0xff]
    %v2455 = vld [vmem:[#allocation7 + $0x1e8] sm:$0xff]
    %v2456 = vld [vmem:[#allocation7 + $0x1f0] sm:$0xff]
    %v2457 = vld [vmem:[#allocation7 + $0x1f8] sm:$0xff]
    %v2458 = vld [vmem:[#allocation7 + $0x200] sm:$0xff]
    %v2459 = vld [vmem:[#allocation7 + $0x208] sm:$0xff]
    %v2460 = vld [vmem:[#allocation7 + $0x210] sm:$0xff]
    %v2461 = vld [vmem:[#allocation7 + $0x218] sm:$0xff]
    %v2462 = vld [vmem:[#allocation7 + $0x220] sm:$0xff]
    %v2463 = vld [vmem:[#allocation7 + $0x228] sm:$0xff]
    %v2464 = vld [vmem:[#allocation7 + $0x230] sm:$0xff]
    %v2465 = vld [vmem:[#allocation7 + $0x238] sm:$0xff]
    %v2466 = vld [vmem:[#allocation7 + $0x240] sm:$0xff]
    %v2467 = vld [vmem:[#allocation7 + $0x248] sm:$0xff]
    %v2468 = vld [vmem:[#allocation7 + $0x250] sm:$0xff]
    %v2469 = vld [vmem:[#allocation7 + $0x258] sm:$0xff]
    %v2470 = vld [vmem:[#allocation7 + $0x260] sm:$0xff]
    %v2471 = vld [vmem:[#allocation7 + $0x268] sm:$0xff]
    %v2472 = vld [vmem:[#allocation7 + $0x270] sm:$0xff]
    %v2473 = vld [vmem:[#allocation7 + $0x278] sm:$0xff]
    %v2474 = vld [vmem:[#allocation7 + $0x280] sm:$0xff]
    %v2475 = vld [vmem:[#allocation7 + $0x288] sm:$0xff]
    %v2476 = vld [vmem:[#allocation7 + $0x290] sm:$0xff]
    %v2477 = vld [vmem:[#allocation7 + $0x298] sm:$0xff]
    %v2478 = vld [vmem:[#allocation7 + $0x2a0] sm:$0xff]
    %v2479 = vld [vmem:[#allocation7 + $0x2a8] sm:$0xff]
    %v2480 = vld [vmem:[#allocation7 + $0x2b0] sm:$0xff]
    %v2481 = vld [vmem:[#allocation7 + $0x2b8] sm:$0xff]
    %v2482 = vld [vmem:[#allocation7 + $0x2c0] sm:$0xff]
    %v2483 = vld [vmem:[#allocation7 + $0x2c8] sm:$0xff]
    %v2484 = vld [vmem:[#allocation7 + $0x2d0] sm:$0xff]
    %v2485 = vld [vmem:[#allocation7 + $0x2d8] sm:$0xff]
    %v2486 = vld [vmem:[#allocation7 + $0x2e0] sm:$0xff]
    %v2487 = vld [vmem:[#allocation7 + $0x2e8] sm:$0xff]
    %v2488 = vld [vmem:[#allocation7 + $0x2f0] sm:$0xff]
    %v2489 = vld [vmem:[#allocation7 + $0x2f8] sm:$0xff]
    %v2490 = vld [vmem:[#allocation7 + $0x300] sm:$0xff]
    %v2491 = vld [vmem:[#allocation7 + $0x308] sm:$0xff]
    %v2492 = vld [vmem:[#allocation7 + $0x310] sm:$0xff]
    %v2493 = vld [vmem:[#allocation7 + $0x318] sm:$0xff]
    %v2494 = vld [vmem:[#allocation7 + $0x320] sm:$0xff]
    %v2495 = vld [vmem:[#allocation7 + $0x328] sm:$0xff]
    %v2496 = vld [vmem:[#allocation7 + $0x330] sm:$0xff]
    %v2497 = vld [vmem:[#allocation7 + $0x338] sm:$0xff]
    %v2498 = vld [vmem:[#allocation7 + $0x340] sm:$0xff]
    %v2499 = vld [vmem:[#allocation7 + $0x348] sm:$0xff]
    %v2500 = vld [vmem:[#allocation7 + $0x350] sm:$0xff]
    %v2501 = vld [vmem:[#allocation7 + $0x358] sm:$0xff]
    %v2502 = vld [vmem:[#allocation7 + $0x360] sm:$0xff]
    %v2503 = vld [vmem:[#allocation7 + $0x368] sm:$0xff]
    %v2504 = vld [vmem:[#allocation7 + $0x370] sm:$0xff]
    %v2505 = vld [vmem:[#allocation7 + $0x378] sm:$0xff]
    %v2506 = vld [vmem:[#allocation7 + $0x380] sm:$0xff]
    %v2507 = vld [vmem:[#allocation7 + $0x388] sm:$0xff]
    %v2508 = vld [vmem:[#allocation7 + $0x390] sm:$0xff]
    %v2509 = vld [vmem:[#allocation7 + $0x398] sm:$0xff]
    %v2510 = vld [vmem:[#allocation7 + $0x3a0] sm:$0xff]
    %v2511 = vld [vmem:[#allocation7 + $0x3a8] sm:$0xff]
    %v2512 = vld [vmem:[#allocation7 + $0x3b0] sm:$0xff]
    %v2513 = vld [vmem:[#allocation7 + $0x3b8] sm:$0xff]
    %v2514 = vld [vmem:[#allocation7 + $0x3c0] sm:$0xff]
    %v2515 = vld [vmem:[#allocation7 + $0x3c8] sm:$0xff]
    %v2516 = vld [vmem:[#allocation7 + $0x3d0] sm:$0xff]
    %v2517 = vld [vmem:[#allocation7 + $0x3d8] sm:$0xff]
    %v2518 = vld [vmem:[#allocation7 + $0x3e0] sm:$0xff]
    %v2519 = vld [vmem:[#allocation7 + $0x3e8] sm:$0xff]
    %v2520 = vld [vmem:[#allocation7 + $0x3f0] sm:$0xff]
    %v2521 = vld [vmem:[#allocation7 + $0x3f8] sm:$0xff]
    %v2522 = vld [vmem:[%s7] sm:$0xf]
    %v2524 = vlaneseq
    %v2525 = vshrl.u32 %v2524, 7
    %v2526 = vsub.s32 0, %v2525
    %v2527 = vrot.slane %v2522, %v2526
    %v2528 = vlaneseq
    %v2529 = vshrl.u32 %v2528, 7
    %v2530 = vsub.s32 1, %v2529
    %v2531 = vrot.slane %v2522, %v2530
    %v2532 = vlaneseq
    %v2533 = vshrl.u32 %v2532, 7
    %v2534 = vsub.s32 2, %v2533
    %v2535 = vrot.slane %v2522, %v2534
    %v2536 = vlaneseq
    %v2537 = vshrl.u32 %v2536, 7
    %v2538 = vsub.s32 3, %v2537
    %v2539 = vrot.slane %v2522, %v2538
    %v2672 = vunpack.c.l.b16 %v2394
    %v2673 = vunpack.c.h.b16 %v2394
    %v2674 = vunpack.c.l.b16 %v2395
    %v2675 = vunpack.c.h.b16 %v2395
    %v2676 = vunpack.c.l.b16 %v2396
    %v2677 = vunpack.c.h.b16 %v2396
    %v2678 = vunpack.c.l.b16 %v2397
    %v2679 = vunpack.c.h.b16 %v2397
    %v2680 = vunpack.c.l.b16 %v2398
    %v2681 = vunpack.c.h.b16 %v2398
    %v2682 = vunpack.c.l.b16 %v2399
    %v2683 = vunpack.c.h.b16 %v2399
    %v2684 = vunpack.c.l.b16 %v2400
    %v2685 = vunpack.c.h.b16 %v2400
    %v2686 = vunpack.c.l.b16 %v2401
    %v2687 = vunpack.c.h.b16 %v2401
    %v2688 = vunpack.c.l.b16 %v2402
    %v2689 = vunpack.c.h.b16 %v2402
    %v2690 = vunpack.c.l.b16 %v2403
    %v2691 = vunpack.c.h.b16 %v2403
    %v2692 = vunpack.c.l.b16 %v2404
    %v2693 = vunpack.c.h.b16 %v2404
    %v2694 = vunpack.c.l.b16 %v2405
    %v2695 = vunpack.c.h.b16 %v2405
    %v2696 = vunpack.c.l.b16 %v2406
    %v2697 = vunpack.c.h.b16 %v2406
    %v2698 = vunpack.c.l.b16 %v2407
    %v2699 = vunpack.c.h.b16 %v2407
    %v2700 = vunpack.c.l.b16 %v2408
    %v2701 = vunpack.c.h.b16 %v2408
    %v2702 = vunpack.c.l.b16 %v2409
    %v2703 = vunpack.c.h.b16 %v2409
    %v2704 = vunpack.c.l.b16 %v2410
    %v2705 = vunpack.c.h.b16 %v2410
    %v2706 = vunpack.c.l.b16 %v2411
    %v2707 = vunpack.c.h.b16 %v2411
    %v2708 = vunpack.c.l.b16 %v2412
    %v2709 = vunpack.c.h.b16 %v2412
    %v2710 = vunpack.c.l.b16 %v2413
    %v2711 = vunpack.c.h.b16 %v2413
    %v2712 = vunpack.c.l.b16 %v2414
    %v2713 = vunpack.c.h.b16 %v2414
    %v2714 = vunpack.c.l.b16 %v2415
    %v2715 = vunpack.c.h.b16 %v2415
    %v2716 = vunpack.c.l.b16 %v2416
    %v2717 = vunpack.c.h.b16 %v2416
    %v2718 = vunpack.c.l.b16 %v2417
    %v2719 = vunpack.c.h.b16 %v2417
    %v2720 = vunpack.c.l.b16 %v2418
    %v2721 = vunpack.c.h.b16 %v2418
    %v2722 = vunpack.c.l.b16 %v2419
    %v2723 = vunpack.c.h.b16 %v2419
    %v2724 = vunpack.c.l.b16 %v2420
    %v2725 = vunpack.c.h.b16 %v2420
    %v2726 = vunpack.c.l.b16 %v2421
    %v2727 = vunpack.c.h.b16 %v2421
    %v2728 = vunpack.c.l.b16 %v2422
    %v2729 = vunpack.c.h.b16 %v2422
    %v2730 = vunpack.c.l.b16 %v2423
    %v2731 = vunpack.c.h.b16 %v2423
    %v2732 = vunpack.c.l.b16 %v2424
    %v2733 = vunpack.c.h.b16 %v2424
    %v2734 = vunpack.c.l.b16 %v2425
    %v2735 = vunpack.c.h.b16 %v2425
    %v2736 = vunpack.c.l.b16 %v2426
    %v2737 = vunpack.c.h.b16 %v2426
    %v2738 = vunpack.c.l.b16 %v2427
    %v2739 = vunpack.c.h.b16 %v2427
    %v2740 = vunpack.c.l.b16 %v2428
    %v2741 = vunpack.c.h.b16 %v2428
    %v2742 = vunpack.c.l.b16 %v2429
    %v2743 = vunpack.c.h.b16 %v2429
    %v2744 = vunpack.c.l.b16 %v2430
    %v2745 = vunpack.c.h.b16 %v2430
    %v2746 = vunpack.c.l.b16 %v2431
    %v2747 = vunpack.c.h.b16 %v2431
    %v2748 = vunpack.c.l.b16 %v2432
    %v2749 = vunpack.c.h.b16 %v2432
    %v2750 = vunpack.c.l.b16 %v2433
    %v2751 = vunpack.c.h.b16 %v2433
    %v2752 = vunpack.c.l.b16 %v2434
    %v2753 = vunpack.c.h.b16 %v2434
    %v2754 = vunpack.c.l.b16 %v2435
    %v2755 = vunpack.c.h.b16 %v2435
    %v2756 = vunpack.c.l.b16 %v2436
    %v2757 = vunpack.c.h.b16 %v2436
    %v2758 = vunpack.c.l.b16 %v2437
    %v2759 = vunpack.c.h.b16 %v2437
    %v2760 = vunpack.c.l.b16 %v2438
    %v2761 = vunpack.c.h.b16 %v2438
    %v2762 = vunpack.c.l.b16 %v2439
    %v2763 = vunpack.c.h.b16 %v2439
    %v2764 = vunpack.c.l.b16 %v2440
    %v2765 = vunpack.c.h.b16 %v2440
    %v2766 = vunpack.c.l.b16 %v2441
    %v2767 = vunpack.c.h.b16 %v2441
    %v2768 = vunpack.c.l.b16 %v2442
    %v2769 = vunpack.c.h.b16 %v2442
    %v2770 = vunpack.c.l.b16 %v2443
    %v2771 = vunpack.c.h.b16 %v2443
    %v2772 = vunpack.c.l.b16 %v2444
    %v2773 = vunpack.c.h.b16 %v2444
    %v2774 = vunpack.c.l.b16 %v2445
    %v2775 = vunpack.c.h.b16 %v2445
    %v2776 = vunpack.c.l.b16 %v2446
    %v2777 = vunpack.c.h.b16 %v2446
    %v2778 = vunpack.c.l.b16 %v2447
    %v2779 = vunpack.c.h.b16 %v2447
    %v2780 = vunpack.c.l.b16 %v2448
    %v2781 = vunpack.c.h.b16 %v2448
    %v2782 = vunpack.c.l.b16 %v2449
    %v2783 = vunpack.c.h.b16 %v2449
    %v2784 = vunpack.c.l.b16 %v2450
    %v2785 = vunpack.c.h.b16 %v2450
    %v2786 = vunpack.c.l.b16 %v2451
    %v2787 = vunpack.c.h.b16 %v2451
    %v2788 = vunpack.c.l.b16 %v2452
    %v2789 = vunpack.c.h.b16 %v2452
    %v2790 = vunpack.c.l.b16 %v2453
    %v2791 = vunpack.c.h.b16 %v2453
    %v2792 = vunpack.c.l.b16 %v2454
    %v2793 = vunpack.c.h.b16 %v2454
    %v2794 = vunpack.c.l.b16 %v2455
    %v2795 = vunpack.c.h.b16 %v2455
    %v2796 = vunpack.c.l.b16 %v2456
    %v2797 = vunpack.c.h.b16 %v2456
    %v2798 = vunpack.c.l.b16 %v2457
    %v2799 = vunpack.c.h.b16 %v2457
    %v2800 = vunpack.c.l.b16 %v2458
    %v2801 = vunpack.c.h.b16 %v2458
    %v2802 = vunpack.c.l.b16 %v2459
    %v2803 = vunpack.c.h.b16 %v2459
    %v2804 = vunpack.c.l.b16 %v2460
    %v2805 = vunpack.c.h.b16 %v2460
    %v2806 = vunpack.c.l.b16 %v2461
    %v2807 = vunpack.c.h.b16 %v2461
    %v2808 = vunpack.c.l.b16 %v2462
    %v2809 = vunpack.c.h.b16 %v2462
    %v2810 = vunpack.c.l.b16 %v2463
    %v2811 = vunpack.c.h.b16 %v2463
    %v2812 = vunpack.c.l.b16 %v2464
    %v2813 = vunpack.c.h.b16 %v2464
    %v2814 = vunpack.c.l.b16 %v2465
    %v2815 = vunpack.c.h.b16 %v2465
    %v2816 = vunpack.c.l.b16 %v2466
    %v2817 = vunpack.c.h.b16 %v2466
    %v2818 = vunpack.c.l.b16 %v2467
    %v2819 = vunpack.c.h.b16 %v2467
    %v2820 = vunpack.c.l.b16 %v2468
    %v2821 = vunpack.c.h.b16 %v2468
    %v2822 = vunpack.c.l.b16 %v2469
    %v2823 = vunpack.c.h.b16 %v2469
    %v2824 = vunpack.c.l.b16 %v2470
    %v2825 = vunpack.c.h.b16 %v2470
    %v2826 = vunpack.c.l.b16 %v2471
    %v2827 = vunpack.c.h.b16 %v2471
    %v2828 = vunpack.c.l.b16 %v2472
    %v2829 = vunpack.c.h.b16 %v2472
    %v2830 = vunpack.c.l.b16 %v2473
    %v2831 = vunpack.c.h.b16 %v2473
    %v2832 = vunpack.c.l.b16 %v2474
    %v2833 = vunpack.c.h.b16 %v2474
    %v2834 = vunpack.c.l.b16 %v2475
    %v2835 = vunpack.c.h.b16 %v2475
    %v2836 = vunpack.c.l.b16 %v2476
    %v2837 = vunpack.c.h.b16 %v2476
    %v2838 = vunpack.c.l.b16 %v2477
    %v2839 = vunpack.c.h.b16 %v2477
    %v2840 = vunpack.c.l.b16 %v2478
    %v2841 = vunpack.c.h.b16 %v2478
    %v2842 = vunpack.c.l.b16 %v2479
    %v2843 = vunpack.c.h.b16 %v2479
    %v2844 = vunpack.c.l.b16 %v2480
    %v2845 = vunpack.c.h.b16 %v2480
    %v2846 = vunpack.c.l.b16 %v2481
    %v2847 = vunpack.c.h.b16 %v2481
    %v2848 = vunpack.c.l.b16 %v2482
    %v2849 = vunpack.c.h.b16 %v2482
    %v2850 = vunpack.c.l.b16 %v2483
    %v2851 = vunpack.c.h.b16 %v2483
    %v2852 = vunpack.c.l.b16 %v2484
    %v2853 = vunpack.c.h.b16 %v2484
    %v2854 = vunpack.c.l.b16 %v2485
    %v2855 = vunpack.c.h.b16 %v2485
    %v2856 = vunpack.c.l.b16 %v2486
    %v2857 = vunpack.c.h.b16 %v2486
    %v2858 = vunpack.c.l.b16 %v2487
    %v2859 = vunpack.c.h.b16 %v2487
    %v2860 = vunpack.c.l.b16 %v2488
    %v2861 = vunpack.c.h.b16 %v2488
    %v2862 = vunpack.c.l.b16 %v2489
    %v2863 = vunpack.c.h.b16 %v2489
    %v2864 = vunpack.c.l.b16 %v2490
    %v2865 = vunpack.c.h.b16 %v2490
    %v2866 = vunpack.c.l.b16 %v2491
    %v2867 = vunpack.c.h.b16 %v2491
    %v2868 = vunpack.c.l.b16 %v2492
    %v2869 = vunpack.c.h.b16 %v2492
    %v2870 = vunpack.c.l.b16 %v2493
    %v2871 = vunpack.c.h.b16 %v2493
    %v2872 = vunpack.c.l.b16 %v2494
    %v2873 = vunpack.c.h.b16 %v2494
    %v2874 = vunpack.c.l.b16 %v2495
    %v2875 = vunpack.c.h.b16 %v2495
    %v2876 = vunpack.c.l.b16 %v2496
    %v2877 = vunpack.c.h.b16 %v2496
    %v2878 = vunpack.c.l.b16 %v2497
    %v2879 = vunpack.c.h.b16 %v2497
    %v2880 = vunpack.c.l.b16 %v2498
    %v2881 = vunpack.c.h.b16 %v2498
    %v2882 = vunpack.c.l.b16 %v2499
    %v2883 = vunpack.c.h.b16 %v2499
    %v2884 = vunpack.c.l.b16 %v2500
    %v2885 = vunpack.c.h.b16 %v2500
    %v2886 = vunpack.c.l.b16 %v2501
    %v2887 = vunpack.c.h.b16 %v2501
    %v2888 = vunpack.c.l.b16 %v2502
    %v2889 = vunpack.c.h.b16 %v2502
    %v2890 = vunpack.c.l.b16 %v2503
    %v2891 = vunpack.c.h.b16 %v2503
    %v2892 = vunpack.c.l.b16 %v2504
    %v2893 = vunpack.c.h.b16 %v2504
    %v2894 = vunpack.c.l.b16 %v2505
    %v2895 = vunpack.c.h.b16 %v2505
    %v2896 = vunpack.c.l.b16 %v2506
    %v2897 = vunpack.c.h.b16 %v2506
    %v2898 = vunpack.c.l.b16 %v2507
    %v2899 = vunpack.c.h.b16 %v2507
    %v2900 = vunpack.c.l.b16 %v2508
    %v2901 = vunpack.c.h.b16 %v2508
    %v2902 = vunpack.c.l.b16 %v2509
    %v2903 = vunpack.c.h.b16 %v2509
    %v2904 = vunpack.c.l.b16 %v2510
    %v2905 = vunpack.c.h.b16 %v2510
    %v2906 = vunpack.c.l.b16 %v2511
    %v2907 = vunpack.c.h.b16 %v2511
    %v2908 = vunpack.c.l.b16 %v2512
    %v2909 = vunpack.c.h.b16 %v2512
    %v2910 = vunpack.c.l.b16 %v2513
    %v2911 = vunpack.c.h.b16 %v2513
    %v2912 = vunpack.c.l.b16 %v2514
    %v2913 = vunpack.c.h.b16 %v2514
    %v2914 = vunpack.c.l.b16 %v2515
    %v2915 = vunpack.c.h.b16 %v2515
    %v2916 = vunpack.c.l.b16 %v2516
    %v2917 = vunpack.c.h.b16 %v2516
    %v2918 = vunpack.c.l.b16 %v2517
    %v2919 = vunpack.c.h.b16 %v2517
    %v2920 = vunpack.c.l.b16 %v2518
    %v2921 = vunpack.c.h.b16 %v2518
    %v2922 = vunpack.c.l.b16 %v2519
    %v2923 = vunpack.c.h.b16 %v2519
    %v2924 = vunpack.c.l.b16 %v2520
    %v2925 = vunpack.c.h.b16 %v2520
    %v2926 = vunpack.c.l.b16 %v2521
    %v2927 = vunpack.c.h.b16 %v2521
    %v2928 = vpack.c.b16 %v2676, %v2672
    %v2929 = vpack.c.b16 %v2677, %v2673
    %v2930 = vpack.c.b16 %v2678, %v2674
    %v2931 = vpack.c.b16 %v2679, %v2675
    %v2932 = vpack.c.b16 %v2684, %v2680
    %v2933 = vpack.c.b16 %v2685, %v2681
    %v2934 = vpack.c.b16 %v2686, %v2682
    %v2935 = vpack.c.b16 %v2687, %v2683
    %v2936 = vpack.c.b16 %v2692, %v2688
    %v2937 = vpack.c.b16 %v2693, %v2689
    %v2938 = vpack.c.b16 %v2694, %v2690
    %v2939 = vpack.c.b16 %v2695, %v2691
    %v2940 = vpack.c.b16 %v2700, %v2696
    %v2941 = vpack.c.b16 %v2701, %v2697
    %v2942 = vpack.c.b16 %v2702, %v2698
    %v2943 = vpack.c.b16 %v2703, %v2699
    %v2944 = vpack.c.b16 %v2708, %v2704
    %v2945 = vpack.c.b16 %v2709, %v2705
    %v2946 = vpack.c.b16 %v2710, %v2706
    %v2947 = vpack.c.b16 %v2711, %v2707
    %v2948 = vpack.c.b16 %v2716, %v2712
    %v2949 = vpack.c.b16 %v2717, %v2713
    %v2950 = vpack.c.b16 %v2718, %v2714
    %v2951 = vpack.c.b16 %v2719, %v2715
    %v2952 = vpack.c.b16 %v2724, %v2720
    %v2953 = vpack.c.b16 %v2725, %v2721
    %v2954 = vpack.c.b16 %v2726, %v2722
    %v2955 = vpack.c.b16 %v2727, %v2723
    %v2956 = vpack.c.b16 %v2732, %v2728
    %v2957 = vpack.c.b16 %v2733, %v2729
    %v2958 = vpack.c.b16 %v2734, %v2730
    %v2959 = vpack.c.b16 %v2735, %v2731
    %v2960 = vpack.c.b16 %v2740, %v2736
    %v2961 = vpack.c.b16 %v2741, %v2737
    %v2962 = vpack.c.b16 %v2742, %v2738
    %v2963 = vpack.c.b16 %v2743, %v2739
    %v2964 = vpack.c.b16 %v2748, %v2744
    %v2965 = vpack.c.b16 %v2749, %v2745
    %v2966 = vpack.c.b16 %v2750, %v2746
    %v2967 = vpack.c.b16 %v2751, %v2747
    %v2968 = vpack.c.b16 %v2756, %v2752
    %v2969 = vpack.c.b16 %v2757, %v2753
    %v2970 = vpack.c.b16 %v2758, %v2754
    %v2971 = vpack.c.b16 %v2759, %v2755
    %v2972 = vpack.c.b16 %v2764, %v2760
    %v2973 = vpack.c.b16 %v2765, %v2761
    %v2974 = vpack.c.b16 %v2766, %v2762
    %v2975 = vpack.c.b16 %v2767, %v2763
    %v2976 = vpack.c.b16 %v2772, %v2768
    %v2977 = vpack.c.b16 %v2773, %v2769
    %v2978 = vpack.c.b16 %v2774, %v2770
    %v2979 = vpack.c.b16 %v2775, %v2771
    %v2980 = vpack.c.b16 %v2780, %v2776
    %v2981 = vpack.c.b16 %v2781, %v2777
    %v2982 = vpack.c.b16 %v2782, %v2778
    %v2983 = vpack.c.b16 %v2783, %v2779
    %v2984 = vpack.c.b16 %v2788, %v2784
    %v2985 = vpack.c.b16 %v2789, %v2785
    %v2986 = vpack.c.b16 %v2790, %v2786
    %v2987 = vpack.c.b16 %v2791, %v2787
    %v2988 = vpack.c.b16 %v2796, %v2792
    %v2989 = vpack.c.b16 %v2797, %v2793
    %v2990 = vpack.c.b16 %v2798, %v2794
    %v2991 = vpack.c.b16 %v2799, %v2795
    %v2992 = vpack.c.b16 %v2804, %v2800
    %v2993 = vpack.c.b16 %v2805, %v2801
    %v2994 = vpack.c.b16 %v2806, %v2802
    %v2995 = vpack.c.b16 %v2807, %v2803
    %v2996 = vpack.c.b16 %v2812, %v2808
    %v2997 = vpack.c.b16 %v2813, %v2809
    %v2998 = vpack.c.b16 %v2814, %v2810
    %v2999 = vpack.c.b16 %v2815, %v2811
    %v3000 = vpack.c.b16 %v2820, %v2816
    %v3001 = vpack.c.b16 %v2821, %v2817
    %v3002 = vpack.c.b16 %v2822, %v2818
    %v3003 = vpack.c.b16 %v2823, %v2819
    %v3004 = vpack.c.b16 %v2828, %v2824
    %v3005 = vpack.c.b16 %v2829, %v2825
    %v3006 = vpack.c.b16 %v2830, %v2826
    %v3007 = vpack.c.b16 %v2831, %v2827
    %v3008 = vpack.c.b16 %v2836, %v2832
    %v3009 = vpack.c.b16 %v2837, %v2833
    %v3010 = vpack.c.b16 %v2838, %v2834
    %v3011 = vpack.c.b16 %v2839, %v2835
    %v3012 = vpack.c.b16 %v2844, %v2840
    %v3013 = vpack.c.b16 %v2845, %v2841
    %v3014 = vpack.c.b16 %v2846, %v2842
    %v3015 = vpack.c.b16 %v2847, %v2843
    %v3016 = vpack.c.b16 %v2852, %v2848
    %v3017 = vpack.c.b16 %v2853, %v2849
    %v3018 = vpack.c.b16 %v2854, %v2850
    %v3019 = vpack.c.b16 %v2855, %v2851
    %v3020 = vpack.c.b16 %v2860, %v2856
    %v3021 = vpack.c.b16 %v2861, %v2857
    %v3022 = vpack.c.b16 %v2862, %v2858
    %v3023 = vpack.c.b16 %v2863, %v2859
    %v3024 = vpack.c.b16 %v2868, %v2864
    %v3025 = vpack.c.b16 %v2869, %v2865
    %v3026 = vpack.c.b16 %v2870, %v2866
    %v3027 = vpack.c.b16 %v2871, %v2867
    %v3028 = vpack.c.b16 %v2876, %v2872
    %v3029 = vpack.c.b16 %v2877, %v2873
    %v3030 = vpack.c.b16 %v2878, %v2874
    %v3031 = vpack.c.b16 %v2879, %v2875
    %v3032 = vpack.c.b16 %v2884, %v2880
    %v3033 = vpack.c.b16 %v2885, %v2881
    %v3034 = vpack.c.b16 %v2886, %v2882
    %v3035 = vpack.c.b16 %v2887, %v2883
    %v3036 = vpack.c.b16 %v2892, %v2888
    %v3037 = vpack.c.b16 %v2893, %v2889
    %v3038 = vpack.c.b16 %v2894, %v2890
    %v3039 = vpack.c.b16 %v2895, %v2891
    %v3040 = vpack.c.b16 %v2900, %v2896
    %v3041 = vpack.c.b16 %v2901, %v2897
    %v3042 = vpack.c.b16 %v2902, %v2898
    %v3043 = vpack.c.b16 %v2903, %v2899
    %v3044 = vpack.c.b16 %v2908, %v2904
    %v3045 = vpack.c.b16 %v2909, %v2905
    %v3046 = vpack.c.b16 %v2910, %v2906
    %v3047 = vpack.c.b16 %v2911, %v2907
    %v3048 = vpack.c.b16 %v2916, %v2912
    %v3049 = vpack.c.b16 %v2917, %v2913
    %v3050 = vpack.c.b16 %v2918, %v2914
    %v3051 = vpack.c.b16 %v2919, %v2915
    %v3052 = vpack.c.b16 %v2924, %v2920
    %v3053 = vpack.c.b16 %v2925, %v2921
    %v3054 = vpack.c.b16 %v2926, %v2922
    %v3055 = vpack.c.b16 %v2927, %v2923
    %3184 = vmatprep.subr.bf16.mxu0 %v2957
    %3185 = vmatpush1.bf16.msra.mxu0 %v2956
    %3186 = vmatprep.subr.bf16.mxu0 %v2953
    %3187 = vmatpush1.bf16.msra.mxu0 %v2952
    %3188 = vmatprep.subr.bf16.mxu0 %v2949
    %3189 = vmatpush1.bf16.msra.mxu0 %v2948
    %3190 = vmatprep.subr.bf16.mxu0 %v2945
    %3191 = vmatpush1.bf16.msra.mxu0 %v2944
    %3192 = vmatprep.subr.bf16.mxu0 %v2941
    %3193 = vmatpush1.bf16.msra.mxu0 %v2940
    %3194 = vmatprep.subr.bf16.mxu0 %v2937
    %3195 = vmatpush1.bf16.msra.mxu0 %v2936
    %3196 = vmatprep.subr.bf16.mxu0 %v2933
    %3197 = vmatpush1.bf16.msra.mxu0 %v2932
    %3198 = vmatprep.subr.bf16.mxu0 %v2929
    %3199 = vmatpush1.bf16.msra.mxu0 %v2928
    %3200 = vmatprep.subr.bf16.mxu0 %v2989
    %3201 = vmatpush2.bf16.msra.mxu0 %v2988
    %3202 = vmatprep.subr.bf16.mxu0 %v2985
    %3203 = vmatpush2.bf16.msra.mxu0 %v2984
    %3204 = vmatprep.subr.bf16.mxu0 %v2981
    %3205 = vmatpush2.bf16.msra.mxu0 %v2980
    %3206 = vmatprep.subr.bf16.mxu0 %v2977
    %3207 = vmatpush2.bf16.msra.mxu0 %v2976
    %3208 = vmatprep.subr.bf16.mxu0 %v2973
    %3209 = vmatpush2.bf16.msra.mxu0 %v2972
    %3210 = vmatprep.subr.bf16.mxu0 %v2969
    %3211 = vmatpush2.bf16.msra.mxu0 %v2968
    %3212 = vmatprep.subr.bf16.mxu0 %v2965
    %3213 = vmatpush2.bf16.msra.mxu0 %v2964
    %3214 = vmatprep.subr.bf16.mxu0 %v2961
    %3215 = vmatpush2.bf16.msra.mxu0 %v2960
    %3216 = vmatprep.mubr.bf16.mxu0 %v2391
    %3217 = vmatmul.mubr.bf16.gmra.mxu0 %v2390
    %v3218 = vpop.f32.mrf.mxu0
    %v3219 = vadd.f32 %v2527, %v3218
    %v3220 = vpop.f32.mrf.mxu0
    %v3221 = vadd.f32 %v2531, %v3220
    %v3222 = vpop.f32.mrf.mxu0
    %v3223 = vadd.f32 %v2527, %v3222
    %v3224 = vpop.f32.mrf.mxu0
    %v3225 = vadd.f32 %v2531, %v3224
    %3226 = vdwg.mxu0
    %3227 = vmatprep.subr.bf16.mxu0 %v3021
    %3228 = vmatpush1.bf16.msra.mxu0 %v3020
    %3229 = vmatprep.subr.bf16.mxu0 %v3017
    %3230 = vmatpush1.bf16.msra.mxu0 %v3016
    %3231 = vmatprep.subr.bf16.mxu0 %v3013
    %3232 = vmatpush1.bf16.msra.mxu0 %v3012
    %3233 = vmatprep.subr.bf16.mxu0 %v3009
    %3234 = vmatpush1.bf16.msra.mxu0 %v3008
    %3235 = vmatprep.subr.bf16.mxu0 %v3005
    %3236 = vmatpush1.bf16.msra.mxu0 %v3004
    %3237 = vmatprep.subr.bf16.mxu0 %v3001
    %3238 = vmatpush1.bf16.msra.mxu0 %v3000
    %3239 = vmatprep.subr.bf16.mxu0 %v2997
    %3240 = vmatpush1.bf16.msra.mxu0 %v2996
    %3241 = vmatprep.subr.bf16.mxu0 %v2993
    %3242 = vmatpush1.bf16.msra.mxu0 %v2992
    %3243 = vmatprep.subr.bf16.mxu0 %v3053
    %3244 = vmatpush2.bf16.msra.mxu0 %v3052
    %3245 = vmatprep.subr.bf16.mxu0 %v3049
    %3246 = vmatpush2.bf16.msra.mxu0 %v3048
    %3247 = vmatprep.subr.bf16.mxu0 %v3045
    %3248 = vmatpush2.bf16.msra.mxu0 %v3044
    %3249 = vmatprep.subr.bf16.mxu0 %v3041
    %3250 = vmatpush2.bf16.msra.mxu0 %v3040
    %3251 = vmatprep.subr.bf16.mxu0 %v3037
    %3252 = vmatpush2.bf16.msra.mxu0 %v3036
    %3253 = vmatprep.subr.bf16.mxu0 %v3033
    %3254 = vmatpush2.bf16.msra.mxu0 %v3032
    %3255 = vmatprep.subr.bf16.mxu0 %v3029
    %3256 = vmatpush2.bf16.msra.mxu0 %v3028
    %3257 = vmatprep.subr.bf16.mxu0 %v3025
    %3258 = vmatpush2.bf16.msra.mxu0 %v3024
    %3259 = vmatprep.mubr.bf16.mxu0 %v2393
    %3260 = vmatmul.mubr.bf16.gmra.mxu0 %v2392
    %v3261 = vpop.f32.mrf.mxu0
    %v3262 = vadd.f32 %v3219, %v3261
    %v3263 = vpop.f32.mrf.mxu0
    %v3264 = vadd.f32 %v3221, %v3263
    %v3265 = vpop.f32.mrf.mxu0
    %v3266 = vadd.f32 %v3223, %v3265
    %v3267 = vpop.f32.mrf.mxu0
    %v3268 = vadd.f32 %v3225, %v3267
    %3269 = vdwg.mxu0
    %3270 = vmatprep.subr.bf16.mxu0 %v2959
    %3271 = vmatpush1.bf16.msra.mxu0 %v2958
    %3272 = vmatprep.subr.bf16.mxu0 %v2955
    %3273 = vmatpush1.bf16.msra.mxu0 %v2954
    %3274 = vmatprep.subr.bf16.mxu0 %v2951
    %3275 = vmatpush1.bf16.msra.mxu0 %v2950
    %3276 = vmatprep.subr.bf16.mxu0 %v2947
    %3277 = vmatpush1.bf16.msra.mxu0 %v2946
    %3278 = vmatprep.subr.bf16.mxu0 %v2943
    %3279 = vmatpush1.bf16.msra.mxu0 %v2942
    %3280 = vmatprep.subr.bf16.mxu0 %v2939
    %3281 = vmatpush1.bf16.msra.mxu0 %v2938
    %3282 = vmatprep.subr.bf16.mxu0 %v2935
    %3283 = vmatpush1.bf16.msra.mxu0 %v2934
    %3284 = vmatprep.subr.bf16.mxu0 %v2931
    %3285 = vmatpush1.bf16.msra.mxu0 %v2930
    %3286 = vmatprep.subr.bf16.mxu0 %v2991
    %3287 = vmatpush2.bf16.msra.mxu0 %v2990
    %3288 = vmatprep.subr.bf16.mxu0 %v2987
    %3289 = vmatpush2.bf16.msra.mxu0 %v2986
    %3290 = vmatprep.subr.bf16.mxu0 %v2983
    %3291 = vmatpush2.bf16.msra.mxu0 %v2982
    %3292 = vmatprep.subr.bf16.mxu0 %v2979
    %3293 = vmatpush2.bf16.msra.mxu0 %v2978
    %3294 = vmatprep.subr.bf16.mxu0 %v2975
    %3295 = vmatpush2.bf16.msra.mxu0 %v2974
    %3296 = vmatprep.subr.bf16.mxu0 %v2971
    %3297 = vmatpush2.bf16.msra.mxu0 %v2970
    %3298 = vmatprep.subr.bf16.mxu0 %v2967
    %3299 = vmatpush2.bf16.msra.mxu0 %v2966
    %3300 = vmatprep.subr.bf16.mxu0 %v2963
    %3301 = vmatpush2.bf16.msra.mxu0 %v2962
    %3302 = vmatprep.mubr.bf16.mxu0 %v2391
    %3303 = vmatmul.mubr.bf16.gmra.mxu0 %v2390
    %v3304 = vpop.f32.mrf.mxu0
    %v3305 = vadd.f32 %v2535, %v3304
    %v3306 = vpop.f32.mrf.mxu0
    %v3307 = vadd.f32 %v2539, %v3306
    %v3308 = vpop.f32.mrf.mxu0
    %v3309 = vadd.f32 %v2535, %v3308
    %v3310 = vpop.f32.mrf.mxu0
    %v3311 = vadd.f32 %v2539, %v3310
    %3312 = vdwg.mxu0
    %3313 = vmatprep.subr.bf16.mxu0 %v3023
    %3314 = vmatpush1.bf16.msra.mxu0 %v3022
    %3315 = vmatprep.subr.bf16.mxu0 %v3019
    %3316 = vmatpush1.bf16.msra.mxu0 %v3018
    %3317 = vmatprep.subr.bf16.mxu0 %v3015
    %3318 = vmatpush1.bf16.msra.mxu0 %v3014
    %3319 = vmatprep.subr.bf16.mxu0 %v3011
    %3320 = vmatpush1.bf16.msra.mxu0 %v3010
    %3321 = vmatprep.subr.bf16.mxu0 %v3007
    %3322 = vmatpush1.bf16.msra.mxu0 %v3006
    %3323 = vmatprep.subr.bf16.mxu0 %v3003
    %3324 = vmatpush1.bf16.msra.mxu0 %v3002
    %3325 = vmatprep.subr.bf16.mxu0 %v2999
    %3326 = vmatpush1.bf16.msra.mxu0 %v2998
    %3327 = vmatprep.subr.bf16.mxu0 %v2995
    %3328 = vmatpush1.bf16.msra.mxu0 %v2994
    %3329 = vmatprep.subr.bf16.mxu0 %v3055
    %3330 = vmatpush2.bf16.msra.mxu0 %v3054
    %3331 = vmatprep.subr.bf16.mxu0 %v3051
    %3332 = vmatpush2.bf16.msra.mxu0 %v3050
    %3333 = vmatprep.subr.bf16.mxu0 %v3047
    %3334 = vmatpush2.bf16.msra.mxu0 %v3046
    %3335 = vmatprep.subr.bf16.mxu0 %v3043
    %3336 = vmatpush2.bf16.msra.mxu0 %v3042
    %3337 = vmatprep.subr.bf16.mxu0 %v3039
    %3338 = vmatpush2.bf16.msra.mxu0 %v3038
    %3339 = vmatprep.subr.bf16.mxu0 %v3035
    %3340 = vmatpush2.bf16.msra.mxu0 %v3034
    %3341 = vmatprep.subr.bf16.mxu0 %v3031
    %3342 = vmatpush2.bf16.msra.mxu0 %v3030
    %3343 = vmatprep.subr.bf16.mxu0 %v3027
    %3344 = vmatpush2.bf16.msra.mxu0 %v3026
    %3345 = vmatprep.mubr.bf16.mxu0 %v2393
    %3346 = vmatmul.mubr.bf16.gmra.mxu0 %v2392
    %v3347 = vpop.f32.mrf.mxu0
    %v3348 = vadd.f32 %v3305, %v3347
    %v3349 = vpop.f32.mrf.mxu0
    %v3350 = vadd.f32 %v3307, %v3349
    %v3351 = vpop.f32.mrf.mxu0
    %v3352 = vadd.f32 %v3309, %v3351
    %v3353 = vpop.f32.mrf.mxu0
    %v3354 = vadd.f32 %v3311, %v3353
    %3355 = vdwg.mxu0
    %v3356 = vmax.f32 %v3262, 0.0
    %v3357 = vmax.f32 %v3264, 0.0
    %v3358 = vmax.f32 %v3348, 0.0
    %v3359 = vmax.f32 %v3350, 0.0
    %v3360 = vmax.f32 %v3266, 0.0
    %v3361 = vmax.f32 %v3268, 0.0
    %v3362 = vmax.f32 %v3352, 0.0
    %v3363 = vmax.f32 %v3354, 0.0
    %v3364 = vld [vmem:[%s8] sm:$0xff]
    %v3365 = vld [vmem:[%s8 + $0x8] sm:$0xff]
    %v3366 = vld [vmem:[%s8 + $0x10] sm:$0xff]
    %v3367 = vld [vmem:[%s8 + $0x18] sm:$0xff]
    %v3368 = vld [vmem:[%s8 + $0x20] sm:$0xff]
    %v3369 = vld [vmem:[%s8 + $0x28] sm:$0xff]
    %v3370 = vld [vmem:[%s8 + $0x30] sm:$0xff]
    %v3371 = vld [vmem:[%s8 + $0x38] sm:$0xff]
    %v3372 = vld [vmem:[%s8 + $0x40] sm:$0xff]
    %v3373 = vld [vmem:[%s8 + $0x48] sm:$0xff]
    %v3374 = vld [vmem:[%s8 + $0x50] sm:$0xff]
    %v3375 = vld [vmem:[%s8 + $0x58] sm:$0xff]
    %v3376 = vld [vmem:[%s8 + $0x60] sm:$0xff]
    %v3377 = vld [vmem:[%s8 + $0x68] sm:$0xff]
    %v3378 = vld [vmem:[%s8 + $0x70] sm:$0xff]
    %v3379 = vld [vmem:[%s8 + $0x78] sm:$0xff]
    %v3380 = vld [vmem:[%s8 + $0x80] sm:$0xff]
    %v3381 = vld [vmem:[%s8 + $0x88] sm:$0xff]
    %v3382 = vld [vmem:[%s8 + $0x90] sm:$0xff]
    %v3383 = vld [vmem:[%s8 + $0x98] sm:$0xff]
    %v3384 = vld [vmem:[%s8 + $0xa0] sm:$0xff]
    %v3385 = vld [vmem:[%s8 + $0xa8] sm:$0xff]
    %v3386 = vld [vmem:[%s8 + $0xb0] sm:$0xff]
    %v3387 = vld [vmem:[%s8 + $0xb8] sm:$0xff]
    %v3388 = vld [vmem:[%s8 + $0xc0] sm:$0xff]
    %v3389 = vld [vmem:[%s8 + $0xc8] sm:$0xff]
    %v3390 = vld [vmem:[%s8 + $0xd0] sm:$0xff]
    %v3391 = vld [vmem:[%s8 + $0xd8] sm:$0xff]
    %v3392 = vld [vmem:[%s8 + $0xe0] sm:$0xff]
    %v3393 = vld [vmem:[%s8 + $0xe8] sm:$0xff]
    %v3394 = vld [vmem:[%s8 + $0xf0] sm:$0xff]
    %v3395 = vld [vmem:[%s8 + $0xf8] sm:$0xff]
    %v3396 = vld [vmem:[%s8 + $0x100] sm:$0xff]
    %v3397 = vld [vmem:[%s8 + $0x108] sm:$0xff]
    %v3398 = vld [vmem:[%s8 + $0x110] sm:$0xff]
    %v3399 = vld [vmem:[%s8 + $0x118] sm:$0xff]
    %v3400 = vld [vmem:[%s8 + $0x120] sm:$0xff]
    %v3401 = vld [vmem:[%s8 + $0x128] sm:$0xff]
    %v3402 = vld [vmem:[%s8 + $0x130] sm:$0xff]
    %v3403 = vld [vmem:[%s8 + $0x138] sm:$0xff]
    %v3404 = vld [vmem:[%s8 + $0x140] sm:$0xff]
    %v3405 = vld [vmem:[%s8 + $0x148] sm:$0xff]
    %v3406 = vld [vmem:[%s8 + $0x150] sm:$0xff]
    %v3407 = vld [vmem:[%s8 + $0x158] sm:$0xff]
    %v3408 = vld [vmem:[%s8 + $0x160] sm:$0xff]
    %v3409 = vld [vmem:[%s8 + $0x168] sm:$0xff]
    %v3410 = vld [vmem:[%s8 + $0x170] sm:$0xff]
    %v3411 = vld [vmem:[%s8 + $0x178] sm:$0xff]
    %v3412 = vld [vmem:[%s8 + $0x180] sm:$0xff]
    %v3413 = vld [vmem:[%s8 + $0x188] sm:$0xff]
    %v3414 = vld [vmem:[%s8 + $0x190] sm:$0xff]
    %v3415 = vld [vmem:[%s8 + $0x198] sm:$0xff]
    %v3416 = vld [vmem:[%s8 + $0x1a0] sm:$0xff]
    %v3417 = vld [vmem:[%s8 + $0x1a8] sm:$0xff]
    %v3418 = vld [vmem:[%s8 + $0x1b0] sm:$0xff]
    %v3419 = vld [vmem:[%s8 + $0x1b8] sm:$0xff]
    %v3420 = vld [vmem:[%s8 + $0x1c0] sm:$0xff]
    %v3421 = vld [vmem:[%s8 + $0x1c8] sm:$0xff]
    %v3422 = vld [vmem:[%s8 + $0x1d0] sm:$0xff]
    %v3423 = vld [vmem:[%s8 + $0x1d8] sm:$0xff]
    %v3424 = vld [vmem:[%s8 + $0x1e0] sm:$0xff]
    %v3425 = vld [vmem:[%s8 + $0x1e8] sm:$0xff]
    %v3426 = vld [vmem:[%s8 + $0x1f0] sm:$0xff]
    %v3427 = vld [vmem:[%s8 + $0x1f8] sm:$0xff]
    %v3428 = vld [vmem:[%s9] sm:$0x1]
    %v3430 = vlaneseq
    %v3431 = vshrl.u32 %v3430, 7
    %v3432 = vsub.s32 0, %v3431
    %v3433 = vrot.slane %v3428, %v3432
    %3435 = vmatprep.subr.mxu0 0.0
    %3436 = vmatpush1.msra.mxu0 %v3379
    %3437 = vmatprep.subr.mxu0 0.0
    %3438 = vmatpush1.msra.mxu0 %v3378
    %3439 = vmatprep.subr.mxu0 0.0
    %3440 = vmatpush1.msra.mxu0 %v3377
    %3441 = vmatprep.subr.mxu0 0.0
    %3442 = vmatpush1.msra.mxu0 %v3376
    %3443 = vmatprep.subr.mxu0 0.0
    %3444 = vmatpush1.msra.mxu0 %v3375
    %3445 = vmatprep.subr.mxu0 0.0
    %3446 = vmatpush1.msra.mxu0 %v3374
    %3447 = vmatprep.subr.mxu0 0.0
    %3448 = vmatpush1.msra.mxu0 %v3373
    %3449 = vmatprep.subr.mxu0 0.0
    %3450 = vmatpush1.msra.mxu0 %v3372
    %3451 = vmatprep.subr.mxu0 0.0
    %3452 = vmatpush1.msra.mxu0 %v3371
    %3453 = vmatprep.subr.mxu0 0.0
    %3454 = vmatpush1.msra.mxu0 %v3370
    %3455 = vmatprep.subr.mxu0 0.0
    %3456 = vmatpush1.msra.mxu0 %v3369
    %3457 = vmatprep.subr.mxu0 0.0
    %3458 = vmatpush1.msra.mxu0 %v3368
    %3459 = vmatprep.subr.mxu0 0.0
    %3460 = vmatpush1.msra.mxu0 %v3367
    %3461 = vmatprep.subr.mxu0 0.0
    %3462 = vmatpush1.msra.mxu0 %v3366
    %3463 = vmatprep.subr.mxu0 0.0
    %3464 = vmatpush1.msra.mxu0 %v3365
    %3465 = vmatprep.subr.mxu0 0.0
    %3466 = vmatpush1.msra.mxu0 %v3364
    %3467 = vmatprep.subr.mxu0 0.0
    %3468 = vmatpush2.msra.mxu0 %v3395
    %3469 = vmatprep.subr.mxu0 0.0
    %3470 = vmatpush2.msra.mxu0 %v3394
    %3471 = vmatprep.subr.mxu0 0.0
    %3472 = vmatpush2.msra.mxu0 %v3393
    %3473 = vmatprep.subr.mxu0 0.0
    %3474 = vmatpush2.msra.mxu0 %v3392
    %3475 = vmatprep.subr.mxu0 0.0
    %3476 = vmatpush2.msra.mxu0 %v3391
    %3477 = vmatprep.subr.mxu0 0.0
    %3478 = vmatpush2.msra.mxu0 %v3390
    %3479 = vmatprep.subr.mxu0 0.0
    %3480 = vmatpush2.msra.mxu0 %v3389
    %3481 = vmatprep.subr.mxu0 0.0
    %3482 = vmatpush2.msra.mxu0 %v3388
    %3483 = vmatprep.subr.mxu0 0.0
    %3484 = vmatpush2.msra.mxu0 %v3387
    %3485 = vmatprep.subr.mxu0 0.0
    %3486 = vmatpush2.msra.mxu0 %v3386
    %3487 = vmatprep.subr.mxu0 0.0
    %3488 = vmatpush2.msra.mxu0 %v3385
    %3489 = vmatprep.subr.mxu0 0.0
    %3490 = vmatpush2.msra.mxu0 %v3384
    %3491 = vmatprep.subr.mxu0 0.0
    %3492 = vmatpush2.msra.mxu0 %v3383
    %3493 = vmatprep.subr.mxu0 0.0
    %3494 = vmatpush2.msra.mxu0 %v3382
    %3495 = vmatprep.subr.mxu0 0.0
    %3496 = vmatpush2.msra.mxu0 %v3381
    %3497 = vmatprep.subr.mxu0 0.0
    %3498 = vmatpush2.msra.mxu0 %v3380
    %3499 = vmatprep.mubr.f32.mxu0 %v3357
    %3500 = vmatmul.mubr.f32.gmra.mxu0 %v3356
    %v3501 = vpop.f32.mrf.mxu0
    %v3502 = vadd.f32 %v3433, %v3501
    %v3503 = vpop.f32.mrf.mxu0
    %3504 = vmatprep.mubr.f32.mxu0 %v3361
    %3505 = vmatmul.mubr.f32.gmra.mxu0 %v3360
    %v3506 = vpop.f32.mrf.mxu0
    %v3507 = vadd.f32 %v3433, %v3506
    %v3508 = vpop.f32.mrf.mxu0
    %3509 = vdwg.mxu0
    %3510 = vmatprep.subr.mxu0 0.0
    %3511 = vmatpush1.msra.mxu0 %v3411
    %3512 = vmatprep.subr.mxu0 0.0
    %3513 = vmatpush1.msra.mxu0 %v3410
    %3514 = vmatprep.subr.mxu0 0.0
    %3515 = vmatpush1.msra.mxu0 %v3409
    %3516 = vmatprep.subr.mxu0 0.0
    %3517 = vmatpush1.msra.mxu0 %v3408
    %3518 = vmatprep.subr.mxu0 0.0
    %3519 = vmatpush1.msra.mxu0 %v3407
    %3520 = vmatprep.subr.mxu0 0.0
    %3521 = vmatpush1.msra.mxu0 %v3406
    %3522 = vmatprep.subr.mxu0 0.0
    %3523 = vmatpush1.msra.mxu0 %v3405
    %3524 = vmatprep.subr.mxu0 0.0
    %3525 = vmatpush1.msra.mxu0 %v3404
    %3526 = vmatprep.subr.mxu0 0.0
    %3527 = vmatpush1.msra.mxu0 %v3403
    %3528 = vmatprep.subr.mxu0 0.0
    %3529 = vmatpush1.msra.mxu0 %v3402
    %3530 = vmatprep.subr.mxu0 0.0
    %3531 = vmatpush1.msra.mxu0 %v3401
    %3532 = vmatprep.subr.mxu0 0.0
    %3533 = vmatpush1.msra.mxu0 %v3400
    %3534 = vmatprep.subr.mxu0 0.0
    %3535 = vmatpush1.msra.mxu0 %v3399
    %3536 = vmatprep.subr.mxu0 0.0
    %3537 = vmatpush1.msra.mxu0 %v3398
    %3538 = vmatprep.subr.mxu0 0.0
    %3539 = vmatpush1.msra.mxu0 %v3397
    %3540 = vmatprep.subr.mxu0 0.0
    %3541 = vmatpush1.msra.mxu0 %v3396
    %3542 = vmatprep.subr.mxu0 0.0
    %3543 = vmatpush2.msra.mxu0 %v3427
    %3544 = vmatprep.subr.mxu0 0.0
    %3545 = vmatpush2.msra.mxu0 %v3426
    %3546 = vmatprep.subr.mxu0 0.0
    %3547 = vmatpush2.msra.mxu0 %v3425
    %3548 = vmatprep.subr.mxu0 0.0
    %3549 = vmatpush2.msra.mxu0 %v3424
    %3550 = vmatprep.subr.mxu0 0.0
    %3551 = vmatpush2.msra.mxu0 %v3423
    %3552 = vmatprep.subr.mxu0 0.0
    %3553 = vmatpush2.msra.mxu0 %v3422
    %3554 = vmatprep.subr.mxu0 0.0
    %3555 = vmatpush2.msra.mxu0 %v3421
    %3556 = vmatprep.subr.mxu0 0.0
    %3557 = vmatpush2.msra.mxu0 %v3420
    %3558 = vmatprep.subr.mxu0 0.0
    %3559 = vmatpush2.msra.mxu0 %v3419
    %3560 = vmatprep.subr.mxu0 0.0
    %3561 = vmatpush2.msra.mxu0 %v3418
    %3562 = vmatprep.subr.mxu0 0.0
    %3563 = vmatpush2.msra.mxu0 %v3417
    %3564 = vmatprep.subr.mxu0 0.0
    %3565 = vmatpush2.msra.mxu0 %v3416
    %3566 = vmatprep.subr.mxu0 0.0
    %3567 = vmatpush2.msra.mxu0 %v3415
    %3568 = vmatprep.subr.mxu0 0.0
    %3569 = vmatpush2.msra.mxu0 %v3414
    %3570 = vmatprep.subr.mxu0 0.0
    %3571 = vmatpush2.msra.mxu0 %v3413
    %3572 = vmatprep.subr.mxu0 0.0
    %3573 = vmatpush2.msra.mxu0 %v3412
    %3574 = vmatprep.mubr.f32.mxu0 %v3359
    %3575 = vmatmul.mubr.f32.gmra.mxu0 %v3358
    %v3576 = vpop.f32.mrf.mxu0
    %v3577 = vadd.f32 %v3502, %v3576
    %v3578 = vpop.f32.mrf.mxu0
    %3579 = vmatprep.mubr.f32.mxu0 %v3363
    %3580 = vmatmul.mubr.f32.gmra.mxu0 %v3362
    %v3581 = vpop.f32.mrf.mxu0
    %v3582 = vadd.f32 %v3507, %v3581
    %v3583 = vpop.f32.mrf.mxu0
    %3584 = vdwg.mxu0
    %v3585 = vxor.u32 %v3577, 2147483648
    %v3586 = vxor.u32 %v3582, 2147483648
    %v3587 = vmul.f32 %v3585, 1.442695
    %v3588 = vpow.pop %v3587
    %v3589 = vmul.f32 %v3586, 1.442695
    %v3590 = vpow.pop %v3589
    %v3591 = vadd.f32 %v3588, 1.0
    %v3592 = vadd.f32 %v3590, 1.0
    %v3593 = vrcp.pop %v3591
    %v3594 = vmul.f32 1.0, %v3593
    %v3595 = vrcp.pop %v3592
    %v3596 = vmul.f32 1.0, %v3595
    %3597 = vst.msk [vmem:[#allocation9] sm:$0xff] %vm136, %v3594
    %3598 = vst.msk [vmem:[#allocation9 + $0x8] sm:$0xff] %vm136, %v3596
    // Predicated region
    $region54: #{tpu_custom_call.1} parent=1 // pred_check
      _
    $region55: #{tpu_custom_call.1} parent=1 // pred_check_branch
      %3600 = sbr.rel (0) target = $region57
    $region56: #{tpu_custom_call.1} parent=1 // pred_region
      %s3602 = ssub.s32 256, 256
      %3603 = vsyncadd [#allocation4], %s3602
      %s3604 = sshll.u32 [#allocation8], 4
      %s3605 = int_to_ptr.vmem [resolvable:$true] %s3604
      %3610 = dma.vmem_to_hbm [thread:$0]  %s3605, 256, %s10, [#allocation4], 128, 128, 8
    $region57: #{tpu_custom_call.1} parent=1 // pred_fallthru
      _
    // Predicated region
    $region58: #{tpu_custom_call.1} parent=1 // pred_check
      _
    $region59: #{tpu_custom_call.1} parent=1 // pred_check_branch
      %3612 = sbr.rel (0) target = $region61
    $region60: #{tpu_custom_call.1} parent=1 // pred_region
      %s3614 = ssub.s32 256, 256
      %3615 = vsyncadd [#allocation10], %s3614
      %s3616 = sshll.u32 [#allocation9], 4
      %s3617 = int_to_ptr.vmem [resolvable:$true] %s3616
      %3622 = dma.vmem_to_hbm [thread:$0]  %s3617, 256, %s11, [#allocation10], 128, 128, 8
    $region61: #{tpu_custom_call.1} parent=1 // pred_fallthru
      _
    // Predicated region
    $region62: #{tpu_custom_call.1} parent=1 // pred_check
      _
    $region63: #{tpu_custom_call.1} parent=1 // pred_check_branch
      %3624 = sbr.rel (0) target = $region65
    $region64: #{tpu_custom_call.1} parent=1 // pred_region
      %3625 = dma.done [#allocation4], 256
    $region65: #{tpu_custom_call.1} parent=1 // pred_fallthru
      _
    // Predicated region
    $region66: #{tpu_custom_call.1} parent=1 // pred_check
      _
    $region67: #{tpu_custom_call.1} parent=1 // pred_check_branch
      %3627 = sbr.rel (0) target = $region69
    $region68: #{tpu_custom_call.1} parent=1 // pred_region
      %3628 = dma.done [#allocation10], 256
    $region69: #{tpu_custom_call.1} parent=1 // pred_fallthru
      _
    %3629 = vsyncpa [#allocation3], 1
    %3630 = vsyncpa [#allocation6], 1
    %3631 = vsyncpa [#allocation4], 1
    %3632 = vsyncpa [#allocation10], 1

</llo_original>
